<compile_context>
chip_gen: v6e
topology: v6e:2x2x1
jax: 0.10.0
libtpu: 0.0.40
codegen_flags: <defaults>
</compile_context>

<pallas_src>
import functools

import jax
import jax.numpy as jnp
from jax import lax
from jax.experimental import pallas as pl
from jax.experimental.pallas import tpu as pltpu

LANES = 128          # channel / feature lane padding
IN_HW = 32           # LeNet5 spec requires 32x32 input (fc1 = Linear(32*2*2, 120))
C1_HW, P1_HW = 30, 15
C2_HW, P2_HW = 13, 6
C3_HW, P3_HW = 4, 2


# ---------------------------------------------------------------------------
# In-kernel building blocks (all operands already resident in VMEM)
# ---------------------------------------------------------------------------
def _conv3x3_relu(in_ref, h_in, w_in, w_ref, b_ref, out_ref):
    """3x3 VALID conv + bias + ReLU in channels-last-flat layout.

    in_ref : (h_in*w_in, LANES)   row = h*w_in + w, lanes = Cin (zero padded)
    w_ref  : (9, LANES, LANES)    tap t = di*3+dj, layout [cin, cout] (padded)
    b_ref  : (1, LANES)
    out_ref: (h_out*w_out, LANES)
    """
    h_out, w_out = h_in - 2, w_in - 2
    bias = b_ref[...]

    @pl.loop(0, h_out)
    def _(ho):
        acc = jnp.zeros((w_out, LANES), jnp.float32)
        for t in range(9):                       # in-kernel im2col: 9 shifted matmuls
            di, dj = t // 3, t % 3
            rows = in_ref[pl.ds((ho + di) * w_in + dj, w_out), :]
            acc = acc + jnp.dot(rows, w_ref[t],
                                preferred_element_type=jnp.float32)
        out_ref[pl.ds(ho * w_out, w_out), :] = jnp.maximum(acc + bias, 0.0)


def _maxpool2x2(in_ref, h_in, w_in, out_ref):
    """2x2 / stride-2 floor-mode max pool on the channels-last-flat layout."""
    h_out, w_out = h_in // 2, w_in // 2
    for po in range(h_out):                      # tiny trip counts -> static unroll
        r0 = (2 * po) * w_in
        r1 = r0 + w_in
        a = in_ref[pl.ds(r0, w_out, stride=2), :]
        b = in_ref[pl.ds(r0 + 1, w_out, stride=2), :]
        c = in_ref[pl.ds(r1, w_out, stride=2), :]
        d = in_ref[pl.ds(r1 + 1, w_out, stride=2), :]
        out_ref[pl.ds(po * w_out, w_out), :] = jnp.maximum(
            jnp.maximum(a, b), jnp.maximum(c, d))


# ---------------------------------------------------------------------------
# The single fused kernel: conv1->pool1->conv2->pool2->conv3->pool3->fc1..fc4
# ---------------------------------------------------------------------------
def _lenet5_kernel(x_ref, w1, b1, w2, b2, w3, b3,
                   wf1, bf1, wf2, bf2, wf3, bf3, wf4, bf4,
                   out_ref,
                   a1, p1, a2, p2, a3, p3):
    # conv / pool pyramid — everything stays in VMEM scratch
    _conv3x3_relu(x_ref, IN_HW, IN_HW, w1, b1, a1)     # 32x32 -> 30x30
    _maxpool2x2(a1, C1_HW, C1_HW, p1)                  # -> 15x15
    _conv3x3_relu(p1, P1_HW, P1_HW, w2, b2, a2)        # -> 13x13
    _maxpool2x2(a2, C2_HW, C2_HW, p2)                  # -> 6x6
    _conv3x3_relu(p2, P2_HW, P2_HW, w3, b3, a3)        # -> 4x4
    _maxpool2x2(a3, C3_HW, C3_HW, p3)                  # -> 2x2

    # Fused FC stack.  fc1 contracts over (hw=4) x (c=128) with host-permuted
    # weights so torch's `x.view(N, -1)` (C-major) flatten order is preserved.
    feats = p3[...]                                    # (4, LANES)
    h = bf1[...]
    for hw in range(4):
        h = h + jnp.dot(feats[hw:hw + 1, :], wf1[hw],
                        preferred_element_type=jnp.float32)
    h = jnp.maximum(h, 0.0)
    h = jnp.maximum(jnp.dot(h, wf2[...], preferred_element_type=jnp.float32)
                    + bf2[...], 0.0)
    h = jnp.maximum(jnp.dot(h, wf3[...], preferred_element_type=jnp.float32)
                    + bf3[...], 0.0)
    h = jnp.dot(h, wf4[...], preferred_element_type=jnp.float32) + bf4[...]
    out_ref[...] = jnp.broadcast_to(h, (8, LANES))     # lane-dense (8,128) tile


# ---------------------------------------------------------------------------
# Host-side parameter init and one-time repack (outside the hot path)
# ---------------------------------------------------------------------------
def init_params(key, num_classes=2, in_ch=3):
    shapes = {
        "conv1_w": (6, in_ch, 3, 3), "conv1_b": (6,),
        "conv2_w": (16, 6, 3, 3),    "conv2_b": (16,),
        "conv3_w": (32, 16, 3, 3),   "conv3_b": (32,),
        "fc1_w": (120, 32 * 2 * 2),  "fc1_b": (120,),
        "fc2_w": (84, 120),          "fc2_b": (84,),
        "fc3_w": (10, 84),           "fc3_b": (10,),
        "fc4_w": (num_classes, 10),  "fc4_b": (num_classes,),
    }
    params = {}
    for name, shp in shapes.items():
        key, sub = jax.random.split(key)
        params[name] = 0.1 * jax.random.normal(sub, shp, dtype=jnp.float32)
    return params


def prepare_params(params):
    """One-time host repack: zero-pad all weights to 128 lanes and pre-transpose
    into the layouts the fused kernel consumes (no per-call w.T anywhere)."""
    def conv_taps(w, b):
        cout, cin, k, _ = w.shape
        # taps[di*k+dj, ci, co] = w[co, ci, di, dj]
        wt = jnp.transpose(w, (2, 3, 1, 0)).reshape(k * k, cin, cout)
        taps = jnp.zeros((k * k, LANES, LANES), jnp.float32).at[:, :cin, :cout].set(wt)
        bias = jnp.zeros((1, LANES), jnp.float32).at[0, :cout].set(b)
        return taps, bias

    def fc_pad(w, b):
        o, i = w.shape
        wm = jnp.zeros((LANES, LANES), jnp.float32).at[:i, :o].set(w.T)
        bm = jnp.zeros((1, LANES), jnp.float32).at[0, :o].set(b)
        return wm, bm

    w1, b1 = conv_taps(params["conv1_w"], params["conv1_b"])
    w2, b2 = conv_taps(params["conv2_w"], params["conv2_b"])
    w3, b3 = conv_taps(params["conv3_w"], params["conv3_b"])

    # fc1 input index in torch order is c*4 + (h*2+w); kernel layout is rows=h*2+w,
    # lanes=c, so permute fc1_w once into [hw, c, out].
    f1 = params["fc1_w"].reshape(120, 32, 2, 2).transpose(2, 3, 1, 0).reshape(4, 32, 120)
    wf1 = jnp.zeros((4, LANES, LANES), jnp.float32).at[:, :32, :120].set(f1)
    bf1 = jnp.zeros((1, LANES), jnp.float32).at[0, :120].set(params["fc1_b"])

    wf2, bf2 = fc_pad(params["fc2_w"], params["fc2_b"])
    wf3, bf3 = fc_pad(params["fc3_w"], params["fc3_b"])
    wf4, bf4 = fc_pad(params["fc4_w"], params["fc4_b"])
    return (w1, b1, w2, b2, w3, b3, wf1, bf1, wf2, bf2, wf3, bf3, wf4, bf4)


# ---------------------------------------------------------------------------
# Forward: one pallas_call for the whole network
# ---------------------------------------------------------------------------
def lenet5_forward(prepped, x, num_classes=2):
    n, cin, hh, ww = x.shape
    assert hh == IN_HW and ww == IN_HW, "fc1 = Linear(32*2*2, .) requires 32x32 input"

    # channels-last, pad channels to 128 lanes, flatten spatial -> (N, H*W, 128).
    # (At batch=2 the padding amplification is negligible; for very large batch
    #  pad to a smaller multiple of 8 instead.)
    xc = jnp.transpose(x, (0, 2, 3, 1)).astype(jnp.float32)
    xc = jnp.pad(xc, ((0, 0), (0, 0), (0, 0), (0, LANES - cin)))
    xc = xc.reshape(n, hh * ww, LANES)

    (w1, b1, w2, b2, w3, b3, wf1, bf1, wf2, bf2, wf3, bf3, wf4, bf4) = prepped

    def const_spec(arr):
        zeros = (0,) * arr.ndim
        return pl.BlockSpec(arr.shape, lambda i, _z=zeros: _z)

    out = pl.pallas_call(
        _lenet5_kernel,
        grid=(n,),
        in_specs=[
            pl.BlockSpec((None, hh * ww, LANES), lambda i: (i, 0, 0)),
            const_spec(w1), const_spec(b1),
            const_spec(w2), const_spec(b2),
            const_spec(w3), const_spec(b3),
            const_spec(wf1), const_spec(bf1),
            const_spec(wf2), const_spec(bf2),
            const_spec(wf3), const_spec(bf3),
            const_spec(wf4), const_spec(bf4),
        ],
        out_specs=pl.BlockSpec((None, 8, LANES), lambda i: (i, 0, 0)),
        out_shape=jax.ShapeDtypeStruct((n, 8, LANES), jnp.float32),
        scratch_shapes=[
            pltpu.VMEM((C1_HW * C1_HW, LANES), jnp.float32),   # conv1 out (30x30)
            pltpu.VMEM((P1_HW * P1_HW, LANES), jnp.float32),   # pool1 out (15x15)
            pltpu.VMEM((C2_HW * C2_HW, LANES), jnp.float32),   # conv2 out (13x13)
            pltpu.VMEM((P2_HW * P2_HW, LANES), jnp.float32),   # pool2 out (6x6)
            pltpu.VMEM((C3_HW * C3_HW, LANES), jnp.float32),   # conv3 out (4x4)
            pltpu.VMEM((P3_HW * P3_HW, LANES), jnp.float32),   # pool3 out (2x2)
        ],
        compiler_params=pltpu.CompilerParams(
            dimension_semantics=("parallel",),
            vmem_limit_bytes=32 * 1024 * 1024,
        ),
    )(xc, w1, b1, w2, b2, w3, b3, wf1, bf1, wf2, bf2, wf3, bf3, wf4, bf4)

    # valid lanes sliced once at the very end (lane-dense stores inside kernel)
    return out[:, 0, :num_classes]


# ---------------------------------------------------------------------------
# Pure-JAX reference (for correctness check only)
# ---------------------------------------------------------------------------
def lenet5_reference(params, x):
    def conv(x, w, b):
        y = lax.conv_general_dilated(x, w, (1, 1), "VALID",
                                     dimension_numbers=("NCHW", "OIHW", "NCHW"))
        return jax.nn.relu(y + b.reshape(1, -1, 1, 1))

    def pool(x):
        return lax.reduce_window(x, -jnp.inf, lax.max,
                                 (1, 1, 2, 2), (1, 1, 2, 2), "VALID")

    x = pool(conv(x, params["conv1_w"], params["conv1_b"]))
    x = pool(conv(x, params["conv2_w"], params["conv2_b"]))
    x = pool(conv(x, params["conv3_w"], params["conv3_b"]))
    x = x.reshape(x.shape[0], -1)
    x = jax.nn.relu(x @ params["fc1_w"].T + params["fc1_b"])
    x = jax.nn.relu(x @ params["fc2_w"].T + params["fc2_b"])
    x = jax.nn.relu(x @ params["fc3_w"].T + params["fc3_b"])
    return x @ params["fc4_w"].T + params["fc4_b"]


if __name__ == "__main__":
    key = jax.random.PRNGKey(0)
    pkey, xkey = jax.random.split(key)
    num_classes = 2
    params = init_params(pkey, num_classes=num_classes, in_ch=3)
    prepped = prepare_params(params)                 # one-time host repack
    x = jax.random.normal(xkey, (2, 3, 32, 32), dtype=jnp.float32)

    fwd = jax.jit(functools.partial(lenet5_forward, num_classes=num_classes))
    out = jax.block_until_ready(fwd(prepped, x))

    assert out.shape == (2, num_classes) and out.dtype == jnp.float32
    ref = lenet5_reference(params, x)
    assert jnp.allclose(out, ref, atol=2e-3, rtol=2e-2), (out, ref)
    print("KERNEL_OK")
</pallas_src>

<mosaic_0001>
module attributes {stable_mosaic.version = 11 : i64} {
  func.func @_lenet5_kernel(%arg0: i32, %arg1: memref<1x1024x128xf32, #tpu.memory_space<vmem>>, %arg2: memref<9x128x128xf32, #tpu.memory_space<vmem>>, %arg3: memref<1x128xf32, #tpu.memory_space<vmem>>, %arg4: memref<9x128x128xf32, #tpu.memory_space<vmem>>, %arg5: memref<1x128xf32, #tpu.memory_space<vmem>>, %arg6: memref<9x128x128xf32, #tpu.memory_space<vmem>>, %arg7: memref<1x128xf32, #tpu.memory_space<vmem>>, %arg8: memref<4x128x128xf32, #tpu.memory_space<vmem>>, %arg9: memref<1x128xf32, #tpu.memory_space<vmem>>, %arg10: memref<128x128xf32, #tpu.memory_space<vmem>>, %arg11: memref<1x128xf32, #tpu.memory_space<vmem>>, %arg12: memref<128x128xf32, #tpu.memory_space<vmem>>, %arg13: memref<1x128xf32, #tpu.memory_space<vmem>>, %arg14: memref<128x128xf32, #tpu.memory_space<vmem>>, %arg15: memref<1x128xf32, #tpu.memory_space<vmem>>, %arg16: memref<1x8x128xf32, #tpu.memory_space<vmem>>, %arg17: memref<900x128xf32, #tpu.memory_space<vmem>>, %arg18: memref<225x128xf32, #tpu.memory_space<vmem>>, %arg19: memref<169x128xf32, #tpu.memory_space<vmem>>, %arg20: memref<36x128xf32, #tpu.memory_space<vmem>>, %arg21: memref<16x128xf32, #tpu.memory_space<vmem>>, %arg22: memref<4x128xf32, #tpu.memory_space<vmem>>) attributes {dimension_semantics = [#tpu.dimension_semantics<parallel>], iteration_bounds = array<i64: 2>, scalar_prefetch = 0 : i64, scratch_operands = 6 : i64, tpu.core_type = #tpu.core_type<tc>, window_params = [{transform_indices = @transform_0, window_bounds = array<i64: 1, 1024, 128>}, {pipeline_mode = #tpu.pipeline_mode<synchronous>, transform_indices = @transform_1, window_bounds = array<i64: 9, 128, 128>}, {pipeline_mode = #tpu.pipeline_mode<synchronous>, transform_indices = @transform_2, window_bounds = array<i64: 1, 128>}, {pipeline_mode = #tpu.pipeline_mode<synchronous>, transform_indices = @transform_3, window_bounds = array<i64: 9, 128, 128>}, {pipeline_mode = #tpu.pipeline_mode<synchronous>, transform_indices = @transform_4, window_bounds = array<i64: 1, 128>}, {pipeline_mode = #tpu.pipeline_mode<synchronous>, transform_indices = @transform_5, window_bounds = array<i64: 9, 128, 128>}, {pipeline_mode = #tpu.pipeline_mode<synchronous>, transform_indices = @transform_6, window_bounds = array<i64: 1, 128>}, {pipeline_mode = #tpu.pipeline_mode<synchronous>, transform_indices = @transform_7, window_bounds = array<i64: 4, 128, 128>}, {pipeline_mode = #tpu.pipeline_mode<synchronous>, transform_indices = @transform_8, window_bounds = array<i64: 1, 128>}, {pipeline_mode = #tpu.pipeline_mode<synchronous>, transform_indices = @transform_9, window_bounds = array<i64: 128, 128>}, {pipeline_mode = #tpu.pipeline_mode<synchronous>, transform_indices = @transform_10, window_bounds = array<i64: 1, 128>}, {pipeline_mode = #tpu.pipeline_mode<synchronous>, transform_indices = @transform_11, window_bounds = array<i64: 128, 128>}, {pipeline_mode = #tpu.pipeline_mode<synchronous>, transform_indices = @transform_12, window_bounds = array<i64: 1, 128>}, {pipeline_mode = #tpu.pipeline_mode<synchronous>, transform_indices = @transform_13, window_bounds = array<i64: 128, 128>}, {pipeline_mode = #tpu.pipeline_mode<synchronous>, transform_indices = @transform_14, window_bounds = array<i64: 1, 128>}, {transform_indices = @transform_15, window_bounds = array<i64: 1, 8, 128>}]} {
    %c0 = arith.constant 0 : index
    %c0_0 = arith.constant 0 : index
    %0 = vector.load %arg3[%c0, %c0_0] : memref<1x128xf32, #tpu.memory_space<vmem>>, vector<1x128xf32>
    %c0_i32 = arith.constant 0 : i32
    %c30_i32 = arith.constant 30 : i32
    %1 = arith.addi %c0_i32, %c30_i32 : i32
    %c1_i32 = arith.constant 1 : i32
    scf.for %arg23 = %c0_i32 to %1 step %c1_i32  : i32 {
      %c1_i32_186 = arith.constant 1 : i32
      %235 = arith.muli %arg23, %c1_i32_186 : i32
      %c0_i32_187 = arith.constant 0 : i32
      %236 = arith.addi %c0_i32_187, %235 : i32
      %cst_188 = arith.constant 0.000000e+00 : f32
      %237 = vector.broadcast %cst_188 : f32 to vector<30x128xf32>
      %c0_i32_189 = arith.constant 0 : i32
      %238 = arith.addi %236, %c0_i32_189 : i32
      %c32_i32 = arith.constant 32 : i32
      %239 = arith.muli %238, %c32_i32 : i32
      %c0_i32_190 = arith.constant 0 : i32
      %240 = arith.addi %239, %c0_i32_190 : i32
      %c0_191 = arith.constant 0 : index
      %241 = arith.index_cast %240 : i32 to index
      %c0_192 = arith.constant 0 : index
      %242 = vector.load %arg1[%c0_191, %241, %c0_192] : memref<1x1024x128xf32, #tpu.memory_space<vmem>>, vector<1x30x128xf32>
      %243 = vector.shape_cast %242 : vector<1x30x128xf32> to vector<30x128xf32>
      %c0_193 = arith.constant 0 : index
      %c0_194 = arith.constant 0 : index
      %c0_195 = arith.constant 0 : index
      %244 = vector.load %arg2[%c0_193, %c0_194, %c0_195] : memref<9x128x128xf32, #tpu.memory_space<vmem>>, vector<1x128x128xf32>
      %245 = vector.shape_cast %244 : vector<1x128x128xf32> to vector<128x128xf32>
      %cst_196 = arith.constant dense<0.000000e+00> : vector<30x128xf32>
      %246 = tpu.matmul %243, %245, %cst_196 {dimension_numbers = #tpu.dot_dimension_numbers<[1], [0], [0], [1], [0, 0, 1, 1], [], []>} : vector<30x128xf32>, vector<128x128xf32>, vector<30x128xf32> -> vector<30x128xf32>
      %247 = arith.addf %237, %246 : vector<30x128xf32>
      %c0_i32_197 = arith.constant 0 : i32
      %248 = arith.addi %236, %c0_i32_197 : i32
      %c32_i32_198 = arith.constant 32 : i32
      %249 = arith.muli %248, %c32_i32_198 : i32
      %c1_i32_199 = arith.constant 1 : i32
      %250 = arith.addi %249, %c1_i32_199 : i32
      %c0_200 = arith.constant 0 : index
      %251 = arith.index_cast %250 : i32 to index
      %c0_201 = arith.constant 0 : index
      %252 = vector.load %arg1[%c0_200, %251, %c0_201] : memref<1x1024x128xf32, #tpu.memory_space<vmem>>, vector<1x30x128xf32>
      %253 = vector.shape_cast %252 : vector<1x30x128xf32> to vector<30x128xf32>
      %c1_202 = arith.constant 1 : index
      %c0_203 = arith.constant 0 : index
      %c0_204 = arith.constant 0 : index
      %254 = vector.load %arg2[%c1_202, %c0_203, %c0_204] : memref<9x128x128xf32, #tpu.memory_space<vmem>>, vector<1x128x128xf32>
      %255 = vector.shape_cast %254 : vector<1x128x128xf32> to vector<128x128xf32>
      %cst_205 = arith.constant dense<0.000000e+00> : vector<30x128xf32>
      %256 = tpu.matmul %253, %255, %cst_205 {dimension_numbers = #tpu.dot_dimension_numbers<[1], [0], [0], [1], [0, 0, 1, 1], [], []>} : vector<30x128xf32>, vector<128x128xf32>, vector<30x128xf32> -> vector<30x128xf32>
      %257 = arith.addf %247, %256 : vector<30x128xf32>
      %c0_i32_206 = arith.constant 0 : i32
      %258 = arith.addi %236, %c0_i32_206 : i32
      %c32_i32_207 = arith.constant 32 : i32
      %259 = arith.muli %258, %c32_i32_207 : i32
      %c2_i32 = arith.constant 2 : i32
      %260 = arith.addi %259, %c2_i32 : i32
      %c0_208 = arith.constant 0 : index
      %261 = arith.index_cast %260 : i32 to index
      %c0_209 = arith.constant 0 : index
      %262 = vector.load %arg1[%c0_208, %261, %c0_209] : memref<1x1024x128xf32, #tpu.memory_space<vmem>>, vector<1x30x128xf32>
      %263 = vector.shape_cast %262 : vector<1x30x128xf32> to vector<30x128xf32>
      %c2_210 = arith.constant 2 : index
      %c0_211 = arith.constant 0 : index
      %c0_212 = arith.constant 0 : index
      %264 = vector.load %arg2[%c2_210, %c0_211, %c0_212] : memref<9x128x128xf32, #tpu.memory_space<vmem>>, vector<1x128x128xf32>
      %265 = vector.shape_cast %264 : vector<1x128x128xf32> to vector<128x128xf32>
      %cst_213 = arith.constant dense<0.000000e+00> : vector<30x128xf32>
      %266 = tpu.matmul %263, %265, %cst_213 {dimension_numbers = #tpu.dot_dimension_numbers<[1], [0], [0], [1], [0, 0, 1, 1], [], []>} : vector<30x128xf32>, vector<128x128xf32>, vector<30x128xf32> -> vector<30x128xf32>
      %267 = arith.addf %257, %266 : vector<30x128xf32>
      %c1_i32_214 = arith.constant 1 : i32
      %268 = arith.addi %236, %c1_i32_214 : i32
      %c32_i32_215 = arith.constant 32 : i32
      %269 = arith.muli %268, %c32_i32_215 : i32
      %c0_i32_216 = arith.constant 0 : i32
      %270 = arith.addi %269, %c0_i32_216 : i32
      %c0_217 = arith.constant 0 : index
      %271 = arith.index_cast %270 : i32 to index
      %c0_218 = arith.constant 0 : index
      %272 = vector.load %arg1[%c0_217, %271, %c0_218] : memref<1x1024x128xf32, #tpu.memory_space<vmem>>, vector<1x30x128xf32>
      %273 = vector.shape_cast %272 : vector<1x30x128xf32> to vector<30x128xf32>
      %c3_219 = arith.constant 3 : index
      %c0_220 = arith.constant 0 : index
      %c0_221 = arith.constant 0 : index
      %274 = vector.load %arg2[%c3_219, %c0_220, %c0_221] : memref<9x128x128xf32, #tpu.memory_space<vmem>>, vector<1x128x128xf32>
      %275 = vector.shape_cast %274 : vector<1x128x128xf32> to vector<128x128xf32>
      %cst_222 = arith.constant dense<0.000000e+00> : vector<30x128xf32>
      %276 = tpu.matmul %273, %275, %cst_222 {dimension_numbers = #tpu.dot_dimension_numbers<[1], [0], [0], [1], [0, 0, 1, 1], [], []>} : vector<30x128xf32>, vector<128x128xf32>, vector<30x128xf32> -> vector<30x128xf32>
      %277 = arith.addf %267, %276 : vector<30x128xf32>
      %c1_i32_223 = arith.constant 1 : i32
      %278 = arith.addi %236, %c1_i32_223 : i32
      %c32_i32_224 = arith.constant 32 : i32
      %279 = arith.muli %278, %c32_i32_224 : i32
      %c1_i32_225 = arith.constant 1 : i32
      %280 = arith.addi %279, %c1_i32_225 : i32
      %c0_226 = arith.constant 0 : index
      %281 = arith.index_cast %280 : i32 to index
      %c0_227 = arith.constant 0 : index
      %282 = vector.load %arg1[%c0_226, %281, %c0_227] : memref<1x1024x128xf32, #tpu.memory_space<vmem>>, vector<1x30x128xf32>
      %283 = vector.shape_cast %282 : vector<1x30x128xf32> to vector<30x128xf32>
      %c4_228 = arith.constant 4 : index
      %c0_229 = arith.constant 0 : index
      %c0_230 = arith.constant 0 : index
      %284 = vector.load %arg2[%c4_228, %c0_229, %c0_230] : memref<9x128x128xf32, #tpu.memory_space<vmem>>, vector<1x128x128xf32>
      %285 = vector.shape_cast %284 : vector<1x128x128xf32> to vector<128x128xf32>
      %cst_231 = arith.constant dense<0.000000e+00> : vector<30x128xf32>
      %286 = tpu.matmul %283, %285, %cst_231 {dimension_numbers = #tpu.dot_dimension_numbers<[1], [0], [0], [1], [0, 0, 1, 1], [], []>} : vector<30x128xf32>, vector<128x128xf32>, vector<30x128xf32> -> vector<30x128xf32>
      %287 = arith.addf %277, %286 : vector<30x128xf32>
      %c1_i32_232 = arith.constant 1 : i32
      %288 = arith.addi %236, %c1_i32_232 : i32
      %c32_i32_233 = arith.constant 32 : i32
      %289 = arith.muli %288, %c32_i32_233 : i32
      %c2_i32_234 = arith.constant 2 : i32
      %290 = arith.addi %289, %c2_i32_234 : i32
      %c0_235 = arith.constant 0 : index
      %291 = arith.index_cast %290 : i32 to index
      %c0_236 = arith.constant 0 : index
      %292 = vector.load %arg1[%c0_235, %291, %c0_236] : memref<1x1024x128xf32, #tpu.memory_space<vmem>>, vector<1x30x128xf32>
      %293 = vector.shape_cast %292 : vector<1x30x128xf32> to vector<30x128xf32>
      %c5_237 = arith.constant 5 : index
      %c0_238 = arith.constant 0 : index
      %c0_239 = arith.constant 0 : index
      %294 = vector.load %arg2[%c5_237, %c0_238, %c0_239] : memref<9x128x128xf32, #tpu.memory_space<vmem>>, vector<1x128x128xf32>
      %295 = vector.shape_cast %294 : vector<1x128x128xf32> to vector<128x128xf32>
      %cst_240 = arith.constant dense<0.000000e+00> : vector<30x128xf32>
      %296 = tpu.matmul %293, %295, %cst_240 {dimension_numbers = #tpu.dot_dimension_numbers<[1], [0], [0], [1], [0, 0, 1, 1], [], []>} : vector<30x128xf32>, vector<128x128xf32>, vector<30x128xf32> -> vector<30x128xf32>
      %297 = arith.addf %287, %296 : vector<30x128xf32>
      %c2_i32_241 = arith.constant 2 : i32
      %298 = arith.addi %236, %c2_i32_241 : i32
      %c32_i32_242 = arith.constant 32 : i32
      %299 = arith.muli %298, %c32_i32_242 : i32
      %c0_i32_243 = arith.constant 0 : i32
      %300 = arith.addi %299, %c0_i32_243 : i32
      %c0_244 = arith.constant 0 : index
      %301 = arith.index_cast %300 : i32 to index
      %c0_245 = arith.constant 0 : index
      %302 = vector.load %arg1[%c0_244, %301, %c0_245] : memref<1x1024x128xf32, #tpu.memory_space<vmem>>, vector<1x30x128xf32>
      %303 = vector.shape_cast %302 : vector<1x30x128xf32> to vector<30x128xf32>
      %c6_246 = arith.constant 6 : index
      %c0_247 = arith.constant 0 : index
      %c0_248 = arith.constant 0 : index
      %304 = vector.load %arg2[%c6_246, %c0_247, %c0_248] : memref<9x128x128xf32, #tpu.memory_space<vmem>>, vector<1x128x128xf32>
      %305 = vector.shape_cast %304 : vector<1x128x128xf32> to vector<128x128xf32>
      %cst_249 = arith.constant dense<0.000000e+00> : vector<30x128xf32>
      %306 = tpu.matmul %303, %305, %cst_249 {dimension_numbers = #tpu.dot_dimension_numbers<[1], [0], [0], [1], [0, 0, 1, 1], [], []>} : vector<30x128xf32>, vector<128x128xf32>, vector<30x128xf32> -> vector<30x128xf32>
      %307 = arith.addf %297, %306 : vector<30x128xf32>
      %c2_i32_250 = arith.constant 2 : i32
      %308 = arith.addi %236, %c2_i32_250 : i32
      %c32_i32_251 = arith.constant 32 : i32
      %309 = arith.muli %308, %c32_i32_251 : i32
      %c1_i32_252 = arith.constant 1 : i32
      %310 = arith.addi %309, %c1_i32_252 : i32
      %c0_253 = arith.constant 0 : index
      %311 = arith.index_cast %310 : i32 to index
      %c0_254 = arith.constant 0 : index
      %312 = vector.load %arg1[%c0_253, %311, %c0_254] : memref<1x1024x128xf32, #tpu.memory_space<vmem>>, vector<1x30x128xf32>
      %313 = vector.shape_cast %312 : vector<1x30x128xf32> to vector<30x128xf32>
      %c7 = arith.constant 7 : index
      %c0_255 = arith.constant 0 : index
      %c0_256 = arith.constant 0 : index
      %314 = vector.load %arg2[%c7, %c0_255, %c0_256] : memref<9x128x128xf32, #tpu.memory_space<vmem>>, vector<1x128x128xf32>
      %315 = vector.shape_cast %314 : vector<1x128x128xf32> to vector<128x128xf32>
      %cst_257 = arith.constant dense<0.000000e+00> : vector<30x128xf32>
      %316 = tpu.matmul %313, %315, %cst_257 {dimension_numbers = #tpu.dot_dimension_numbers<[1], [0], [0], [1], [0, 0, 1, 1], [], []>} : vector<30x128xf32>, vector<128x128xf32>, vector<30x128xf32> -> vector<30x128xf32>
      %317 = arith.addf %307, %316 : vector<30x128xf32>
      %c2_i32_258 = arith.constant 2 : i32
      %318 = arith.addi %236, %c2_i32_258 : i32
      %c32_i32_259 = arith.constant 32 : i32
      %319 = arith.muli %318, %c32_i32_259 : i32
      %c2_i32_260 = arith.constant 2 : i32
      %320 = arith.addi %319, %c2_i32_260 : i32
      %c0_261 = arith.constant 0 : index
      %321 = arith.index_cast %320 : i32 to index
      %c0_262 = arith.constant 0 : index
      %322 = vector.load %arg1[%c0_261, %321, %c0_262] : memref<1x1024x128xf32, #tpu.memory_space<vmem>>, vector<1x30x128xf32>
      %323 = vector.shape_cast %322 : vector<1x30x128xf32> to vector<30x128xf32>
      %c8_263 = arith.constant 8 : index
      %c0_264 = arith.constant 0 : index
      %c0_265 = arith.constant 0 : index
      %324 = vector.load %arg2[%c8_263, %c0_264, %c0_265] : memref<9x128x128xf32, #tpu.memory_space<vmem>>, vector<1x128x128xf32>
      %325 = vector.shape_cast %324 : vector<1x128x128xf32> to vector<128x128xf32>
      %cst_266 = arith.constant dense<0.000000e+00> : vector<30x128xf32>
      %326 = tpu.matmul %323, %325, %cst_266 {dimension_numbers = #tpu.dot_dimension_numbers<[1], [0], [0], [1], [0, 0, 1, 1], [], []>} : vector<30x128xf32>, vector<128x128xf32>, vector<30x128xf32> -> vector<30x128xf32>
      %327 = arith.addf %317, %326 : vector<30x128xf32>
      %328 = vector.broadcast %0 : vector<1x128xf32> to vector<30x128xf32>
      %329 = arith.addf %327, %328 : vector<30x128xf32>
      %cst_267 = arith.constant 0.000000e+00 : f32
      %330 = vector.broadcast %cst_267 : f32 to vector<30x128xf32>
      %331 = arith.maximumf %329, %330 : vector<30x128xf32>
      %c30_i32_268 = arith.constant 30 : i32
      %332 = arith.muli %236, %c30_i32_268 : i32
      %333 = arith.index_cast %332 : i32 to index
      %c0_269 = arith.constant 0 : index
      %334 = vector.load %arg17[%333, %c0_269] : memref<900x128xf32, #tpu.memory_space<vmem>>, vector<30x128xf32>
      tpu.vector_store %arg17[%333, %c0_269], %331 {strides = array<i32>} : memref<900x128xf32, #tpu.memory_space<vmem>>, vector<30x128xf32>,
    }
    %c30_i32_1 = arith.constant 30 : i32
    %c0_2 = arith.constant 0 : index
    %c0_3 = arith.constant 0 : index
    %2 = tpu.strided_load %arg17[%c0_2, %c0_3] {strides = array<i32: 2, 1>} : memref<900x128xf32, #tpu.memory_space<vmem>>, vector<15x128xf32>
    %c1 = arith.constant 1 : index
    %c0_4 = arith.constant 0 : index
    %3 = tpu.strided_load %arg17[%c1, %c0_4] {strides = array<i32: 2, 1>} : memref<900x128xf32, #tpu.memory_space<vmem>>, vector<15x128xf32>
    %c30 = arith.constant 30 : index
    %c0_5 = arith.constant 0 : index
    %4 = tpu.strided_load %arg17[%c30, %c0_5] {strides = array<i32: 2, 1>} : memref<900x128xf32, #tpu.memory_space<vmem>>, vector<15x128xf32>
    %c31 = arith.constant 31 : index
    %c0_6 = arith.constant 0 : index
    %5 = tpu.strided_load %arg17[%c31, %c0_6] {strides = array<i32: 2, 1>} : memref<900x128xf32, #tpu.memory_space<vmem>>, vector<15x128xf32>
    %6 = arith.maximumf %2, %3 : vector<15x128xf32>
    %7 = arith.maximumf %4, %5 : vector<15x128xf32>
    %8 = arith.maximumf %6, %7 : vector<15x128xf32>
    %c0_7 = arith.constant 0 : index
    %c0_8 = arith.constant 0 : index
    %9 = vector.load %arg18[%c0_7, %c0_8] : memref<225x128xf32, #tpu.memory_space<vmem>>, vector<15x128xf32>
    tpu.vector_store %arg18[%c0_7, %c0_8], %8 {strides = array<i32>} : memref<225x128xf32, #tpu.memory_space<vmem>>, vector<15x128xf32>,
    %c60 = arith.constant 60 : index
    %c0_9 = arith.constant 0 : index
    %10 = tpu.strided_load %arg17[%c60, %c0_9] {strides = array<i32: 2, 1>} : memref<900x128xf32, #tpu.memory_space<vmem>>, vector<15x128xf32>
    %c61 = arith.constant 61 : index
    %c0_10 = arith.constant 0 : index
    %11 = tpu.strided_load %arg17[%c61, %c0_10] {strides = array<i32: 2, 1>} : memref<900x128xf32, #tpu.memory_space<vmem>>, vector<15x128xf32>
    %c90 = arith.constant 90 : index
    %c0_11 = arith.constant 0 : index
    %12 = tpu.strided_load %arg17[%c90, %c0_11] {strides = array<i32: 2, 1>} : memref<900x128xf32, #tpu.memory_space<vmem>>, vector<15x128xf32>
    %c91 = arith.constant 91 : index
    %c0_12 = arith.constant 0 : index
    %13 = tpu.strided_load %arg17[%c91, %c0_12] {strides = array<i32: 2, 1>} : memref<900x128xf32, #tpu.memory_space<vmem>>, vector<15x128xf32>
    %14 = arith.maximumf %10, %11 : vector<15x128xf32>
    %15 = arith.maximumf %12, %13 : vector<15x128xf32>
    %16 = arith.maximumf %14, %15 : vector<15x128xf32>
    %c15 = arith.constant 15 : index
    %c0_13 = arith.constant 0 : index
    %17 = vector.load %arg18[%c15, %c0_13] : memref<225x128xf32, #tpu.memory_space<vmem>>, vector<15x128xf32>
    tpu.vector_store %arg18[%c15, %c0_13], %16 {strides = array<i32>} : memref<225x128xf32, #tpu.memory_space<vmem>>, vector<15x128xf32>,
    %c120 = arith.constant 120 : index
    %c0_14 = arith.constant 0 : index
    %18 = tpu.strided_load %arg17[%c120, %c0_14] {strides = array<i32: 2, 1>} : memref<900x128xf32, #tpu.memory_space<vmem>>, vector<15x128xf32>
    %c121 = arith.constant 121 : index
    %c0_15 = arith.constant 0 : index
    %19 = tpu.strided_load %arg17[%c121, %c0_15] {strides = array<i32: 2, 1>} : memref<900x128xf32, #tpu.memory_space<vmem>>, vector<15x128xf32>
    %c150 = arith.constant 150 : index
    %c0_16 = arith.constant 0 : index
    %20 = tpu.strided_load %arg17[%c150, %c0_16] {strides = array<i32: 2, 1>} : memref<900x128xf32, #tpu.memory_space<vmem>>, vector<15x128xf32>
    %c151 = arith.constant 151 : index
    %c0_17 = arith.constant 0 : index
    %21 = tpu.strided_load %arg17[%c151, %c0_17] {strides = array<i32: 2, 1>} : memref<900x128xf32, #tpu.memory_space<vmem>>, vector<15x128xf32>
    %22 = arith.maximumf %18, %19 : vector<15x128xf32>
    %23 = arith.maximumf %20, %21 : vector<15x128xf32>
    %24 = arith.maximumf %22, %23 : vector<15x128xf32>
    %c30_18 = arith.constant 30 : index
    %c0_19 = arith.constant 0 : index
    %25 = vector.load %arg18[%c30_18, %c0_19] : memref<225x128xf32, #tpu.memory_space<vmem>>, vector<15x128xf32>
    tpu.vector_store %arg18[%c30_18, %c0_19], %24 {strides = array<i32>} : memref<225x128xf32, #tpu.memory_space<vmem>>, vector<15x128xf32>,
    %c180 = arith.constant 180 : index
    %c0_20 = arith.constant 0 : index
    %26 = tpu.strided_load %arg17[%c180, %c0_20] {strides = array<i32: 2, 1>} : memref<900x128xf32, #tpu.memory_space<vmem>>, vector<15x128xf32>
    %c181 = arith.constant 181 : index
    %c0_21 = arith.constant 0 : index
    %27 = tpu.strided_load %arg17[%c181, %c0_21] {strides = array<i32: 2, 1>} : memref<900x128xf32, #tpu.memory_space<vmem>>, vector<15x128xf32>
    %c210 = arith.constant 210 : index
    %c0_22 = arith.constant 0 : index
    %28 = tpu.strided_load %arg17[%c210, %c0_22] {strides = array<i32: 2, 1>} : memref<900x128xf32, #tpu.memory_space<vmem>>, vector<15x128xf32>
    %c211 = arith.constant 211 : index
    %c0_23 = arith.constant 0 : index
    %29 = tpu.strided_load %arg17[%c211, %c0_23] {strides = array<i32: 2, 1>} : memref<900x128xf32, #tpu.memory_space<vmem>>, vector<15x128xf32>
    %30 = arith.maximumf %26, %27 : vector<15x128xf32>
    %31 = arith.maximumf %28, %29 : vector<15x128xf32>
    %32 = arith.maximumf %30, %31 : vector<15x128xf32>
    %c45 = arith.constant 45 : index
    %c0_24 = arith.constant 0 : index
    %33 = vector.load %arg18[%c45, %c0_24] : memref<225x128xf32, #tpu.memory_space<vmem>>, vector<15x128xf32>
    tpu.vector_store %arg18[%c45, %c0_24], %32 {strides = array<i32>} : memref<225x128xf32, #tpu.memory_space<vmem>>, vector<15x128xf32>,
    %c240 = arith.constant 240 : index
    %c0_25 = arith.constant 0 : index
    %34 = tpu.strided_load %arg17[%c240, %c0_25] {strides = array<i32: 2, 1>} : memref<900x128xf32, #tpu.memory_space<vmem>>, vector<15x128xf32>
    %c241 = arith.constant 241 : index
    %c0_26 = arith.constant 0 : index
    %35 = tpu.strided_load %arg17[%c241, %c0_26] {strides = array<i32: 2, 1>} : memref<900x128xf32, #tpu.memory_space<vmem>>, vector<15x128xf32>
    %c270 = arith.constant 270 : index
    %c0_27 = arith.constant 0 : index
    %36 = tpu.strided_load %arg17[%c270, %c0_27] {strides = array<i32: 2, 1>} : memref<900x128xf32, #tpu.memory_space<vmem>>, vector<15x128xf32>
    %c271 = arith.constant 271 : index
    %c0_28 = arith.constant 0 : index
    %37 = tpu.strided_load %arg17[%c271, %c0_28] {strides = array<i32: 2, 1>} : memref<900x128xf32, #tpu.memory_space<vmem>>, vector<15x128xf32>
    %38 = arith.maximumf %34, %35 : vector<15x128xf32>
    %39 = arith.maximumf %36, %37 : vector<15x128xf32>
    %40 = arith.maximumf %38, %39 : vector<15x128xf32>
    %c60_29 = arith.constant 60 : index
    %c0_30 = arith.constant 0 : index
    %41 = vector.load %arg18[%c60_29, %c0_30] : memref<225x128xf32, #tpu.memory_space<vmem>>, vector<15x128xf32>
    tpu.vector_store %arg18[%c60_29, %c0_30], %40 {strides = array<i32>} : memref<225x128xf32, #tpu.memory_space<vmem>>, vector<15x128xf32>,
    %c300 = arith.constant 300 : index
    %c0_31 = arith.constant 0 : index
    %42 = tpu.strided_load %arg17[%c300, %c0_31] {strides = array<i32: 2, 1>} : memref<900x128xf32, #tpu.memory_space<vmem>>, vector<15x128xf32>
    %c301 = arith.constant 301 : index
    %c0_32 = arith.constant 0 : index
    %43 = tpu.strided_load %arg17[%c301, %c0_32] {strides = array<i32: 2, 1>} : memref<900x128xf32, #tpu.memory_space<vmem>>, vector<15x128xf32>
    %c330 = arith.constant 330 : index
    %c0_33 = arith.constant 0 : index
    %44 = tpu.strided_load %arg17[%c330, %c0_33] {strides = array<i32: 2, 1>} : memref<900x128xf32, #tpu.memory_space<vmem>>, vector<15x128xf32>
    %c331 = arith.constant 331 : index
    %c0_34 = arith.constant 0 : index
    %45 = tpu.strided_load %arg17[%c331, %c0_34] {strides = array<i32: 2, 1>} : memref<900x128xf32, #tpu.memory_space<vmem>>, vector<15x128xf32>
    %46 = arith.maximumf %42, %43 : vector<15x128xf32>
    %47 = arith.maximumf %44, %45 : vector<15x128xf32>
    %48 = arith.maximumf %46, %47 : vector<15x128xf32>
    %c75 = arith.constant 75 : index
    %c0_35 = arith.constant 0 : index
    %49 = vector.load %arg18[%c75, %c0_35] : memref<225x128xf32, #tpu.memory_space<vmem>>, vector<15x128xf32>
    tpu.vector_store %arg18[%c75, %c0_35], %48 {strides = array<i32>} : memref<225x128xf32, #tpu.memory_space<vmem>>, vector<15x128xf32>,
    %c360 = arith.constant 360 : index
    %c0_36 = arith.constant 0 : index
    %50 = tpu.strided_load %arg17[%c360, %c0_36] {strides = array<i32: 2, 1>} : memref<900x128xf32, #tpu.memory_space<vmem>>, vector<15x128xf32>
    %c361 = arith.constant 361 : index
    %c0_37 = arith.constant 0 : index
    %51 = tpu.strided_load %arg17[%c361, %c0_37] {strides = array<i32: 2, 1>} : memref<900x128xf32, #tpu.memory_space<vmem>>, vector<15x128xf32>
    %c390 = arith.constant 390 : index
    %c0_38 = arith.constant 0 : index
    %52 = tpu.strided_load %arg17[%c390, %c0_38] {strides = array<i32: 2, 1>} : memref<900x128xf32, #tpu.memory_space<vmem>>, vector<15x128xf32>
    %c391 = arith.constant 391 : index
    %c0_39 = arith.constant 0 : index
    %53 = tpu.strided_load %arg17[%c391, %c0_39] {strides = array<i32: 2, 1>} : memref<900x128xf32, #tpu.memory_space<vmem>>, vector<15x128xf32>
    %54 = arith.maximumf %50, %51 : vector<15x128xf32>
    %55 = arith.maximumf %52, %53 : vector<15x128xf32>
    %56 = arith.maximumf %54, %55 : vector<15x128xf32>
    %c90_40 = arith.constant 90 : index
    %c0_41 = arith.constant 0 : index
    %57 = vector.load %arg18[%c90_40, %c0_41] : memref<225x128xf32, #tpu.memory_space<vmem>>, vector<15x128xf32>
    tpu.vector_store %arg18[%c90_40, %c0_41], %56 {strides = array<i32>} : memref<225x128xf32, #tpu.memory_space<vmem>>, vector<15x128xf32>,
    %c420 = arith.constant 420 : index
    %c0_42 = arith.constant 0 : index
    %58 = tpu.strided_load %arg17[%c420, %c0_42] {strides = array<i32: 2, 1>} : memref<900x128xf32, #tpu.memory_space<vmem>>, vector<15x128xf32>
    %c421 = arith.constant 421 : index
    %c0_43 = arith.constant 0 : index
    %59 = tpu.strided_load %arg17[%c421, %c0_43] {strides = array<i32: 2, 1>} : memref<900x128xf32, #tpu.memory_space<vmem>>, vector<15x128xf32>
    %c450 = arith.constant 450 : index
    %c0_44 = arith.constant 0 : index
    %60 = tpu.strided_load %arg17[%c450, %c0_44] {strides = array<i32: 2, 1>} : memref<900x128xf32, #tpu.memory_space<vmem>>, vector<15x128xf32>
    %c451 = arith.constant 451 : index
    %c0_45 = arith.constant 0 : index
    %61 = tpu.strided_load %arg17[%c451, %c0_45] {strides = array<i32: 2, 1>} : memref<900x128xf32, #tpu.memory_space<vmem>>, vector<15x128xf32>
    %62 = arith.maximumf %58, %59 : vector<15x128xf32>
    %63 = arith.maximumf %60, %61 : vector<15x128xf32>
    %64 = arith.maximumf %62, %63 : vector<15x128xf32>
    %c105 = arith.constant 105 : index
    %c0_46 = arith.constant 0 : index
    %65 = vector.load %arg18[%c105, %c0_46] : memref<225x128xf32, #tpu.memory_space<vmem>>, vector<15x128xf32>
    tpu.vector_store %arg18[%c105, %c0_46], %64 {strides = array<i32>} : memref<225x128xf32, #tpu.memory_space<vmem>>, vector<15x128xf32>,
    %c480 = arith.constant 480 : index
    %c0_47 = arith.constant 0 : index
    %66 = tpu.strided_load %arg17[%c480, %c0_47] {strides = array<i32: 2, 1>} : memref<900x128xf32, #tpu.memory_space<vmem>>, vector<15x128xf32>
    %c481 = arith.constant 481 : index
    %c0_48 = arith.constant 0 : index
    %67 = tpu.strided_load %arg17[%c481, %c0_48] {strides = array<i32: 2, 1>} : memref<900x128xf32, #tpu.memory_space<vmem>>, vector<15x128xf32>
    %c510 = arith.constant 510 : index
    %c0_49 = arith.constant 0 : index
    %68 = tpu.strided_load %arg17[%c510, %c0_49] {strides = array<i32: 2, 1>} : memref<900x128xf32, #tpu.memory_space<vmem>>, vector<15x128xf32>
    %c511 = arith.constant 511 : index
    %c0_50 = arith.constant 0 : index
    %69 = tpu.strided_load %arg17[%c511, %c0_50] {strides = array<i32: 2, 1>} : memref<900x128xf32, #tpu.memory_space<vmem>>, vector<15x128xf32>
    %70 = arith.maximumf %66, %67 : vector<15x128xf32>
    %71 = arith.maximumf %68, %69 : vector<15x128xf32>
    %72 = arith.maximumf %70, %71 : vector<15x128xf32>
    %c120_51 = arith.constant 120 : index
    %c0_52 = arith.constant 0 : index
    %73 = vector.load %arg18[%c120_51, %c0_52] : memref<225x128xf32, #tpu.memory_space<vmem>>, vector<15x128xf32>
    tpu.vector_store %arg18[%c120_51, %c0_52], %72 {strides = array<i32>} : memref<225x128xf32, #tpu.memory_space<vmem>>, vector<15x128xf32>,
    %c540 = arith.constant 540 : index
    %c0_53 = arith.constant 0 : index
    %74 = tpu.strided_load %arg17[%c540, %c0_53] {strides = array<i32: 2, 1>} : memref<900x128xf32, #tpu.memory_space<vmem>>, vector<15x128xf32>
    %c541 = arith.constant 541 : index
    %c0_54 = arith.constant 0 : index
    %75 = tpu.strided_load %arg17[%c541, %c0_54] {strides = array<i32: 2, 1>} : memref<900x128xf32, #tpu.memory_space<vmem>>, vector<15x128xf32>
    %c570 = arith.constant 570 : index
    %c0_55 = arith.constant 0 : index
    %76 = tpu.strided_load %arg17[%c570, %c0_55] {strides = array<i32: 2, 1>} : memref<900x128xf32, #tpu.memory_space<vmem>>, vector<15x128xf32>
    %c571 = arith.constant 571 : index
    %c0_56 = arith.constant 0 : index
    %77 = tpu.strided_load %arg17[%c571, %c0_56] {strides = array<i32: 2, 1>} : memref<900x128xf32, #tpu.memory_space<vmem>>, vector<15x128xf32>
    %78 = arith.maximumf %74, %75 : vector<15x128xf32>
    %79 = arith.maximumf %76, %77 : vector<15x128xf32>
    %80 = arith.maximumf %78, %79 : vector<15x128xf32>
    %c135 = arith.constant 135 : index
    %c0_57 = arith.constant 0 : index
    %81 = vector.load %arg18[%c135, %c0_57] : memref<225x128xf32, #tpu.memory_space<vmem>>, vector<15x128xf32>
    tpu.vector_store %arg18[%c135, %c0_57], %80 {strides = array<i32>} : memref<225x128xf32, #tpu.memory_space<vmem>>, vector<15x128xf32>,
    %c600 = arith.constant 600 : index
    %c0_58 = arith.constant 0 : index
    %82 = tpu.strided_load %arg17[%c600, %c0_58] {strides = array<i32: 2, 1>} : memref<900x128xf32, #tpu.memory_space<vmem>>, vector<15x128xf32>
    %c601 = arith.constant 601 : index
    %c0_59 = arith.constant 0 : index
    %83 = tpu.strided_load %arg17[%c601, %c0_59] {strides = array<i32: 2, 1>} : memref<900x128xf32, #tpu.memory_space<vmem>>, vector<15x128xf32>
    %c630 = arith.constant 630 : index
    %c0_60 = arith.constant 0 : index
    %84 = tpu.strided_load %arg17[%c630, %c0_60] {strides = array<i32: 2, 1>} : memref<900x128xf32, #tpu.memory_space<vmem>>, vector<15x128xf32>
    %c631 = arith.constant 631 : index
    %c0_61 = arith.constant 0 : index
    %85 = tpu.strided_load %arg17[%c631, %c0_61] {strides = array<i32: 2, 1>} : memref<900x128xf32, #tpu.memory_space<vmem>>, vector<15x128xf32>
    %86 = arith.maximumf %82, %83 : vector<15x128xf32>
    %87 = arith.maximumf %84, %85 : vector<15x128xf32>
    %88 = arith.maximumf %86, %87 : vector<15x128xf32>
    %c150_62 = arith.constant 150 : index
    %c0_63 = arith.constant 0 : index
    %89 = vector.load %arg18[%c150_62, %c0_63] : memref<225x128xf32, #tpu.memory_space<vmem>>, vector<15x128xf32>
    tpu.vector_store %arg18[%c150_62, %c0_63], %88 {strides = array<i32>} : memref<225x128xf32, #tpu.memory_space<vmem>>, vector<15x128xf32>,
    %c660 = arith.constant 660 : index
    %c0_64 = arith.constant 0 : index
    %90 = tpu.strided_load %arg17[%c660, %c0_64] {strides = array<i32: 2, 1>} : memref<900x128xf32, #tpu.memory_space<vmem>>, vector<15x128xf32>
    %c661 = arith.constant 661 : index
    %c0_65 = arith.constant 0 : index
    %91 = tpu.strided_load %arg17[%c661, %c0_65] {strides = array<i32: 2, 1>} : memref<900x128xf32, #tpu.memory_space<vmem>>, vector<15x128xf32>
    %c690 = arith.constant 690 : index
    %c0_66 = arith.constant 0 : index
    %92 = tpu.strided_load %arg17[%c690, %c0_66] {strides = array<i32: 2, 1>} : memref<900x128xf32, #tpu.memory_space<vmem>>, vector<15x128xf32>
    %c691 = arith.constant 691 : index
    %c0_67 = arith.constant 0 : index
    %93 = tpu.strided_load %arg17[%c691, %c0_67] {strides = array<i32: 2, 1>} : memref<900x128xf32, #tpu.memory_space<vmem>>, vector<15x128xf32>
    %94 = arith.maximumf %90, %91 : vector<15x128xf32>
    %95 = arith.maximumf %92, %93 : vector<15x128xf32>
    %96 = arith.maximumf %94, %95 : vector<15x128xf32>
    %c165 = arith.constant 165 : index
    %c0_68 = arith.constant 0 : index
    %97 = vector.load %arg18[%c165, %c0_68] : memref<225x128xf32, #tpu.memory_space<vmem>>, vector<15x128xf32>
    tpu.vector_store %arg18[%c165, %c0_68], %96 {strides = array<i32>} : memref<225x128xf32, #tpu.memory_space<vmem>>, vector<15x128xf32>,
    %c720 = arith.constant 720 : index
    %c0_69 = arith.constant 0 : index
    %98 = tpu.strided_load %arg17[%c720, %c0_69] {strides = array<i32: 2, 1>} : memref<900x128xf32, #tpu.memory_space<vmem>>, vector<15x128xf32>
    %c721 = arith.constant 721 : index
    %c0_70 = arith.constant 0 : index
    %99 = tpu.strided_load %arg17[%c721, %c0_70] {strides = array<i32: 2, 1>} : memref<900x128xf32, #tpu.memory_space<vmem>>, vector<15x128xf32>
    %c750 = arith.constant 750 : index
    %c0_71 = arith.constant 0 : index
    %100 = tpu.strided_load %arg17[%c750, %c0_71] {strides = array<i32: 2, 1>} : memref<900x128xf32, #tpu.memory_space<vmem>>, vector<15x128xf32>
    %c751 = arith.constant 751 : index
    %c0_72 = arith.constant 0 : index
    %101 = tpu.strided_load %arg17[%c751, %c0_72] {strides = array<i32: 2, 1>} : memref<900x128xf32, #tpu.memory_space<vmem>>, vector<15x128xf32>
    %102 = arith.maximumf %98, %99 : vector<15x128xf32>
    %103 = arith.maximumf %100, %101 : vector<15x128xf32>
    %104 = arith.maximumf %102, %103 : vector<15x128xf32>
    %c180_73 = arith.constant 180 : index
    %c0_74 = arith.constant 0 : index
    %105 = vector.load %arg18[%c180_73, %c0_74] : memref<225x128xf32, #tpu.memory_space<vmem>>, vector<15x128xf32>
    tpu.vector_store %arg18[%c180_73, %c0_74], %104 {strides = array<i32>} : memref<225x128xf32, #tpu.memory_space<vmem>>, vector<15x128xf32>,
    %c780 = arith.constant 780 : index
    %c0_75 = arith.constant 0 : index
    %106 = tpu.strided_load %arg17[%c780, %c0_75] {strides = array<i32: 2, 1>} : memref<900x128xf32, #tpu.memory_space<vmem>>, vector<15x128xf32>
    %c781 = arith.constant 781 : index
    %c0_76 = arith.constant 0 : index
    %107 = tpu.strided_load %arg17[%c781, %c0_76] {strides = array<i32: 2, 1>} : memref<900x128xf32, #tpu.memory_space<vmem>>, vector<15x128xf32>
    %c810 = arith.constant 810 : index
    %c0_77 = arith.constant 0 : index
    %108 = tpu.strided_load %arg17[%c810, %c0_77] {strides = array<i32: 2, 1>} : memref<900x128xf32, #tpu.memory_space<vmem>>, vector<15x128xf32>
    %c811 = arith.constant 811 : index
    %c0_78 = arith.constant 0 : index
    %109 = tpu.strided_load %arg17[%c811, %c0_78] {strides = array<i32: 2, 1>} : memref<900x128xf32, #tpu.memory_space<vmem>>, vector<15x128xf32>
    %110 = arith.maximumf %106, %107 : vector<15x128xf32>
    %111 = arith.maximumf %108, %109 : vector<15x128xf32>
    %112 = arith.maximumf %110, %111 : vector<15x128xf32>
    %c195 = arith.constant 195 : index
    %c0_79 = arith.constant 0 : index
    %113 = vector.load %arg18[%c195, %c0_79] : memref<225x128xf32, #tpu.memory_space<vmem>>, vector<15x128xf32>
    tpu.vector_store %arg18[%c195, %c0_79], %112 {strides = array<i32>} : memref<225x128xf32, #tpu.memory_space<vmem>>, vector<15x128xf32>,
    %c840 = arith.constant 840 : index
    %c0_80 = arith.constant 0 : index
    %114 = tpu.strided_load %arg17[%c840, %c0_80] {strides = array<i32: 2, 1>} : memref<900x128xf32, #tpu.memory_space<vmem>>, vector<15x128xf32>
    %c841 = arith.constant 841 : index
    %c0_81 = arith.constant 0 : index
    %115 = tpu.strided_load %arg17[%c841, %c0_81] {strides = array<i32: 2, 1>} : memref<900x128xf32, #tpu.memory_space<vmem>>, vector<15x128xf32>
    %c870 = arith.constant 870 : index
    %c0_82 = arith.constant 0 : index
    %116 = tpu.strided_load %arg17[%c870, %c0_82] {strides = array<i32: 2, 1>} : memref<900x128xf32, #tpu.memory_space<vmem>>, vector<15x128xf32>
    %c871 = arith.constant 871 : index
    %c0_83 = arith.constant 0 : index
    %117 = tpu.strided_load %arg17[%c871, %c0_83] {strides = array<i32: 2, 1>} : memref<900x128xf32, #tpu.memory_space<vmem>>, vector<15x128xf32>
    %118 = arith.maximumf %114, %115 : vector<15x128xf32>
    %119 = arith.maximumf %116, %117 : vector<15x128xf32>
    %120 = arith.maximumf %118, %119 : vector<15x128xf32>
    %c210_84 = arith.constant 210 : index
    %c0_85 = arith.constant 0 : index
    %121 = vector.load %arg18[%c210_84, %c0_85] : memref<225x128xf32, #tpu.memory_space<vmem>>, vector<15x128xf32>
    tpu.vector_store %arg18[%c210_84, %c0_85], %120 {strides = array<i32>} : memref<225x128xf32, #tpu.memory_space<vmem>>, vector<15x128xf32>,
    %c0_86 = arith.constant 0 : index
    %c0_87 = arith.constant 0 : index
    %122 = vector.load %arg5[%c0_86, %c0_87] : memref<1x128xf32, #tpu.memory_space<vmem>>, vector<1x128xf32>
    %c0_i32_88 = arith.constant 0 : i32
    %c13_i32 = arith.constant 13 : i32
    %123 = arith.addi %c0_i32_88, %c13_i32 : i32
    %c1_i32_89 = arith.constant 1 : i32
    scf.for %arg23 = %c0_i32_88 to %123 step %c1_i32_89  : i32 {
      %c1_i32_186 = arith.constant 1 : i32
      %235 = arith.muli %arg23, %c1_i32_186 : i32
      %c0_i32_187 = arith.constant 0 : i32
      %236 = arith.addi %c0_i32_187, %235 : i32
      %cst_188 = arith.constant 0.000000e+00 : f32
      %237 = vector.broadcast %cst_188 : f32 to vector<13x128xf32>
      %c0_i32_189 = arith.constant 0 : i32
      %238 = arith.addi %236, %c0_i32_189 : i32
      %c15_i32 = arith.constant 15 : i32
      %239 = arith.muli %238, %c15_i32 : i32
      %c0_i32_190 = arith.constant 0 : i32
      %240 = arith.addi %239, %c0_i32_190 : i32
      %241 = arith.index_cast %240 : i32 to index
      %c0_191 = arith.constant 0 : index
      %242 = vector.load %arg18[%241, %c0_191] : memref<225x128xf32, #tpu.memory_space<vmem>>, vector<13x128xf32>
      %c0_192 = arith.constant 0 : index
      %c0_193 = arith.constant 0 : index
      %c0_194 = arith.constant 0 : index
      %243 = vector.load %arg4[%c0_192, %c0_193, %c0_194] : memref<9x128x128xf32, #tpu.memory_space<vmem>>, vector<1x128x128xf32>
      %244 = vector.shape_cast %243 : vector<1x128x128xf32> to vector<128x128xf32>
      %cst_195 = arith.constant dense<0.000000e+00> : vector<13x128xf32>
      %245 = tpu.matmul %242, %244, %cst_195 {dimension_numbers = #tpu.dot_dimension_numbers<[1], [0], [0], [1], [0, 0, 1, 1], [], []>} : vector<13x128xf32>, vector<128x128xf32>, vector<13x128xf32> -> vector<13x128xf32>
      %246 = arith.addf %237, %245 : vector<13x128xf32>
      %c0_i32_196 = arith.constant 0 : i32
      %247 = arith.addi %236, %c0_i32_196 : i32
      %c15_i32_197 = arith.constant 15 : i32
      %248 = arith.muli %247, %c15_i32_197 : i32
      %c1_i32_198 = arith.constant 1 : i32
      %249 = arith.addi %248, %c1_i32_198 : i32
      %250 = arith.index_cast %249 : i32 to index
      %c0_199 = arith.constant 0 : index
      %251 = vector.load %arg18[%250, %c0_199] : memref<225x128xf32, #tpu.memory_space<vmem>>, vector<13x128xf32>
      %c1_200 = arith.constant 1 : index
      %c0_201 = arith.constant 0 : index
      %c0_202 = arith.constant 0 : index
      %252 = vector.load %arg4[%c1_200, %c0_201, %c0_202] : memref<9x128x128xf32, #tpu.memory_space<vmem>>, vector<1x128x128xf32>
      %253 = vector.shape_cast %252 : vector<1x128x128xf32> to vector<128x128xf32>
      %cst_203 = arith.constant dense<0.000000e+00> : vector<13x128xf32>
      %254 = tpu.matmul %251, %253, %cst_203 {dimension_numbers = #tpu.dot_dimension_numbers<[1], [0], [0], [1], [0, 0, 1, 1], [], []>} : vector<13x128xf32>, vector<128x128xf32>, vector<13x128xf32> -> vector<13x128xf32>
      %255 = arith.addf %246, %254 : vector<13x128xf32>
      %c0_i32_204 = arith.constant 0 : i32
      %256 = arith.addi %236, %c0_i32_204 : i32
      %c15_i32_205 = arith.constant 15 : i32
      %257 = arith.muli %256, %c15_i32_205 : i32
      %c2_i32 = arith.constant 2 : i32
      %258 = arith.addi %257, %c2_i32 : i32
      %259 = arith.index_cast %258 : i32 to index
      %c0_206 = arith.constant 0 : index
      %260 = vector.load %arg18[%259, %c0_206] : memref<225x128xf32, #tpu.memory_space<vmem>>, vector<13x128xf32>
      %c2_207 = arith.constant 2 : index
      %c0_208 = arith.constant 0 : index
      %c0_209 = arith.constant 0 : index
      %261 = vector.load %arg4[%c2_207, %c0_208, %c0_209] : memref<9x128x128xf32, #tpu.memory_space<vmem>>, vector<1x128x128xf32>
      %262 = vector.shape_cast %261 : vector<1x128x128xf32> to vector<128x128xf32>
      %cst_210 = arith.constant dense<0.000000e+00> : vector<13x128xf32>
      %263 = tpu.matmul %260, %262, %cst_210 {dimension_numbers = #tpu.dot_dimension_numbers<[1], [0], [0], [1], [0, 0, 1, 1], [], []>} : vector<13x128xf32>, vector<128x128xf32>, vector<13x128xf32> -> vector<13x128xf32>
      %264 = arith.addf %255, %263 : vector<13x128xf32>
      %c1_i32_211 = arith.constant 1 : i32
      %265 = arith.addi %236, %c1_i32_211 : i32
      %c15_i32_212 = arith.constant 15 : i32
      %266 = arith.muli %265, %c15_i32_212 : i32
      %c0_i32_213 = arith.constant 0 : i32
      %267 = arith.addi %266, %c0_i32_213 : i32
      %268 = arith.index_cast %267 : i32 to index
      %c0_214 = arith.constant 0 : index
      %269 = vector.load %arg18[%268, %c0_214] : memref<225x128xf32, #tpu.memory_space<vmem>>, vector<13x128xf32>
      %c3_215 = arith.constant 3 : index
      %c0_216 = arith.constant 0 : index
      %c0_217 = arith.constant 0 : index
      %270 = vector.load %arg4[%c3_215, %c0_216, %c0_217] : memref<9x128x128xf32, #tpu.memory_space<vmem>>, vector<1x128x128xf32>
      %271 = vector.shape_cast %270 : vector<1x128x128xf32> to vector<128x128xf32>
      %cst_218 = arith.constant dense<0.000000e+00> : vector<13x128xf32>
      %272 = tpu.matmul %269, %271, %cst_218 {dimension_numbers = #tpu.dot_dimension_numbers<[1], [0], [0], [1], [0, 0, 1, 1], [], []>} : vector<13x128xf32>, vector<128x128xf32>, vector<13x128xf32> -> vector<13x128xf32>
      %273 = arith.addf %264, %272 : vector<13x128xf32>
      %c1_i32_219 = arith.constant 1 : i32
      %274 = arith.addi %236, %c1_i32_219 : i32
      %c15_i32_220 = arith.constant 15 : i32
      %275 = arith.muli %274, %c15_i32_220 : i32
      %c1_i32_221 = arith.constant 1 : i32
      %276 = arith.addi %275, %c1_i32_221 : i32
      %277 = arith.index_cast %276 : i32 to index
      %c0_222 = arith.constant 0 : index
      %278 = vector.load %arg18[%277, %c0_222] : memref<225x128xf32, #tpu.memory_space<vmem>>, vector<13x128xf32>
      %c4_223 = arith.constant 4 : index
      %c0_224 = arith.constant 0 : index
      %c0_225 = arith.constant 0 : index
      %279 = vector.load %arg4[%c4_223, %c0_224, %c0_225] : memref<9x128x128xf32, #tpu.memory_space<vmem>>, vector<1x128x128xf32>
      %280 = vector.shape_cast %279 : vector<1x128x128xf32> to vector<128x128xf32>
      %cst_226 = arith.constant dense<0.000000e+00> : vector<13x128xf32>
      %281 = tpu.matmul %278, %280, %cst_226 {dimension_numbers = #tpu.dot_dimension_numbers<[1], [0], [0], [1], [0, 0, 1, 1], [], []>} : vector<13x128xf32>, vector<128x128xf32>, vector<13x128xf32> -> vector<13x128xf32>
      %282 = arith.addf %273, %281 : vector<13x128xf32>
      %c1_i32_227 = arith.constant 1 : i32
      %283 = arith.addi %236, %c1_i32_227 : i32
      %c15_i32_228 = arith.constant 15 : i32
      %284 = arith.muli %283, %c15_i32_228 : i32
      %c2_i32_229 = arith.constant 2 : i32
      %285 = arith.addi %284, %c2_i32_229 : i32
      %286 = arith.index_cast %285 : i32 to index
      %c0_230 = arith.constant 0 : index
      %287 = vector.load %arg18[%286, %c0_230] : memref<225x128xf32, #tpu.memory_space<vmem>>, vector<13x128xf32>
      %c5_231 = arith.constant 5 : index
      %c0_232 = arith.constant 0 : index
      %c0_233 = arith.constant 0 : index
      %288 = vector.load %arg4[%c5_231, %c0_232, %c0_233] : memref<9x128x128xf32, #tpu.memory_space<vmem>>, vector<1x128x128xf32>
      %289 = vector.shape_cast %288 : vector<1x128x128xf32> to vector<128x128xf32>
      %cst_234 = arith.constant dense<0.000000e+00> : vector<13x128xf32>
      %290 = tpu.matmul %287, %289, %cst_234 {dimension_numbers = #tpu.dot_dimension_numbers<[1], [0], [0], [1], [0, 0, 1, 1], [], []>} : vector<13x128xf32>, vector<128x128xf32>, vector<13x128xf32> -> vector<13x128xf32>
      %291 = arith.addf %282, %290 : vector<13x128xf32>
      %c2_i32_235 = arith.constant 2 : i32
      %292 = arith.addi %236, %c2_i32_235 : i32
      %c15_i32_236 = arith.constant 15 : i32
      %293 = arith.muli %292, %c15_i32_236 : i32
      %c0_i32_237 = arith.constant 0 : i32
      %294 = arith.addi %293, %c0_i32_237 : i32
      %295 = arith.index_cast %294 : i32 to index
      %c0_238 = arith.constant 0 : index
      %296 = vector.load %arg18[%295, %c0_238] : memref<225x128xf32, #tpu.memory_space<vmem>>, vector<13x128xf32>
      %c6_239 = arith.constant 6 : index
      %c0_240 = arith.constant 0 : index
      %c0_241 = arith.constant 0 : index
      %297 = vector.load %arg4[%c6_239, %c0_240, %c0_241] : memref<9x128x128xf32, #tpu.memory_space<vmem>>, vector<1x128x128xf32>
      %298 = vector.shape_cast %297 : vector<1x128x128xf32> to vector<128x128xf32>
      %cst_242 = arith.constant dense<0.000000e+00> : vector<13x128xf32>
      %299 = tpu.matmul %296, %298, %cst_242 {dimension_numbers = #tpu.dot_dimension_numbers<[1], [0], [0], [1], [0, 0, 1, 1], [], []>} : vector<13x128xf32>, vector<128x128xf32>, vector<13x128xf32> -> vector<13x128xf32>
      %300 = arith.addf %291, %299 : vector<13x128xf32>
      %c2_i32_243 = arith.constant 2 : i32
      %301 = arith.addi %236, %c2_i32_243 : i32
      %c15_i32_244 = arith.constant 15 : i32
      %302 = arith.muli %301, %c15_i32_244 : i32
      %c1_i32_245 = arith.constant 1 : i32
      %303 = arith.addi %302, %c1_i32_245 : i32
      %304 = arith.index_cast %303 : i32 to index
      %c0_246 = arith.constant 0 : index
      %305 = vector.load %arg18[%304, %c0_246] : memref<225x128xf32, #tpu.memory_space<vmem>>, vector<13x128xf32>
      %c7 = arith.constant 7 : index
      %c0_247 = arith.constant 0 : index
      %c0_248 = arith.constant 0 : index
      %306 = vector.load %arg4[%c7, %c0_247, %c0_248] : memref<9x128x128xf32, #tpu.memory_space<vmem>>, vector<1x128x128xf32>
      %307 = vector.shape_cast %306 : vector<1x128x128xf32> to vector<128x128xf32>
      %cst_249 = arith.constant dense<0.000000e+00> : vector<13x128xf32>
      %308 = tpu.matmul %305, %307, %cst_249 {dimension_numbers = #tpu.dot_dimension_numbers<[1], [0], [0], [1], [0, 0, 1, 1], [], []>} : vector<13x128xf32>, vector<128x128xf32>, vector<13x128xf32> -> vector<13x128xf32>
      %309 = arith.addf %300, %308 : vector<13x128xf32>
      %c2_i32_250 = arith.constant 2 : i32
      %310 = arith.addi %236, %c2_i32_250 : i32
      %c15_i32_251 = arith.constant 15 : i32
      %311 = arith.muli %310, %c15_i32_251 : i32
      %c2_i32_252 = arith.constant 2 : i32
      %312 = arith.addi %311, %c2_i32_252 : i32
      %313 = arith.index_cast %312 : i32 to index
      %c0_253 = arith.constant 0 : index
      %314 = vector.load %arg18[%313, %c0_253] : memref<225x128xf32, #tpu.memory_space<vmem>>, vector<13x128xf32>
      %c8_254 = arith.constant 8 : index
      %c0_255 = arith.constant 0 : index
      %c0_256 = arith.constant 0 : index
      %315 = vector.load %arg4[%c8_254, %c0_255, %c0_256] : memref<9x128x128xf32, #tpu.memory_space<vmem>>, vector<1x128x128xf32>
      %316 = vector.shape_cast %315 : vector<1x128x128xf32> to vector<128x128xf32>
      %cst_257 = arith.constant dense<0.000000e+00> : vector<13x128xf32>
      %317 = tpu.matmul %314, %316, %cst_257 {dimension_numbers = #tpu.dot_dimension_numbers<[1], [0], [0], [1], [0, 0, 1, 1], [], []>} : vector<13x128xf32>, vector<128x128xf32>, vector<13x128xf32> -> vector<13x128xf32>
      %318 = arith.addf %309, %317 : vector<13x128xf32>
      %319 = vector.broadcast %122 : vector<1x128xf32> to vector<13x128xf32>
      %320 = arith.addf %318, %319 : vector<13x128xf32>
      %cst_258 = arith.constant 0.000000e+00 : f32
      %321 = vector.broadcast %cst_258 : f32 to vector<13x128xf32>
      %322 = arith.maximumf %320, %321 : vector<13x128xf32>
      %c13_i32_259 = arith.constant 13 : i32
      %323 = arith.muli %236, %c13_i32_259 : i32
      %324 = arith.index_cast %323 : i32 to index
      %c0_260 = arith.constant 0 : index
      %325 = vector.load %arg19[%324, %c0_260] : memref<169x128xf32, #tpu.memory_space<vmem>>, vector<13x128xf32>
      tpu.vector_store %arg19[%324, %c0_260], %322 {strides = array<i32>} : memref<169x128xf32, #tpu.memory_space<vmem>>, vector<13x128xf32>,
    }
    %c13_i32_90 = arith.constant 13 : i32
    %c0_91 = arith.constant 0 : index
    %c0_92 = arith.constant 0 : index
    %124 = tpu.strided_load %arg19[%c0_91, %c0_92] {strides = array<i32: 2, 1>} : memref<169x128xf32, #tpu.memory_space<vmem>>, vector<6x128xf32>
    %c1_93 = arith.constant 1 : index
    %c0_94 = arith.constant 0 : index
    %125 = tpu.strided_load %arg19[%c1_93, %c0_94] {strides = array<i32: 2, 1>} : memref<169x128xf32, #tpu.memory_space<vmem>>, vector<6x128xf32>
    %c13 = arith.constant 13 : index
    %c0_95 = arith.constant 0 : index
    %126 = tpu.strided_load %arg19[%c13, %c0_95] {strides = array<i32: 2, 1>} : memref<169x128xf32, #tpu.memory_space<vmem>>, vector<6x128xf32>
    %c14 = arith.constant 14 : index
    %c0_96 = arith.constant 0 : index
    %127 = tpu.strided_load %arg19[%c14, %c0_96] {strides = array<i32: 2, 1>} : memref<169x128xf32, #tpu.memory_space<vmem>>, vector<6x128xf32>
    %128 = arith.maximumf %124, %125 : vector<6x128xf32>
    %129 = arith.maximumf %126, %127 : vector<6x128xf32>
    %130 = arith.maximumf %128, %129 : vector<6x128xf32>
    %c0_97 = arith.constant 0 : index
    %c0_98 = arith.constant 0 : index
    %131 = vector.load %arg20[%c0_97, %c0_98] : memref<36x128xf32, #tpu.memory_space<vmem>>, vector<6x128xf32>
    tpu.vector_store %arg20[%c0_97, %c0_98], %130 {strides = array<i32>} : memref<36x128xf32, #tpu.memory_space<vmem>>, vector<6x128xf32>,
    %c26 = arith.constant 26 : index
    %c0_99 = arith.constant 0 : index
    %132 = tpu.strided_load %arg19[%c26, %c0_99] {strides = array<i32: 2, 1>} : memref<169x128xf32, #tpu.memory_space<vmem>>, vector<6x128xf32>
    %c27 = arith.constant 27 : index
    %c0_100 = arith.constant 0 : index
    %133 = tpu.strided_load %arg19[%c27, %c0_100] {strides = array<i32: 2, 1>} : memref<169x128xf32, #tpu.memory_space<vmem>>, vector<6x128xf32>
    %c39 = arith.constant 39 : index
    %c0_101 = arith.constant 0 : index
    %134 = tpu.strided_load %arg19[%c39, %c0_101] {strides = array<i32: 2, 1>} : memref<169x128xf32, #tpu.memory_space<vmem>>, vector<6x128xf32>
    %c40 = arith.constant 40 : index
    %c0_102 = arith.constant 0 : index
    %135 = tpu.strided_load %arg19[%c40, %c0_102] {strides = array<i32: 2, 1>} : memref<169x128xf32, #tpu.memory_space<vmem>>, vector<6x128xf32>
    %136 = arith.maximumf %132, %133 : vector<6x128xf32>
    %137 = arith.maximumf %134, %135 : vector<6x128xf32>
    %138 = arith.maximumf %136, %137 : vector<6x128xf32>
    %c6 = arith.constant 6 : index
    %c0_103 = arith.constant 0 : index
    %139 = vector.load %arg20[%c6, %c0_103] : memref<36x128xf32, #tpu.memory_space<vmem>>, vector<6x128xf32>
    tpu.vector_store %arg20[%c6, %c0_103], %138 {strides = array<i32>} : memref<36x128xf32, #tpu.memory_space<vmem>>, vector<6x128xf32>,
    %c52 = arith.constant 52 : index
    %c0_104 = arith.constant 0 : index
    %140 = tpu.strided_load %arg19[%c52, %c0_104] {strides = array<i32: 2, 1>} : memref<169x128xf32, #tpu.memory_space<vmem>>, vector<6x128xf32>
    %c53 = arith.constant 53 : index
    %c0_105 = arith.constant 0 : index
    %141 = tpu.strided_load %arg19[%c53, %c0_105] {strides = array<i32: 2, 1>} : memref<169x128xf32, #tpu.memory_space<vmem>>, vector<6x128xf32>
    %c65 = arith.constant 65 : index
    %c0_106 = arith.constant 0 : index
    %142 = tpu.strided_load %arg19[%c65, %c0_106] {strides = array<i32: 2, 1>} : memref<169x128xf32, #tpu.memory_space<vmem>>, vector<6x128xf32>
    %c66 = arith.constant 66 : index
    %c0_107 = arith.constant 0 : index
    %143 = tpu.strided_load %arg19[%c66, %c0_107] {strides = array<i32: 2, 1>} : memref<169x128xf32, #tpu.memory_space<vmem>>, vector<6x128xf32>
    %144 = arith.maximumf %140, %141 : vector<6x128xf32>
    %145 = arith.maximumf %142, %143 : vector<6x128xf32>
    %146 = arith.maximumf %144, %145 : vector<6x128xf32>
    %c12 = arith.constant 12 : index
    %c0_108 = arith.constant 0 : index
    %147 = vector.load %arg20[%c12, %c0_108] : memref<36x128xf32, #tpu.memory_space<vmem>>, vector<6x128xf32>
    tpu.vector_store %arg20[%c12, %c0_108], %146 {strides = array<i32>} : memref<36x128xf32, #tpu.memory_space<vmem>>, vector<6x128xf32>,
    %c78 = arith.constant 78 : index
    %c0_109 = arith.constant 0 : index
    %148 = tpu.strided_load %arg19[%c78, %c0_109] {strides = array<i32: 2, 1>} : memref<169x128xf32, #tpu.memory_space<vmem>>, vector<6x128xf32>
    %c79 = arith.constant 79 : index
    %c0_110 = arith.constant 0 : index
    %149 = tpu.strided_load %arg19[%c79, %c0_110] {strides = array<i32: 2, 1>} : memref<169x128xf32, #tpu.memory_space<vmem>>, vector<6x128xf32>
    %c91_111 = arith.constant 91 : index
    %c0_112 = arith.constant 0 : index
    %150 = tpu.strided_load %arg19[%c91_111, %c0_112] {strides = array<i32: 2, 1>} : memref<169x128xf32, #tpu.memory_space<vmem>>, vector<6x128xf32>
    %c92 = arith.constant 92 : index
    %c0_113 = arith.constant 0 : index
    %151 = tpu.strided_load %arg19[%c92, %c0_113] {strides = array<i32: 2, 1>} : memref<169x128xf32, #tpu.memory_space<vmem>>, vector<6x128xf32>
    %152 = arith.maximumf %148, %149 : vector<6x128xf32>
    %153 = arith.maximumf %150, %151 : vector<6x128xf32>
    %154 = arith.maximumf %152, %153 : vector<6x128xf32>
    %c18 = arith.constant 18 : index
    %c0_114 = arith.constant 0 : index
    %155 = vector.load %arg20[%c18, %c0_114] : memref<36x128xf32, #tpu.memory_space<vmem>>, vector<6x128xf32>
    tpu.vector_store %arg20[%c18, %c0_114], %154 {strides = array<i32>} : memref<36x128xf32, #tpu.memory_space<vmem>>, vector<6x128xf32>,
    %c104 = arith.constant 104 : index
    %c0_115 = arith.constant 0 : index
    %156 = tpu.strided_load %arg19[%c104, %c0_115] {strides = array<i32: 2, 1>} : memref<169x128xf32, #tpu.memory_space<vmem>>, vector<6x128xf32>
    %c105_116 = arith.constant 105 : index
    %c0_117 = arith.constant 0 : index
    %157 = tpu.strided_load %arg19[%c105_116, %c0_117] {strides = array<i32: 2, 1>} : memref<169x128xf32, #tpu.memory_space<vmem>>, vector<6x128xf32>
    %c117 = arith.constant 117 : index
    %c0_118 = arith.constant 0 : index
    %158 = tpu.strided_load %arg19[%c117, %c0_118] {strides = array<i32: 2, 1>} : memref<169x128xf32, #tpu.memory_space<vmem>>, vector<6x128xf32>
    %c118 = arith.constant 118 : index
    %c0_119 = arith.constant 0 : index
    %159 = tpu.strided_load %arg19[%c118, %c0_119] {strides = array<i32: 2, 1>} : memref<169x128xf32, #tpu.memory_space<vmem>>, vector<6x128xf32>
    %160 = arith.maximumf %156, %157 : vector<6x128xf32>
    %161 = arith.maximumf %158, %159 : vector<6x128xf32>
    %162 = arith.maximumf %160, %161 : vector<6x128xf32>
    %c24 = arith.constant 24 : index
    %c0_120 = arith.constant 0 : index
    %163 = vector.load %arg20[%c24, %c0_120] : memref<36x128xf32, #tpu.memory_space<vmem>>, vector<6x128xf32>
    tpu.vector_store %arg20[%c24, %c0_120], %162 {strides = array<i32>} : memref<36x128xf32, #tpu.memory_space<vmem>>, vector<6x128xf32>,
    %c130 = arith.constant 130 : index
    %c0_121 = arith.constant 0 : index
    %164 = tpu.strided_load %arg19[%c130, %c0_121] {strides = array<i32: 2, 1>} : memref<169x128xf32, #tpu.memory_space<vmem>>, vector<6x128xf32>
    %c131 = arith.constant 131 : index
    %c0_122 = arith.constant 0 : index
    %165 = tpu.strided_load %arg19[%c131, %c0_122] {strides = array<i32: 2, 1>} : memref<169x128xf32, #tpu.memory_space<vmem>>, vector<6x128xf32>
    %c143 = arith.constant 143 : index
    %c0_123 = arith.constant 0 : index
    %166 = tpu.strided_load %arg19[%c143, %c0_123] {strides = array<i32: 2, 1>} : memref<169x128xf32, #tpu.memory_space<vmem>>, vector<6x128xf32>
    %c144 = arith.constant 144 : index
    %c0_124 = arith.constant 0 : index
    %167 = tpu.strided_load %arg19[%c144, %c0_124] {strides = array<i32: 2, 1>} : memref<169x128xf32, #tpu.memory_space<vmem>>, vector<6x128xf32>
    %168 = arith.maximumf %164, %165 : vector<6x128xf32>
    %169 = arith.maximumf %166, %167 : vector<6x128xf32>
    %170 = arith.maximumf %168, %169 : vector<6x128xf32>
    %c30_125 = arith.constant 30 : index
    %c0_126 = arith.constant 0 : index
    %171 = vector.load %arg20[%c30_125, %c0_126] : memref<36x128xf32, #tpu.memory_space<vmem>>, vector<6x128xf32>
    tpu.vector_store %arg20[%c30_125, %c0_126], %170 {strides = array<i32>} : memref<36x128xf32, #tpu.memory_space<vmem>>, vector<6x128xf32>,
    %c0_127 = arith.constant 0 : index
    %c0_128 = arith.constant 0 : index
    %172 = vector.load %arg7[%c0_127, %c0_128] : memref<1x128xf32, #tpu.memory_space<vmem>>, vector<1x128xf32>
    %c0_i32_129 = arith.constant 0 : i32
    %c4_i32 = arith.constant 4 : i32
    %173 = arith.addi %c0_i32_129, %c4_i32 : i32
    %c1_i32_130 = arith.constant 1 : i32
    scf.for %arg23 = %c0_i32_129 to %173 step %c1_i32_130  : i32 {
      %c1_i32_186 = arith.constant 1 : i32
      %235 = arith.muli %arg23, %c1_i32_186 : i32
      %c0_i32_187 = arith.constant 0 : i32
      %236 = arith.addi %c0_i32_187, %235 : i32
      %cst_188 = arith.constant 0.000000e+00 : f32
      %237 = vector.broadcast %cst_188 : f32 to vector<4x128xf32>
      %c0_i32_189 = arith.constant 0 : i32
      %238 = arith.addi %236, %c0_i32_189 : i32
      %c6_i32 = arith.constant 6 : i32
      %239 = arith.muli %238, %c6_i32 : i32
      %c0_i32_190 = arith.constant 0 : i32
      %240 = arith.addi %239, %c0_i32_190 : i32
      %241 = arith.index_cast %240 : i32 to index
      %c0_191 = arith.constant 0 : index
      %242 = vector.load %arg20[%241, %c0_191] : memref<36x128xf32, #tpu.memory_space<vmem>>, vector<4x128xf32>
      %c0_192 = arith.constant 0 : index
      %c0_193 = arith.constant 0 : index
      %c0_194 = arith.constant 0 : index
      %243 = vector.load %arg6[%c0_192, %c0_193, %c0_194] : memref<9x128x128xf32, #tpu.memory_space<vmem>>, vector<1x128x128xf32>
      %244 = vector.shape_cast %243 : vector<1x128x128xf32> to vector<128x128xf32>
      %cst_195 = arith.constant dense<0.000000e+00> : vector<4x128xf32>
      %245 = tpu.matmul %242, %244, %cst_195 {dimension_numbers = #tpu.dot_dimension_numbers<[1], [0], [0], [1], [0, 0, 1, 1], [], []>} : vector<4x128xf32>, vector<128x128xf32>, vector<4x128xf32> -> vector<4x128xf32>
      %246 = arith.addf %237, %245 : vector<4x128xf32>
      %c0_i32_196 = arith.constant 0 : i32
      %247 = arith.addi %236, %c0_i32_196 : i32
      %c6_i32_197 = arith.constant 6 : i32
      %248 = arith.muli %247, %c6_i32_197 : i32
      %c1_i32_198 = arith.constant 1 : i32
      %249 = arith.addi %248, %c1_i32_198 : i32
      %250 = arith.index_cast %249 : i32 to index
      %c0_199 = arith.constant 0 : index
      %251 = vector.load %arg20[%250, %c0_199] : memref<36x128xf32, #tpu.memory_space<vmem>>, vector<4x128xf32>
      %c1_200 = arith.constant 1 : index
      %c0_201 = arith.constant 0 : index
      %c0_202 = arith.constant 0 : index
      %252 = vector.load %arg6[%c1_200, %c0_201, %c0_202] : memref<9x128x128xf32, #tpu.memory_space<vmem>>, vector<1x128x128xf32>
      %253 = vector.shape_cast %252 : vector<1x128x128xf32> to vector<128x128xf32>
      %cst_203 = arith.constant dense<0.000000e+00> : vector<4x128xf32>
      %254 = tpu.matmul %251, %253, %cst_203 {dimension_numbers = #tpu.dot_dimension_numbers<[1], [0], [0], [1], [0, 0, 1, 1], [], []>} : vector<4x128xf32>, vector<128x128xf32>, vector<4x128xf32> -> vector<4x128xf32>
      %255 = arith.addf %246, %254 : vector<4x128xf32>
      %c0_i32_204 = arith.constant 0 : i32
      %256 = arith.addi %236, %c0_i32_204 : i32
      %c6_i32_205 = arith.constant 6 : i32
      %257 = arith.muli %256, %c6_i32_205 : i32
      %c2_i32 = arith.constant 2 : i32
      %258 = arith.addi %257, %c2_i32 : i32
      %259 = arith.index_cast %258 : i32 to index
      %c0_206 = arith.constant 0 : index
      %260 = vector.load %arg20[%259, %c0_206] : memref<36x128xf32, #tpu.memory_space<vmem>>, vector<4x128xf32>
      %c2_207 = arith.constant 2 : index
      %c0_208 = arith.constant 0 : index
      %c0_209 = arith.constant 0 : index
      %261 = vector.load %arg6[%c2_207, %c0_208, %c0_209] : memref<9x128x128xf32, #tpu.memory_space<vmem>>, vector<1x128x128xf32>
      %262 = vector.shape_cast %261 : vector<1x128x128xf32> to vector<128x128xf32>
      %cst_210 = arith.constant dense<0.000000e+00> : vector<4x128xf32>
      %263 = tpu.matmul %260, %262, %cst_210 {dimension_numbers = #tpu.dot_dimension_numbers<[1], [0], [0], [1], [0, 0, 1, 1], [], []>} : vector<4x128xf32>, vector<128x128xf32>, vector<4x128xf32> -> vector<4x128xf32>
      %264 = arith.addf %255, %263 : vector<4x128xf32>
      %c1_i32_211 = arith.constant 1 : i32
      %265 = arith.addi %236, %c1_i32_211 : i32
      %c6_i32_212 = arith.constant 6 : i32
      %266 = arith.muli %265, %c6_i32_212 : i32
      %c0_i32_213 = arith.constant 0 : i32
      %267 = arith.addi %266, %c0_i32_213 : i32
      %268 = arith.index_cast %267 : i32 to index
      %c0_214 = arith.constant 0 : index
      %269 = vector.load %arg20[%268, %c0_214] : memref<36x128xf32, #tpu.memory_space<vmem>>, vector<4x128xf32>
      %c3_215 = arith.constant 3 : index
      %c0_216 = arith.constant 0 : index
      %c0_217 = arith.constant 0 : index
      %270 = vector.load %arg6[%c3_215, %c0_216, %c0_217] : memref<9x128x128xf32, #tpu.memory_space<vmem>>, vector<1x128x128xf32>
      %271 = vector.shape_cast %270 : vector<1x128x128xf32> to vector<128x128xf32>
      %cst_218 = arith.constant dense<0.000000e+00> : vector<4x128xf32>
      %272 = tpu.matmul %269, %271, %cst_218 {dimension_numbers = #tpu.dot_dimension_numbers<[1], [0], [0], [1], [0, 0, 1, 1], [], []>} : vector<4x128xf32>, vector<128x128xf32>, vector<4x128xf32> -> vector<4x128xf32>
      %273 = arith.addf %264, %272 : vector<4x128xf32>
      %c1_i32_219 = arith.constant 1 : i32
      %274 = arith.addi %236, %c1_i32_219 : i32
      %c6_i32_220 = arith.constant 6 : i32
      %275 = arith.muli %274, %c6_i32_220 : i32
      %c1_i32_221 = arith.constant 1 : i32
      %276 = arith.addi %275, %c1_i32_221 : i32
      %277 = arith.index_cast %276 : i32 to index
      %c0_222 = arith.constant 0 : index
      %278 = vector.load %arg20[%277, %c0_222] : memref<36x128xf32, #tpu.memory_space<vmem>>, vector<4x128xf32>
      %c4_223 = arith.constant 4 : index
      %c0_224 = arith.constant 0 : index
      %c0_225 = arith.constant 0 : index
      %279 = vector.load %arg6[%c4_223, %c0_224, %c0_225] : memref<9x128x128xf32, #tpu.memory_space<vmem>>, vector<1x128x128xf32>
      %280 = vector.shape_cast %279 : vector<1x128x128xf32> to vector<128x128xf32>
      %cst_226 = arith.constant dense<0.000000e+00> : vector<4x128xf32>
      %281 = tpu.matmul %278, %280, %cst_226 {dimension_numbers = #tpu.dot_dimension_numbers<[1], [0], [0], [1], [0, 0, 1, 1], [], []>} : vector<4x128xf32>, vector<128x128xf32>, vector<4x128xf32> -> vector<4x128xf32>
      %282 = arith.addf %273, %281 : vector<4x128xf32>
      %c1_i32_227 = arith.constant 1 : i32
      %283 = arith.addi %236, %c1_i32_227 : i32
      %c6_i32_228 = arith.constant 6 : i32
      %284 = arith.muli %283, %c6_i32_228 : i32
      %c2_i32_229 = arith.constant 2 : i32
      %285 = arith.addi %284, %c2_i32_229 : i32
      %286 = arith.index_cast %285 : i32 to index
      %c0_230 = arith.constant 0 : index
      %287 = vector.load %arg20[%286, %c0_230] : memref<36x128xf32, #tpu.memory_space<vmem>>, vector<4x128xf32>
      %c5_231 = arith.constant 5 : index
      %c0_232 = arith.constant 0 : index
      %c0_233 = arith.constant 0 : index
      %288 = vector.load %arg6[%c5_231, %c0_232, %c0_233] : memref<9x128x128xf32, #tpu.memory_space<vmem>>, vector<1x128x128xf32>
      %289 = vector.shape_cast %288 : vector<1x128x128xf32> to vector<128x128xf32>
      %cst_234 = arith.constant dense<0.000000e+00> : vector<4x128xf32>
      %290 = tpu.matmul %287, %289, %cst_234 {dimension_numbers = #tpu.dot_dimension_numbers<[1], [0], [0], [1], [0, 0, 1, 1], [], []>} : vector<4x128xf32>, vector<128x128xf32>, vector<4x128xf32> -> vector<4x128xf32>
      %291 = arith.addf %282, %290 : vector<4x128xf32>
      %c2_i32_235 = arith.constant 2 : i32
      %292 = arith.addi %236, %c2_i32_235 : i32
      %c6_i32_236 = arith.constant 6 : i32
      %293 = arith.muli %292, %c6_i32_236 : i32
      %c0_i32_237 = arith.constant 0 : i32
      %294 = arith.addi %293, %c0_i32_237 : i32
      %295 = arith.index_cast %294 : i32 to index
      %c0_238 = arith.constant 0 : index
      %296 = vector.load %arg20[%295, %c0_238] : memref<36x128xf32, #tpu.memory_space<vmem>>, vector<4x128xf32>
      %c6_239 = arith.constant 6 : index
      %c0_240 = arith.constant 0 : index
      %c0_241 = arith.constant 0 : index
      %297 = vector.load %arg6[%c6_239, %c0_240, %c0_241] : memref<9x128x128xf32, #tpu.memory_space<vmem>>, vector<1x128x128xf32>
      %298 = vector.shape_cast %297 : vector<1x128x128xf32> to vector<128x128xf32>
      %cst_242 = arith.constant dense<0.000000e+00> : vector<4x128xf32>
      %299 = tpu.matmul %296, %298, %cst_242 {dimension_numbers = #tpu.dot_dimension_numbers<[1], [0], [0], [1], [0, 0, 1, 1], [], []>} : vector<4x128xf32>, vector<128x128xf32>, vector<4x128xf32> -> vector<4x128xf32>
      %300 = arith.addf %291, %299 : vector<4x128xf32>
      %c2_i32_243 = arith.constant 2 : i32
      %301 = arith.addi %236, %c2_i32_243 : i32
      %c6_i32_244 = arith.constant 6 : i32
      %302 = arith.muli %301, %c6_i32_244 : i32
      %c1_i32_245 = arith.constant 1 : i32
      %303 = arith.addi %302, %c1_i32_245 : i32
      %304 = arith.index_cast %303 : i32 to index
      %c0_246 = arith.constant 0 : index
      %305 = vector.load %arg20[%304, %c0_246] : memref<36x128xf32, #tpu.memory_space<vmem>>, vector<4x128xf32>
      %c7 = arith.constant 7 : index
      %c0_247 = arith.constant 0 : index
      %c0_248 = arith.constant 0 : index
      %306 = vector.load %arg6[%c7, %c0_247, %c0_248] : memref<9x128x128xf32, #tpu.memory_space<vmem>>, vector<1x128x128xf32>
      %307 = vector.shape_cast %306 : vector<1x128x128xf32> to vector<128x128xf32>
      %cst_249 = arith.constant dense<0.000000e+00> : vector<4x128xf32>
      %308 = tpu.matmul %305, %307, %cst_249 {dimension_numbers = #tpu.dot_dimension_numbers<[1], [0], [0], [1], [0, 0, 1, 1], [], []>} : vector<4x128xf32>, vector<128x128xf32>, vector<4x128xf32> -> vector<4x128xf32>
      %309 = arith.addf %300, %308 : vector<4x128xf32>
      %c2_i32_250 = arith.constant 2 : i32
      %310 = arith.addi %236, %c2_i32_250 : i32
      %c6_i32_251 = arith.constant 6 : i32
      %311 = arith.muli %310, %c6_i32_251 : i32
      %c2_i32_252 = arith.constant 2 : i32
      %312 = arith.addi %311, %c2_i32_252 : i32
      %313 = arith.index_cast %312 : i32 to index
      %c0_253 = arith.constant 0 : index
      %314 = vector.load %arg20[%313, %c0_253] : memref<36x128xf32, #tpu.memory_space<vmem>>, vector<4x128xf32>
      %c8_254 = arith.constant 8 : index
      %c0_255 = arith.constant 0 : index
      %c0_256 = arith.constant 0 : index
      %315 = vector.load %arg6[%c8_254, %c0_255, %c0_256] : memref<9x128x128xf32, #tpu.memory_space<vmem>>, vector<1x128x128xf32>
      %316 = vector.shape_cast %315 : vector<1x128x128xf32> to vector<128x128xf32>
      %cst_257 = arith.constant dense<0.000000e+00> : vector<4x128xf32>
      %317 = tpu.matmul %314, %316, %cst_257 {dimension_numbers = #tpu.dot_dimension_numbers<[1], [0], [0], [1], [0, 0, 1, 1], [], []>} : vector<4x128xf32>, vector<128x128xf32>, vector<4x128xf32> -> vector<4x128xf32>
      %318 = arith.addf %309, %317 : vector<4x128xf32>
      %319 = vector.broadcast %172 : vector<1x128xf32> to vector<4x128xf32>
      %320 = arith.addf %318, %319 : vector<4x128xf32>
      %cst_258 = arith.constant 0.000000e+00 : f32
      %321 = vector.broadcast %cst_258 : f32 to vector<4x128xf32>
      %322 = arith.maximumf %320, %321 : vector<4x128xf32>
      %c4_i32_259 = arith.constant 4 : i32
      %323 = arith.muli %236, %c4_i32_259 : i32
      %324 = arith.index_cast %323 : i32 to index
      %c0_260 = arith.constant 0 : index
      %325 = vector.load %arg21[%324, %c0_260] : memref<16x128xf32, #tpu.memory_space<vmem>>, vector<4x128xf32>
      tpu.vector_store %arg21[%324, %c0_260], %322 {strides = array<i32>} : memref<16x128xf32, #tpu.memory_space<vmem>>, vector<4x128xf32>,
    }
    %c4_i32_131 = arith.constant 4 : i32
    %c0_132 = arith.constant 0 : index
    %c0_133 = arith.constant 0 : index
    %174 = tpu.strided_load %arg21[%c0_132, %c0_133] {strides = array<i32: 2, 1>} : memref<16x128xf32, #tpu.memory_space<vmem>>, vector<2x128xf32>
    %c1_134 = arith.constant 1 : index
    %c0_135 = arith.constant 0 : index
    %175 = tpu.strided_load %arg21[%c1_134, %c0_135] {strides = array<i32: 2, 1>} : memref<16x128xf32, #tpu.memory_space<vmem>>, vector<2x128xf32>
    %c4 = arith.constant 4 : index
    %c0_136 = arith.constant 0 : index
    %176 = tpu.strided_load %arg21[%c4, %c0_136] {strides = array<i32: 2, 1>} : memref<16x128xf32, #tpu.memory_space<vmem>>, vector<2x128xf32>
    %c5 = arith.constant 5 : index
    %c0_137 = arith.constant 0 : index
    %177 = tpu.strided_load %arg21[%c5, %c0_137] {strides = array<i32: 2, 1>} : memref<16x128xf32, #tpu.memory_space<vmem>>, vector<2x128xf32>
    %178 = arith.maximumf %174, %175 : vector<2x128xf32>
    %179 = arith.maximumf %176, %177 : vector<2x128xf32>
    %180 = arith.maximumf %178, %179 : vector<2x128xf32>
    %c0_138 = arith.constant 0 : index
    %c0_139 = arith.constant 0 : index
    %181 = vector.load %arg22[%c0_138, %c0_139] : memref<4x128xf32, #tpu.memory_space<vmem>>, vector<2x128xf32>
    tpu.vector_store %arg22[%c0_138, %c0_139], %180 {strides = array<i32>} : memref<4x128xf32, #tpu.memory_space<vmem>>, vector<2x128xf32>,
    %c8 = arith.constant 8 : index
    %c0_140 = arith.constant 0 : index
    %182 = tpu.strided_load %arg21[%c8, %c0_140] {strides = array<i32: 2, 1>} : memref<16x128xf32, #tpu.memory_space<vmem>>, vector<2x128xf32>
    %c9 = arith.constant 9 : index
    %c0_141 = arith.constant 0 : index
    %183 = tpu.strided_load %arg21[%c9, %c0_141] {strides = array<i32: 2, 1>} : memref<16x128xf32, #tpu.memory_space<vmem>>, vector<2x128xf32>
    %c12_142 = arith.constant 12 : index
    %c0_143 = arith.constant 0 : index
    %184 = tpu.strided_load %arg21[%c12_142, %c0_143] {strides = array<i32: 2, 1>} : memref<16x128xf32, #tpu.memory_space<vmem>>, vector<2x128xf32>
    %c13_144 = arith.constant 13 : index
    %c0_145 = arith.constant 0 : index
    %185 = tpu.strided_load %arg21[%c13_144, %c0_145] {strides = array<i32: 2, 1>} : memref<16x128xf32, #tpu.memory_space<vmem>>, vector<2x128xf32>
    %186 = arith.maximumf %182, %183 : vector<2x128xf32>
    %187 = arith.maximumf %184, %185 : vector<2x128xf32>
    %188 = arith.maximumf %186, %187 : vector<2x128xf32>
    %c2 = arith.constant 2 : index
    %c0_146 = arith.constant 0 : index
    %189 = vector.load %arg22[%c2, %c0_146] : memref<4x128xf32, #tpu.memory_space<vmem>>, vector<2x128xf32>
    tpu.vector_store %arg22[%c2, %c0_146], %188 {strides = array<i32>} : memref<4x128xf32, #tpu.memory_space<vmem>>, vector<2x128xf32>,
    %c0_147 = arith.constant 0 : index
    %c0_148 = arith.constant 0 : index
    %190 = vector.load %arg22[%c0_147, %c0_148] : memref<4x128xf32, #tpu.memory_space<vmem>>, vector<4x128xf32>
    %c0_149 = arith.constant 0 : index
    %c0_150 = arith.constant 0 : index
    %191 = vector.load %arg9[%c0_149, %c0_150] : memref<1x128xf32, #tpu.memory_space<vmem>>, vector<1x128xf32>
    %192 = vector.extract_strided_slice %190 {offsets = [0, 0], sizes = [1, 128], strides = [1, 1]} : vector<4x128xf32> to vector<1x128xf32>
    %c0_151 = arith.constant 0 : index
    %c0_152 = arith.constant 0 : index
    %c0_153 = arith.constant 0 : index
    %193 = vector.load %arg8[%c0_151, %c0_152, %c0_153] : memref<4x128x128xf32, #tpu.memory_space<vmem>>, vector<1x128x128xf32>
    %194 = vector.shape_cast %193 : vector<1x128x128xf32> to vector<128x128xf32>
    %cst = arith.constant dense<0.000000e+00> : vector<1x128xf32>
    %195 = tpu.matmul %192, %194, %cst {dimension_numbers = #tpu.dot_dimension_numbers<[1], [0], [0], [1], [0, 0, 1, 1], [], []>} : vector<1x128xf32>, vector<128x128xf32>, vector<1x128xf32> -> vector<1x128xf32>
    %196 = arith.addf %191, %195 : vector<1x128xf32>
    %197 = vector.extract_strided_slice %190 {offsets = [1, 0], sizes = [1, 128], strides = [1, 1]} : vector<4x128xf32> to vector<1x128xf32>
    %c1_154 = arith.constant 1 : index
    %c0_155 = arith.constant 0 : index
    %c0_156 = arith.constant 0 : index
    %198 = vector.load %arg8[%c1_154, %c0_155, %c0_156] : memref<4x128x128xf32, #tpu.memory_space<vmem>>, vector<1x128x128xf32>
    %199 = vector.shape_cast %198 : vector<1x128x128xf32> to vector<128x128xf32>
    %cst_157 = arith.constant dense<0.000000e+00> : vector<1x128xf32>
    %200 = tpu.matmul %197, %199, %cst_157 {dimension_numbers = #tpu.dot_dimension_numbers<[1], [0], [0], [1], [0, 0, 1, 1], [], []>} : vector<1x128xf32>, vector<128x128xf32>, vector<1x128xf32> -> vector<1x128xf32>
    %201 = arith.addf %196, %200 : vector<1x128xf32>
    %202 = vector.extract_strided_slice %190 {offsets = [2, 0], sizes = [1, 128], strides = [1, 1]} : vector<4x128xf32> to vector<1x128xf32>
    %c2_158 = arith.constant 2 : index
    %c0_159 = arith.constant 0 : index
    %c0_160 = arith.constant 0 : index
    %203 = vector.load %arg8[%c2_158, %c0_159, %c0_160] : memref<4x128x128xf32, #tpu.memory_space<vmem>>, vector<1x128x128xf32>
    %204 = vector.shape_cast %203 : vector<1x128x128xf32> to vector<128x128xf32>
    %cst_161 = arith.constant dense<0.000000e+00> : vector<1x128xf32>
    %205 = tpu.matmul %202, %204, %cst_161 {dimension_numbers = #tpu.dot_dimension_numbers<[1], [0], [0], [1], [0, 0, 1, 1], [], []>} : vector<1x128xf32>, vector<128x128xf32>, vector<1x128xf32> -> vector<1x128xf32>
    %206 = arith.addf %201, %205 : vector<1x128xf32>
    %207 = vector.extract_strided_slice %190 {offsets = [3, 0], sizes = [1, 128], strides = [1, 1]} : vector<4x128xf32> to vector<1x128xf32>
    %c3 = arith.constant 3 : index
    %c0_162 = arith.constant 0 : index
    %c0_163 = arith.constant 0 : index
    %208 = vector.load %arg8[%c3, %c0_162, %c0_163] : memref<4x128x128xf32, #tpu.memory_space<vmem>>, vector<1x128x128xf32>
    %209 = vector.shape_cast %208 : vector<1x128x128xf32> to vector<128x128xf32>
    %cst_164 = arith.constant dense<0.000000e+00> : vector<1x128xf32>
    %210 = tpu.matmul %207, %209, %cst_164 {dimension_numbers = #tpu.dot_dimension_numbers<[1], [0], [0], [1], [0, 0, 1, 1], [], []>} : vector<1x128xf32>, vector<128x128xf32>, vector<1x128xf32> -> vector<1x128xf32>
    %211 = arith.addf %206, %210 : vector<1x128xf32>
    %cst_165 = arith.constant 0.000000e+00 : f32
    %212 = vector.broadcast %cst_165 : f32 to vector<1x128xf32>
    %213 = arith.maximumf %211, %212 : vector<1x128xf32>
    %c0_166 = arith.constant 0 : index
    %c0_167 = arith.constant 0 : index
    %214 = vector.load %arg10[%c0_166, %c0_167] : memref<128x128xf32, #tpu.memory_space<vmem>>, vector<128x128xf32>
    %cst_168 = arith.constant dense<0.000000e+00> : vector<1x128xf32>
    %215 = tpu.matmul %213, %214, %cst_168 {dimension_numbers = #tpu.dot_dimension_numbers<[1], [0], [0], [1], [0, 0, 1, 1], [], []>} : vector<1x128xf32>, vector<128x128xf32>, vector<1x128xf32> -> vector<1x128xf32>
    %c0_169 = arith.constant 0 : index
    %c0_170 = arith.constant 0 : index
    %216 = vector.load %arg11[%c0_169, %c0_170] : memref<1x128xf32, #tpu.memory_space<vmem>>, vector<1x128xf32>
    %217 = arith.addf %215, %216 : vector<1x128xf32>
    %cst_171 = arith.constant 0.000000e+00 : f32
    %218 = vector.broadcast %cst_171 : f32 to vector<1x128xf32>
    %219 = arith.maximumf %217, %218 : vector<1x128xf32>
    %c0_172 = arith.constant 0 : index
    %c0_173 = arith.constant 0 : index
    %220 = vector.load %arg12[%c0_172, %c0_173] : memref<128x128xf32, #tpu.memory_space<vmem>>, vector<128x128xf32>
    %cst_174 = arith.constant dense<0.000000e+00> : vector<1x128xf32>
    %221 = tpu.matmul %219, %220, %cst_174 {dimension_numbers = #tpu.dot_dimension_numbers<[1], [0], [0], [1], [0, 0, 1, 1], [], []>} : vector<1x128xf32>, vector<128x128xf32>, vector<1x128xf32> -> vector<1x128xf32>
    %c0_175 = arith.constant 0 : index
    %c0_176 = arith.constant 0 : index
    %222 = vector.load %arg13[%c0_175, %c0_176] : memref<1x128xf32, #tpu.memory_space<vmem>>, vector<1x128xf32>
    %223 = arith.addf %221, %222 : vector<1x128xf32>
    %cst_177 = arith.constant 0.000000e+00 : f32
    %224 = vector.broadcast %cst_177 : f32 to vector<1x128xf32>
    %225 = arith.maximumf %223, %224 : vector<1x128xf32>
    %c0_178 = arith.constant 0 : index
    %c0_179 = arith.constant 0 : index
    %226 = vector.load %arg14[%c0_178, %c0_179] : memref<128x128xf32, #tpu.memory_space<vmem>>, vector<128x128xf32>
    %cst_180 = arith.constant dense<0.000000e+00> : vector<1x128xf32>
    %227 = tpu.matmul %225, %226, %cst_180 {dimension_numbers = #tpu.dot_dimension_numbers<[1], [0], [0], [1], [0, 0, 1, 1], [], []>} : vector<1x128xf32>, vector<128x128xf32>, vector<1x128xf32> -> vector<1x128xf32>
    %c0_181 = arith.constant 0 : index
    %c0_182 = arith.constant 0 : index
    %228 = vector.load %arg15[%c0_181, %c0_182] : memref<1x128xf32, #tpu.memory_space<vmem>>, vector<1x128xf32>
    %229 = arith.addf %227, %228 : vector<1x128xf32>
    %230 = vector.shape_cast %229 : vector<1x128xf32> to vector<1x128xf32>
    %231 = vector.broadcast %230 : vector<1x128xf32> to vector<8x128xf32>
    %c0_183 = arith.constant 0 : index
    %c0_184 = arith.constant 0 : index
    %c0_185 = arith.constant 0 : index
    %232 = vector.load %arg16[%c0_183, %c0_184, %c0_185] : memref<1x8x128xf32, #tpu.memory_space<vmem>>, vector<1x8x128xf32>
    %233 = vector.shape_cast %232 : vector<1x8x128xf32> to vector<8x128xf32>
    %234 = vector.shape_cast %231 : vector<8x128xf32> to vector<1x8x128xf32>
    tpu.vector_store %arg16[%c0_183, %c0_184, %c0_185], %234 {strides = array<i32>} : memref<1x8x128xf32, #tpu.memory_space<vmem>>, vector<1x8x128xf32>,
    return
  }
  func.func @transform_0(%arg0: i32) -> (i32, i32, i32) {
    %c0_i32 = arith.constant 0 : i32
    %c0_i32_0 = arith.constant 0 : i32
    %c0_i32_1 = arith.constant 0 : i32
    return %arg0, %c0_i32, %c0_i32_0 : i32, i32, i32
  }
  func.func @transform_1(%arg0: i32) -> (i32, i32, i32) {
    %c0_i32 = arith.constant 0 : i32
    %c0_i32_0 = arith.constant 0 : i32
    %c0_i32_1 = arith.constant 0 : i32
    %c0_i32_2 = arith.constant 0 : i32
    return %c0_i32, %c0_i32_0, %c0_i32_1 : i32, i32, i32
  }
  func.func @transform_2(%arg0: i32) -> (i32, i32) {
    %c0_i32 = arith.constant 0 : i32
    %c0_i32_0 = arith.constant 0 : i32
    %c0_i32_1 = arith.constant 0 : i32
    return %c0_i32, %c0_i32_0 : i32, i32
  }
  func.func @transform_3(%arg0: i32) -> (i32, i32, i32) {
    %c0_i32 = arith.constant 0 : i32
    %c0_i32_0 = arith.constant 0 : i32
    %c0_i32_1 = arith.constant 0 : i32
    %c0_i32_2 = arith.constant 0 : i32
    return %c0_i32, %c0_i32_0, %c0_i32_1 : i32, i32, i32
  }
  func.func @transform_4(%arg0: i32) -> (i32, i32) {
    %c0_i32 = arith.constant 0 : i32
    %c0_i32_0 = arith.constant 0 : i32
    %c0_i32_1 = arith.constant 0 : i32
    return %c0_i32, %c0_i32_0 : i32, i32
  }
  func.func @transform_5(%arg0: i32) -> (i32, i32, i32) {
    %c0_i32 = arith.constant 0 : i32
    %c0_i32_0 = arith.constant 0 : i32
    %c0_i32_1 = arith.constant 0 : i32
    %c0_i32_2 = arith.constant 0 : i32
    return %c0_i32, %c0_i32_0, %c0_i32_1 : i32, i32, i32
  }
  func.func @transform_6(%arg0: i32) -> (i32, i32) {
    %c0_i32 = arith.constant 0 : i32
    %c0_i32_0 = arith.constant 0 : i32
    %c0_i32_1 = arith.constant 0 : i32
    return %c0_i32, %c0_i32_0 : i32, i32
  }
  func.func @transform_7(%arg0: i32) -> (i32, i32, i32) {
    %c0_i32 = arith.constant 0 : i32
    %c0_i32_0 = arith.constant 0 : i32
    %c0_i32_1 = arith.constant 0 : i32
    %c0_i32_2 = arith.constant 0 : i32
    return %c0_i32, %c0_i32_0, %c0_i32_1 : i32, i32, i32
  }
  func.func @transform_8(%arg0: i32) -> (i32, i32) {
    %c0_i32 = arith.constant 0 : i32
    %c0_i32_0 = arith.constant 0 : i32
    %c0_i32_1 = arith.constant 0 : i32
    return %c0_i32, %c0_i32_0 : i32, i32
  }
  func.func @transform_9(%arg0: i32) -> (i32, i32) {
    %c0_i32 = arith.constant 0 : i32
    %c0_i32_0 = arith.constant 0 : i32
    %c0_i32_1 = arith.constant 0 : i32
    return %c0_i32, %c0_i32_0 : i32, i32
  }
  func.func @transform_10(%arg0: i32) -> (i32, i32) {
    %c0_i32 = arith.constant 0 : i32
    %c0_i32_0 = arith.constant 0 : i32
    %c0_i32_1 = arith.constant 0 : i32
    return %c0_i32, %c0_i32_0 : i32, i32
  }
  func.func @transform_11(%arg0: i32) -> (i32, i32) {
    %c0_i32 = arith.constant 0 : i32
    %c0_i32_0 = arith.constant 0 : i32
    %c0_i32_1 = arith.constant 0 : i32
    return %c0_i32, %c0_i32_0 : i32, i32
  }
  func.func @transform_12(%arg0: i32) -> (i32, i32) {
    %c0_i32 = arith.constant 0 : i32
    %c0_i32_0 = arith.constant 0 : i32
    %c0_i32_1 = arith.constant 0 : i32
    return %c0_i32, %c0_i32_0 : i32, i32
  }
  func.func @transform_13(%arg0: i32) -> (i32, i32) {
    %c0_i32 = arith.constant 0 : i32
    %c0_i32_0 = arith.constant 0 : i32
    %c0_i32_1 = arith.constant 0 : i32
    return %c0_i32, %c0_i32_0 : i32, i32
  }
  func.func @transform_14(%arg0: i32) -> (i32, i32) {
    %c0_i32 = arith.constant 0 : i32
    %c0_i32_0 = arith.constant 0 : i32
    %c0_i32_1 = arith.constant 0 : i32
    return %c0_i32, %c0_i32_0 : i32, i32
  }
  func.func @transform_15(%arg0: i32) -> (i32, i32, i32) {
    %c0_i32 = arith.constant 0 : i32
    %c0_i32_0 = arith.constant 0 : i32
    %c0_i32_1 = arith.constant 0 : i32
    return %arg0, %c0_i32, %c0_i32_0 : i32, i32, i32
  }
}

</mosaic_0001>

<llo_original>
// kernel: lenet5_forward.1
$region0: #{lenet5_forward.1}
  #allocation0 [shape = 'u32[]', space=smem, size = 0x4, offset = 0x4, fixed_abs, tag = 'smem constant byte address 0x4 - core index']
  #allocation1 [shape = 'u32[144,128]{1,0:T(1,128)}', space=vmem, size = 0x12000, scoped, tag = 'internal scratch']
  #allocation2 [shape = 'f32[900,128]{1,0:T(8,128)}', space=vmem, size = 0x71000, scoped, tag = 'scratch operand']
  #allocation3 [shape = 'f32[225,128]{1,0:T(8,128)}', space=vmem, size = 0x1d000, scoped, tag = 'scratch operand']
  #allocation4 [shape = 'f32[169,128]{1,0:T(8,128)}', space=vmem, size = 0x16000, scoped, tag = 'scratch operand']
  #allocation5 [shape = 'f32[36,128]{1,0:T(8,128)}', space=vmem, size = 0x5000, scoped, tag = 'scratch operand']
  #allocation6 [shape = 'f32[16,128]{1,0:T(8,128)}', space=vmem, size = 0x2000, scoped, tag = 'scratch operand']
  #allocation7 [shape = 'f32[4,128]{1,0:T(4,128)}', space=vmem, size = 0x800, scoped, tag = 'scratch operand']
  %s0 = inlined_call_operand.vmem [shape: f32[2,1024,128], index: 0, kind: input, shape index: {}]
  %s1 = inlined_call_operand.vmem [shape: f32[9,128,128], index: 1, kind: input, shape index: {}]
  %s2 = inlined_call_operand.vmem [shape: f32[1,128], index: 2, kind: input, shape index: {}]
  %s3 = inlined_call_operand.vmem [shape: f32[9,128,128], index: 3, kind: input, shape index: {}]
  %s4 = inlined_call_operand.vmem [shape: f32[1,128], index: 4, kind: input, shape index: {}]
  %s5 = inlined_call_operand.vmem [shape: f32[9,128,128], index: 5, kind: input, shape index: {}]
  %s6 = inlined_call_operand.vmem [shape: f32[1,128], index: 6, kind: input, shape index: {}]
  %s7 = inlined_call_operand.vmem [shape: f32[4,128,128], index: 7, kind: input, shape index: {}]
  %s8 = inlined_call_operand.vmem [shape: f32[1,128], index: 8, kind: input, shape index: {}]
  %s9 = inlined_call_operand.vmem [shape: f32[128,128], index: 9, kind: input, shape index: {}]
  %s10 = inlined_call_operand.vmem [shape: f32[1,128], index: 10, kind: input, shape index: {}]
  %s11 = inlined_call_operand.vmem [shape: f32[128,128], index: 11, kind: input, shape index: {}]
  %s12 = inlined_call_operand.vmem [shape: f32[1,128], index: 12, kind: input, shape index: {}]
  %s13 = inlined_call_operand.vmem [shape: f32[128,128], index: 13, kind: input, shape index: {}]
  %s14 = inlined_call_operand.vmem [shape: f32[1,128], index: 14, kind: input, shape index: {}]
  %s15 = inlined_call_operand.vmem [shape: f32[2,8,128], index: 15, kind: output, shape index: {}]
  %s16 = sld [smem:[#allocation0]]
  $region114: #{lenet5_forward.1} parent=0
    _
  %s18 = ssub.s32 1, %s16
  %s19 = scalar_select 0, %s18, %s16
  loop: start=0, step=1, limit=4
  $region2: #{lenet5_forward.1} parent=0 // loop_pre_header
    _
  $region3: #{lenet5_forward.1} parent=0 // loop_header
    %s21 = sphi 0, %s25
    %p22 = scmp.ge.s32.totalorder %s21, 4
    %s31 = sphi 0, %s33
    %s34 = sphi 0, %s31
    %s35 = sphi 0, %s34
    %s51 = sphi 0, %s35
    %s55 = sphi 0, %s55
    %s57 = sphi 0, %s55
    %s58 = sphi 0, %s57
    %s72 = sphi 0, %s58
    %s76 = sphi 0, %s76
    %s78 = sphi 0, %s76
    %s79 = sphi 0, %s78
    %s93 = sphi 0, %s79
    %s97 = sphi 0, %s97
    %s99 = sphi 0, %s97
    %s100 = sphi 0, %s99
    %s114 = sphi 0, %s100
    %s118 = sphi 0, %s118
    %s120 = sphi 0, %s118
    %s121 = sphi 0, %s120
    %s135 = sphi 0, %s121
    %s139 = sphi 0, %s139
    %s141 = sphi 0, %s139
    %s142 = sphi 0, %s141
    %s156 = sphi 0, %s142
    %s160 = sphi 0, %s160
    %s162 = sphi 0, %s160
    %s163 = sphi 0, %s162
    %s177 = sphi 0, %s163
    %s181 = sphi 0, %s181
    %s183 = sphi 0, %s181
    %s184 = sphi 0, %s183
    %s198 = sphi 0, %s184
    %s202 = sphi 0, %s202
    %s204 = sphi 0, %s202
    %s205 = sphi 0, %s204
    %s219 = sphi 0, %s205
    %s223 = sphi 0, %s223
    %s225 = sphi 0, %s223
    %s226 = sphi 0, %s225
    %s240 = sphi 0, %s226
    %s244 = sphi 0, %s244
    %s246 = sphi 0, %s244
    %s247 = sphi 0, %s246
    %s261 = sphi 0, %s247
    %s265 = sphi 0, %s265
    %s267 = sphi 0, %s265
    %s268 = sphi 0, %s267
    %s282 = sphi 0, %s268
    %s286 = sphi 0, %s286
    %s288 = sphi 0, %s286
    %s289 = sphi 0, %s288
    %s303 = sphi 0, %s289
    %s307 = sphi 0, %s307
    %s309 = sphi 0, %s307
    %s310 = sphi 0, %s309
    %s324 = sphi 0, %s310
    %s328 = sphi 0, %s328
    %s330 = sphi 0, %s328
    %s331 = sphi 0, %s330
    %s345 = sphi 0, %s331
    %s351 = sphi 0, %s353
    %s354 = sphi 0, %s351
    %s355 = sphi 0, %s354
    %s371 = sphi 0, %s355
  $region4: #{lenet5_forward.1} parent=0 // loop_header_branch
    %24 = sbr.rel (%p22) target = $region8
  $region5: #{lenet5_forward.1} parent=0 // loop_body
    %s26 = ssub.s32 %s21, 1
    %s27 = ssub.s32 %s21, 2
    %s28 = sadd.s32 %s21, 1
    %s29 = ssub.s32 %s21, %s28
    %p30 = scmp.eq.s32.totalorder %s29, 0
    %s32 = sadd.s32 %s31, 1
    %s33 = scalar_select %p30, %s31, %s32
    %p36 = pneg %p30
    %p37 = scmp.eq.s32.totalorder %s21, 1
    %p38 = por %p36, %p37
    %p39 = scmp.ne.s32.totalorder %s31, %s34
    %p40 = scmp.eq.s32.totalorder %s21, 0
    %p41 = por %p39, %p40
    %p42 = scmp.ne.s32.totalorder %s31, %s34
    %p43 = scmp.eq.s32.totalorder %s26, 1
    %p44 = por %p42, %p43
    %p45 = scmp.ne.s32.totalorder %s34, %s35
    %p46 = scmp.eq.s32.totalorder %s26, 0
    %p47 = por %p45, %p46
    %p48 = scmp.ne.s32.totalorder %s34, %s35
    %p49 = scmp.eq.s32.totalorder %s27, 1
    %p50 = por %p48, %p49
    %p52 = scmp.ne.s32.totalorder %s35, %s51
    %p53 = scmp.eq.s32.totalorder %s27, 0
    %p54 = por %p52, %p53
    %s56 = sadd.s32 %s55, 1
    %p59 = scmp.eq.s32.totalorder %s21, 1
    %p60 = scmp.ne.s32.totalorder %s55, %s57
    %p61 = scmp.eq.s32.totalorder %s21, 0
    %p62 = por %p60, %p61
    %p63 = scmp.ne.s32.totalorder %s55, %s57
    %p64 = scmp.eq.s32.totalorder %s26, 1
    %p65 = por %p63, %p64
    %p66 = scmp.ne.s32.totalorder %s57, %s58
    %p67 = scmp.eq.s32.totalorder %s26, 0
    %p68 = por %p66, %p67
    %p69 = scmp.ne.s32.totalorder %s57, %s58
    %p70 = scmp.eq.s32.totalorder %s27, 1
    %p71 = por %p69, %p70
    %p73 = scmp.ne.s32.totalorder %s58, %s72
    %p74 = scmp.eq.s32.totalorder %s27, 0
    %p75 = por %p73, %p74
    %s77 = sadd.s32 %s76, 1
    %p80 = scmp.eq.s32.totalorder %s21, 1
    %p81 = scmp.ne.s32.totalorder %s76, %s78
    %p82 = scmp.eq.s32.totalorder %s21, 0
    %p83 = por %p81, %p82
    %p84 = scmp.ne.s32.totalorder %s76, %s78
    %p85 = scmp.eq.s32.totalorder %s26, 1
    %p86 = por %p84, %p85
    %p87 = scmp.ne.s32.totalorder %s78, %s79
    %p88 = scmp.eq.s32.totalorder %s26, 0
    %p89 = por %p87, %p88
    %p90 = scmp.ne.s32.totalorder %s78, %s79
    %p91 = scmp.eq.s32.totalorder %s27, 1
    %p92 = por %p90, %p91
    %p94 = scmp.ne.s32.totalorder %s79, %s93
    %p95 = scmp.eq.s32.totalorder %s27, 0
    %p96 = por %p94, %p95
    %s98 = sadd.s32 %s97, 1
    %p101 = scmp.eq.s32.totalorder %s21, 1
    %p102 = scmp.ne.s32.totalorder %s97, %s99
    %p103 = scmp.eq.s32.totalorder %s21, 0
    %p104 = por %p102, %p103
    %p105 = scmp.ne.s32.totalorder %s97, %s99
    %p106 = scmp.eq.s32.totalorder %s26, 1
    %p107 = por %p105, %p106
    %p108 = scmp.ne.s32.totalorder %s99, %s100
    %p109 = scmp.eq.s32.totalorder %s26, 0
    %p110 = por %p108, %p109
    %p111 = scmp.ne.s32.totalorder %s99, %s100
    %p112 = scmp.eq.s32.totalorder %s27, 1
    %p113 = por %p111, %p112
    %p115 = scmp.ne.s32.totalorder %s100, %s114
    %p116 = scmp.eq.s32.totalorder %s27, 0
    %p117 = por %p115, %p116
    %s119 = sadd.s32 %s118, 1
    %p122 = scmp.eq.s32.totalorder %s21, 1
    %p123 = scmp.ne.s32.totalorder %s118, %s120
    %p124 = scmp.eq.s32.totalorder %s21, 0
    %p125 = por %p123, %p124
    %p126 = scmp.ne.s32.totalorder %s118, %s120
    %p127 = scmp.eq.s32.totalorder %s26, 1
    %p128 = por %p126, %p127
    %p129 = scmp.ne.s32.totalorder %s120, %s121
    %p130 = scmp.eq.s32.totalorder %s26, 0
    %p131 = por %p129, %p130
    %p132 = scmp.ne.s32.totalorder %s120, %s121
    %p133 = scmp.eq.s32.totalorder %s27, 1
    %p134 = por %p132, %p133
    %p136 = scmp.ne.s32.totalorder %s121, %s135
    %p137 = scmp.eq.s32.totalorder %s27, 0
    %p138 = por %p136, %p137
    %s140 = sadd.s32 %s139, 1
    %p143 = scmp.eq.s32.totalorder %s21, 1
    %p144 = scmp.ne.s32.totalorder %s139, %s141
    %p145 = scmp.eq.s32.totalorder %s21, 0
    %p146 = por %p144, %p145
    %p147 = scmp.ne.s32.totalorder %s139, %s141
    %p148 = scmp.eq.s32.totalorder %s26, 1
    %p149 = por %p147, %p148
    %p150 = scmp.ne.s32.totalorder %s141, %s142
    %p151 = scmp.eq.s32.totalorder %s26, 0
    %p152 = por %p150, %p151
    %p153 = scmp.ne.s32.totalorder %s141, %s142
    %p154 = scmp.eq.s32.totalorder %s27, 1
    %p155 = por %p153, %p154
    %p157 = scmp.ne.s32.totalorder %s142, %s156
    %p158 = scmp.eq.s32.totalorder %s27, 0
    %p159 = por %p157, %p158
    %s161 = sadd.s32 %s160, 1
    %p164 = scmp.eq.s32.totalorder %s21, 1
    %p165 = scmp.ne.s32.totalorder %s160, %s162
    %p166 = scmp.eq.s32.totalorder %s21, 0
    %p167 = por %p165, %p166
    %p168 = scmp.ne.s32.totalorder %s160, %s162
    %p169 = scmp.eq.s32.totalorder %s26, 1
    %p170 = por %p168, %p169
    %p171 = scmp.ne.s32.totalorder %s162, %s163
    %p172 = scmp.eq.s32.totalorder %s26, 0
    %p173 = por %p171, %p172
    %p174 = scmp.ne.s32.totalorder %s162, %s163
    %p175 = scmp.eq.s32.totalorder %s27, 1
    %p176 = por %p174, %p175
    %p178 = scmp.ne.s32.totalorder %s163, %s177
    %p179 = scmp.eq.s32.totalorder %s27, 0
    %p180 = por %p178, %p179
    %s182 = sadd.s32 %s181, 1
    %p185 = scmp.eq.s32.totalorder %s21, 1
    %p186 = scmp.ne.s32.totalorder %s181, %s183
    %p187 = scmp.eq.s32.totalorder %s21, 0
    %p188 = por %p186, %p187
    %p189 = scmp.ne.s32.totalorder %s181, %s183
    %p190 = scmp.eq.s32.totalorder %s26, 1
    %p191 = por %p189, %p190
    %p192 = scmp.ne.s32.totalorder %s183, %s184
    %p193 = scmp.eq.s32.totalorder %s26, 0
    %p194 = por %p192, %p193
    %p195 = scmp.ne.s32.totalorder %s183, %s184
    %p196 = scmp.eq.s32.totalorder %s27, 1
    %p197 = por %p195, %p196
    %p199 = scmp.ne.s32.totalorder %s184, %s198
    %p200 = scmp.eq.s32.totalorder %s27, 0
    %p201 = por %p199, %p200
    %s203 = sadd.s32 %s202, 1
    %p206 = scmp.eq.s32.totalorder %s21, 1
    %p207 = scmp.ne.s32.totalorder %s202, %s204
    %p208 = scmp.eq.s32.totalorder %s21, 0
    %p209 = por %p207, %p208
    %p210 = scmp.ne.s32.totalorder %s202, %s204
    %p211 = scmp.eq.s32.totalorder %s26, 1
    %p212 = por %p210, %p211
    %p213 = scmp.ne.s32.totalorder %s204, %s205
    %p214 = scmp.eq.s32.totalorder %s26, 0
    %p215 = por %p213, %p214
    %p216 = scmp.ne.s32.totalorder %s204, %s205
    %p217 = scmp.eq.s32.totalorder %s27, 1
    %p218 = por %p216, %p217
    %p220 = scmp.ne.s32.totalorder %s205, %s219
    %p221 = scmp.eq.s32.totalorder %s27, 0
    %p222 = por %p220, %p221
    %s224 = sadd.s32 %s223, 1
    %p227 = scmp.eq.s32.totalorder %s21, 1
    %p228 = scmp.ne.s32.totalorder %s223, %s225
    %p229 = scmp.eq.s32.totalorder %s21, 0
    %p230 = por %p228, %p229
    %p231 = scmp.ne.s32.totalorder %s223, %s225
    %p232 = scmp.eq.s32.totalorder %s26, 1
    %p233 = por %p231, %p232
    %p234 = scmp.ne.s32.totalorder %s225, %s226
    %p235 = scmp.eq.s32.totalorder %s26, 0
    %p236 = por %p234, %p235
    %p237 = scmp.ne.s32.totalorder %s225, %s226
    %p238 = scmp.eq.s32.totalorder %s27, 1
    %p239 = por %p237, %p238
    %p241 = scmp.ne.s32.totalorder %s226, %s240
    %p242 = scmp.eq.s32.totalorder %s27, 0
    %p243 = por %p241, %p242
    %s245 = sadd.s32 %s244, 1
    %p248 = scmp.eq.s32.totalorder %s21, 1
    %p249 = scmp.ne.s32.totalorder %s244, %s246
    %p250 = scmp.eq.s32.totalorder %s21, 0
    %p251 = por %p249, %p250
    %p252 = scmp.ne.s32.totalorder %s244, %s246
    %p253 = scmp.eq.s32.totalorder %s26, 1
    %p254 = por %p252, %p253
    %p255 = scmp.ne.s32.totalorder %s246, %s247
    %p256 = scmp.eq.s32.totalorder %s26, 0
    %p257 = por %p255, %p256
    %p258 = scmp.ne.s32.totalorder %s246, %s247
    %p259 = scmp.eq.s32.totalorder %s27, 1
    %p260 = por %p258, %p259
    %p262 = scmp.ne.s32.totalorder %s247, %s261
    %p263 = scmp.eq.s32.totalorder %s27, 0
    %p264 = por %p262, %p263
    %s266 = sadd.s32 %s265, 1
    %p269 = scmp.eq.s32.totalorder %s21, 1
    %p270 = scmp.ne.s32.totalorder %s265, %s267
    %p271 = scmp.eq.s32.totalorder %s21, 0
    %p272 = por %p270, %p271
    %p273 = scmp.ne.s32.totalorder %s265, %s267
    %p274 = scmp.eq.s32.totalorder %s26, 1
    %p275 = por %p273, %p274
    %p276 = scmp.ne.s32.totalorder %s267, %s268
    %p277 = scmp.eq.s32.totalorder %s26, 0
    %p278 = por %p276, %p277
    %p279 = scmp.ne.s32.totalorder %s267, %s268
    %p280 = scmp.eq.s32.totalorder %s27, 1
    %p281 = por %p279, %p280
    %p283 = scmp.ne.s32.totalorder %s268, %s282
    %p284 = scmp.eq.s32.totalorder %s27, 0
    %p285 = por %p283, %p284
    %s287 = sadd.s32 %s286, 1
    %p290 = scmp.eq.s32.totalorder %s21, 1
    %p291 = scmp.ne.s32.totalorder %s286, %s288
    %p292 = scmp.eq.s32.totalorder %s21, 0
    %p293 = por %p291, %p292
    %p294 = scmp.ne.s32.totalorder %s286, %s288
    %p295 = scmp.eq.s32.totalorder %s26, 1
    %p296 = por %p294, %p295
    %p297 = scmp.ne.s32.totalorder %s288, %s289
    %p298 = scmp.eq.s32.totalorder %s26, 0
    %p299 = por %p297, %p298
    %p300 = scmp.ne.s32.totalorder %s288, %s289
    %p301 = scmp.eq.s32.totalorder %s27, 1
    %p302 = por %p300, %p301
    %p304 = scmp.ne.s32.totalorder %s289, %s303
    %p305 = scmp.eq.s32.totalorder %s27, 0
    %p306 = por %p304, %p305
    %s308 = sadd.s32 %s307, 1
    %p311 = scmp.eq.s32.totalorder %s21, 1
    %p312 = scmp.ne.s32.totalorder %s307, %s309
    %p313 = scmp.eq.s32.totalorder %s21, 0
    %p314 = por %p312, %p313
    %p315 = scmp.ne.s32.totalorder %s307, %s309
    %p316 = scmp.eq.s32.totalorder %s26, 1
    %p317 = por %p315, %p316
    %p318 = scmp.ne.s32.totalorder %s309, %s310
    %p319 = scmp.eq.s32.totalorder %s26, 0
    %p320 = por %p318, %p319
    %p321 = scmp.ne.s32.totalorder %s309, %s310
    %p322 = scmp.eq.s32.totalorder %s27, 1
    %p323 = por %p321, %p322
    %p325 = scmp.ne.s32.totalorder %s310, %s324
    %p326 = scmp.eq.s32.totalorder %s27, 0
    %p327 = por %p325, %p326
    %s329 = sadd.s32 %s328, 1
    %p332 = scmp.eq.s32.totalorder %s21, 1
    %p333 = scmp.ne.s32.totalorder %s328, %s330
    %p334 = scmp.eq.s32.totalorder %s21, 0
    %p335 = por %p333, %p334
    %p336 = scmp.ne.s32.totalorder %s328, %s330
    %p337 = scmp.eq.s32.totalorder %s26, 1
    %p338 = por %p336, %p337
    %p339 = scmp.ne.s32.totalorder %s330, %s331
    %p340 = scmp.eq.s32.totalorder %s26, 0
    %p341 = por %p339, %p340
    %p342 = scmp.ne.s32.totalorder %s330, %s331
    %p343 = scmp.eq.s32.totalorder %s27, 1
    %p344 = por %p342, %p343
    %p346 = scmp.ne.s32.totalorder %s331, %s345
    %p347 = scmp.eq.s32.totalorder %s27, 0
    %p348 = por %p346, %p347
    %s349 = ssub.s32 %s21, %s28
    %p350 = scmp.eq.s32.totalorder %s349, 0
    %s352 = sadd.s32 %s351, 1
    %s353 = scalar_select %p350, %s351, %s352
    %p356 = pneg %p350
    %p357 = scmp.eq.s32.totalorder %s21, 1
    %p358 = por %p356, %p357
    %p359 = scmp.ne.s32.totalorder %s351, %s354
    %p360 = scmp.eq.s32.totalorder %s21, 0
    %p361 = por %p359, %p360
    %p362 = scmp.ne.s32.totalorder %s351, %s354
    %p363 = scmp.eq.s32.totalorder %s26, 1
    %p364 = por %p362, %p363
    %p365 = scmp.ne.s32.totalorder %s354, %s355
    %p366 = scmp.eq.s32.totalorder %s26, 0
    %p367 = por %p365, %p366
    %p368 = scmp.ne.s32.totalorder %s354, %s355
    %p369 = scmp.eq.s32.totalorder %s27, 1
    %p370 = por %p368, %p369
    %p372 = scmp.ne.s32.totalorder %s355, %s371
    %p373 = scmp.eq.s32.totalorder %s27, 0
    %p374 = por %p372, %p373
    %p375 = scmp.le.s32.totalorder 1, %s21
    %p376 = scmp.lt.s32.totalorder %s21, 3
    %p377 = pnand %p375, %p376
    %p378 = pneg %p377
    // Predicated region
    $region9: #{lenet5_forward.1} parent=5 // pred_check
      _
    $region10: #{lenet5_forward.1} parent=5 // pred_check_branch
      %380 = sbr.rel (%p377) target = $region12
    $region11: #{lenet5_forward.1} parent=5 // pred_region
      %s381 = ssub.s32 %s21, 1
      // Predicated region
      $region13: #{lenet5_forward.1} parent=11 // pred_check
        %p382 = pneg %p68
      $region14: #{lenet5_forward.1} parent=11 // pred_check_branch
        %384 = sbr.rel (%p382) target = $region16
      $region15: #{lenet5_forward.1} parent=11 // pred_region
        _
      $region16: #{lenet5_forward.1} parent=11 // pred_fallthru
        _
      // Predicated region
      $region17: #{lenet5_forward.1} parent=11 // pred_check
        %p385 = pneg %p89
      $region18: #{lenet5_forward.1} parent=11 // pred_check_branch
        %387 = sbr.rel (%p385) target = $region20
      $region19: #{lenet5_forward.1} parent=11 // pred_region
        _
      $region20: #{lenet5_forward.1} parent=11 // pred_fallthru
        _
      // Predicated region
      $region21: #{lenet5_forward.1} parent=11 // pred_check
        %p388 = pneg %p110
      $region22: #{lenet5_forward.1} parent=11 // pred_check_branch
        %390 = sbr.rel (%p388) target = $region24
      $region23: #{lenet5_forward.1} parent=11 // pred_region
        _
      $region24: #{lenet5_forward.1} parent=11 // pred_fallthru
        _
      // Predicated region
      $region25: #{lenet5_forward.1} parent=11 // pred_check
        %p391 = pneg %p131
      $region26: #{lenet5_forward.1} parent=11 // pred_check_branch
        %393 = sbr.rel (%p391) target = $region28
      $region27: #{lenet5_forward.1} parent=11 // pred_region
        _
      $region28: #{lenet5_forward.1} parent=11 // pred_fallthru
        _
      // Predicated region
      $region29: #{lenet5_forward.1} parent=11 // pred_check
        %p394 = pneg %p152
      $region30: #{lenet5_forward.1} parent=11 // pred_check_branch
        %396 = sbr.rel (%p394) target = $region32
      $region31: #{lenet5_forward.1} parent=11 // pred_region
        _
      $region32: #{lenet5_forward.1} parent=11 // pred_fallthru
        _
      // Predicated region
      $region33: #{lenet5_forward.1} parent=11 // pred_check
        %p397 = pneg %p173
      $region34: #{lenet5_forward.1} parent=11 // pred_check_branch
        %399 = sbr.rel (%p397) target = $region36
      $region35: #{lenet5_forward.1} parent=11 // pred_region
        _
      $region36: #{lenet5_forward.1} parent=11 // pred_fallthru
        _
      // Predicated region
      $region37: #{lenet5_forward.1} parent=11 // pred_check
        %p400 = pneg %p194
      $region38: #{lenet5_forward.1} parent=11 // pred_check_branch
        %402 = sbr.rel (%p400) target = $region40
      $region39: #{lenet5_forward.1} parent=11 // pred_region
        _
      $region40: #{lenet5_forward.1} parent=11 // pred_fallthru
        _
      // Predicated region
      $region41: #{lenet5_forward.1} parent=11 // pred_check
        %p403 = pneg %p215
      $region42: #{lenet5_forward.1} parent=11 // pred_check_branch
        %405 = sbr.rel (%p403) target = $region44
      $region43: #{lenet5_forward.1} parent=11 // pred_region
        _
      $region44: #{lenet5_forward.1} parent=11 // pred_fallthru
        _
      // Predicated region
      $region45: #{lenet5_forward.1} parent=11 // pred_check
        %p406 = pneg %p236
      $region46: #{lenet5_forward.1} parent=11 // pred_check_branch
        %408 = sbr.rel (%p406) target = $region48
      $region47: #{lenet5_forward.1} parent=11 // pred_region
        _
      $region48: #{lenet5_forward.1} parent=11 // pred_fallthru
        _
      // Predicated region
      $region49: #{lenet5_forward.1} parent=11 // pred_check
        %p409 = pneg %p257
      $region50: #{lenet5_forward.1} parent=11 // pred_check_branch
        %411 = sbr.rel (%p409) target = $region52
      $region51: #{lenet5_forward.1} parent=11 // pred_region
        _
      $region52: #{lenet5_forward.1} parent=11 // pred_fallthru
        _
      // Predicated region
      $region53: #{lenet5_forward.1} parent=11 // pred_check
        %p412 = pneg %p278
      $region54: #{lenet5_forward.1} parent=11 // pred_check_branch
        %414 = sbr.rel (%p412) target = $region56
      $region55: #{lenet5_forward.1} parent=11 // pred_region
        _
      $region56: #{lenet5_forward.1} parent=11 // pred_fallthru
        _
      // Predicated region
      $region57: #{lenet5_forward.1} parent=11 // pred_check
        %p415 = pneg %p299
      $region58: #{lenet5_forward.1} parent=11 // pred_check_branch
        %417 = sbr.rel (%p415) target = $region60
      $region59: #{lenet5_forward.1} parent=11 // pred_region
        _
      $region60: #{lenet5_forward.1} parent=11 // pred_fallthru
        _
      // Predicated region
      $region61: #{lenet5_forward.1} parent=11 // pred_check
        %p418 = pneg %p320
      $region62: #{lenet5_forward.1} parent=11 // pred_check_branch
        %420 = sbr.rel (%p418) target = $region64
      $region63: #{lenet5_forward.1} parent=11 // pred_region
        _
      $region64: #{lenet5_forward.1} parent=11 // pred_fallthru
        _
      // Predicated region
      $region65: #{lenet5_forward.1} parent=11 // pred_check
        %p421 = pneg %p341
      $region66: #{lenet5_forward.1} parent=11 // pred_check_branch
        %423 = sbr.rel (%p421) target = $region68
      $region67: #{lenet5_forward.1} parent=11 // pred_region
        _
      $region68: #{lenet5_forward.1} parent=11 // pred_fallthru
        _
    $region12: #{lenet5_forward.1} parent=5 // pred_fallthru
      _
    %p424 = scmp.lt.s32.totalorder %s21, 2
    // Predicated region
    $region69: #{lenet5_forward.1} parent=5 // pred_check
      %p425 = pneg %p424
    $region70: #{lenet5_forward.1} parent=5 // pred_check_branch
      %427 = sbr.rel (%p425) target = $region72
    $region71: #{lenet5_forward.1} parent=5 // pred_region
      // Predicated region
      $region73: #{lenet5_forward.1} parent=71 // pred_check
        %p428 = pneg %p41
      $region74: #{lenet5_forward.1} parent=71 // pred_check_branch
        %430 = sbr.rel (%p428) target = $region76
      $region75: #{lenet5_forward.1} parent=71 // pred_region
        %p431 = scmp.lt.s32.totalorder %s21, 1
        %s432 = scalar_select %p431, %s21, 1
        %s433 = smul.addr %s432, 128
        %s434 = smul.addr %s433, 8
        %s435 = scalar_lea.vmem %s0, %s434
      $region76: #{lenet5_forward.1} parent=71 // pred_fallthru
        _
    $region72: #{lenet5_forward.1} parent=5 // pred_fallthru
      _
    %p436 = scmp.le.s32.totalorder 1, %s21
    %p437 = scmp.lt.s32.totalorder %s21, 3
    %p438 = pnand %p436, %p437
    %p439 = pneg %p438
    // Predicated region
    $region77: #{lenet5_forward.1} parent=5 // pred_check
      _
    $region78: #{lenet5_forward.1} parent=5 // pred_check_branch
      %441 = sbr.rel (%p438) target = $region80
    $region79: #{lenet5_forward.1} parent=5 // pred_region
      %s442 = ssub.s32 %s21, 1
      %p443 = scmp.lt.s32.totalorder %s26, 1
      %s444 = scalar_select %p443, %s26, 1
      %s445 = smul.addr %s444, 128
      %s446 = smul.addr %s445, 8
      %s447 = scalar_lea.vmem %s0, %s446
      %p448 = pneg %p47
      %p449 = pneg %p44
      %p450 = pneg %p68
      %p451 = pneg %p65
      %p452 = pneg %p89
      %p453 = pneg %p86
      %p454 = pneg %p110
      %p455 = pneg %p107
      %p456 = pneg %p131
      %p457 = pneg %p128
      %p458 = pneg %p152
      %p459 = pneg %p149
      %p460 = pneg %p173
      %p461 = pneg %p170
      %p462 = pneg %p194
      %p463 = pneg %p191
      %p464 = pneg %p215
      %p465 = pneg %p212
      %p466 = pneg %p236
      %p467 = pneg %p233
      %p468 = pneg %p257
      %p469 = pneg %p254
      %p470 = pneg %p278
      %p471 = pneg %p275
      %p472 = pneg %p299
      %p473 = pneg %p296
      %p474 = pneg %p320
      %p475 = pneg %p317
      %p476 = pneg %p341
      %p477 = pneg %p338
      %p478 = pneg %p367
      %p479 = pneg %p364
      %p480 = scmp.lt.s32.totalorder %s26, 1
      %s481 = scalar_select %p480, %s26, 1
      %s482 = smul.addr %s481, 8
      %s483 = scalar_lea.vmem %s15, %s482
      %p484 = scmp.lt.s32.totalorder %s26, 1
      %s485 = scalar_select %p484, %s26, 1
      %s486 = smul.addr %s485, 128
      %s487 = smul.addr %s486, 8
      %s488 = scalar_lea.vmem %s0, %s487
      %p489 = scmp.lt.s32.totalorder %s26, 1
      %s490 = scalar_select %p489, %s26, 1
      %s491 = smul.addr %s490, 8
      %s492 = scalar_lea.vmem %s15, %s491
      %v493 = vld [vmem:[%s2] sm:$0x1]
      loop: start=0, step=1, limit=30
      $region81: #{lenet5_forward.1} parent=79 // loop_pre_header
        _
      $region82: #{lenet5_forward.1} parent=79 // loop_header
        %s495 = sphi 0, %s499
        %p496 = scmp.ge.s32.totalorder %s495, 30
      $region83: #{lenet5_forward.1} parent=79 // loop_header_branch
        %498 = sbr.rel (%p496) target = $region87
      $region84: #{lenet5_forward.1} parent=79 // loop_body
        %s500 = smul.u32 %s495, 32
        %s501 = scalar_lea.vmem %s488, %s500
        %v502 = vld [vmem:[%s501] sm:$0xff]
        %v503 = vld [vmem:[%s501 + $0x8] sm:$0xff]
        %v504 = vld [vmem:[%s501 + $0x10] sm:$0xff]
        %v505 = vld [vmem:[%s501 + $0x18] sm:$0x3f]
        %v506 = vld [vmem:[%s1] sm:$0xff]
        %v507 = vld [vmem:[%s1 + $0x8] sm:$0xff]
        %v508 = vld [vmem:[%s1 + $0x10] sm:$0xff]
        %v509 = vld [vmem:[%s1 + $0x18] sm:$0xff]
        %v510 = vld [vmem:[%s1 + $0x20] sm:$0xff]
        %v511 = vld [vmem:[%s1 + $0x28] sm:$0xff]
        %v512 = vld [vmem:[%s1 + $0x30] sm:$0xff]
        %v513 = vld [vmem:[%s1 + $0x38] sm:$0xff]
        %v514 = vld [vmem:[%s1 + $0x40] sm:$0xff]
        %v515 = vld [vmem:[%s1 + $0x48] sm:$0xff]
        %v516 = vld [vmem:[%s1 + $0x50] sm:$0xff]
        %v517 = vld [vmem:[%s1 + $0x58] sm:$0xff]
        %v518 = vld [vmem:[%s1 + $0x60] sm:$0xff]
        %v519 = vld [vmem:[%s1 + $0x68] sm:$0xff]
        %v520 = vld [vmem:[%s1 + $0x70] sm:$0xff]
        %v521 = vld [vmem:[%s1 + $0x78] sm:$0xff]
        %s522 = sadd.s32 %s500, 1
        %s523 = scalar_lea.vmem %s488, %s522
        %v524 = vld [vmem:[%s523] sm:$0xff]
        %v525 = vld [vmem:[%s523 + $0x8] sm:$0xff]
        %v526 = vld [vmem:[%s523 + $0x10] sm:$0xff]
        %v527 = vld [vmem:[%s523 + $0x18] sm:$0x3f]
        %s528 = scalar_lea.vmem %s1, 128
        %v529 = vld [vmem:[%s528] sm:$0xff]
        %v530 = vld [vmem:[%s528 + $0x8] sm:$0xff]
        %v531 = vld [vmem:[%s528 + $0x10] sm:$0xff]
        %v532 = vld [vmem:[%s528 + $0x18] sm:$0xff]
        %v533 = vld [vmem:[%s528 + $0x20] sm:$0xff]
        %v534 = vld [vmem:[%s528 + $0x28] sm:$0xff]
        %v535 = vld [vmem:[%s528 + $0x30] sm:$0xff]
        %v536 = vld [vmem:[%s528 + $0x38] sm:$0xff]
        %v537 = vld [vmem:[%s528 + $0x40] sm:$0xff]
        %v538 = vld [vmem:[%s528 + $0x48] sm:$0xff]
        %v539 = vld [vmem:[%s528 + $0x50] sm:$0xff]
        %v540 = vld [vmem:[%s528 + $0x58] sm:$0xff]
        %v541 = vld [vmem:[%s528 + $0x60] sm:$0xff]
        %v542 = vld [vmem:[%s528 + $0x68] sm:$0xff]
        %v543 = vld [vmem:[%s528 + $0x70] sm:$0xff]
        %v544 = vld [vmem:[%s528 + $0x78] sm:$0xff]
        %545 = vmatprep.subr.mxu0 0.0
        %546 = vmatpush1.msra.mxu0 %v544
        %547 = vmatprep.subr.mxu0 0.0
        %548 = vmatpush1.msra.mxu0 %v543
        %549 = vmatprep.subr.mxu0 0.0
        %550 = vmatpush1.msra.mxu0 %v542
        %551 = vmatprep.subr.mxu0 0.0
        %552 = vmatpush1.msra.mxu0 %v541
        %553 = vmatprep.subr.mxu0 0.0
        %554 = vmatpush1.msra.mxu0 %v540
        %555 = vmatprep.subr.mxu0 0.0
        %556 = vmatpush1.msra.mxu0 %v539
        %557 = vmatprep.subr.mxu0 0.0
        %558 = vmatpush1.msra.mxu0 %v538
        %559 = vmatprep.subr.mxu0 0.0
        %560 = vmatpush1.msra.mxu0 %v537
        %561 = vmatprep.subr.mxu0 0.0
        %562 = vmatpush1.msra.mxu0 %v536
        %563 = vmatprep.subr.mxu0 0.0
        %564 = vmatpush1.msra.mxu0 %v535
        %565 = vmatprep.subr.mxu0 0.0
        %566 = vmatpush1.msra.mxu0 %v534
        %567 = vmatprep.subr.mxu0 0.0
        %568 = vmatpush1.msra.mxu0 %v533
        %569 = vmatprep.subr.mxu0 0.0
        %570 = vmatpush1.msra.mxu0 %v532
        %571 = vmatprep.subr.mxu0 0.0
        %572 = vmatpush1.msra.mxu0 %v531
        %573 = vmatprep.subr.mxu0 0.0
        %574 = vmatpush1.msra.mxu0 %v530
        %575 = vmatprep.subr.mxu0 0.0
        %576 = vmatpush1.msra.mxu0 %v529
        %577 = vmatprep.subr.mxu0 0.0
        %578 = vmatpush2.msra.mxu0 0.0
        %579 = vmatprep.subr.mxu0 0.0
        %580 = vmatpush2.msra.mxu0 0.0
        %581 = vmatprep.subr.mxu0 0.0
        %582 = vmatpush2.msra.mxu0 0.0
        %583 = vmatprep.subr.mxu0 0.0
        %584 = vmatpush2.msra.mxu0 0.0
        %585 = vmatprep.subr.mxu0 0.0
        %586 = vmatpush2.msra.mxu0 0.0
        %587 = vmatprep.subr.mxu0 0.0
        %588 = vmatpush2.msra.mxu0 0.0
        %589 = vmatprep.subr.mxu0 0.0
        %590 = vmatpush2.msra.mxu0 0.0
        %591 = vmatprep.subr.mxu0 0.0
        %592 = vmatpush2.msra.mxu0 0.0
        %593 = vmatprep.subr.mxu0 0.0
        %594 = vmatpush2.msra.mxu0 0.0
        %595 = vmatprep.subr.mxu0 0.0
        %596 = vmatpush2.msra.mxu0 0.0
        %597 = vmatprep.subr.mxu0 0.0
        %598 = vmatpush2.msra.mxu0 0.0
        %599 = vmatprep.subr.mxu0 0.0
        %600 = vmatpush2.msra.mxu0 0.0
        %601 = vmatprep.subr.mxu0 0.0
        %602 = vmatpush2.msra.mxu0 0.0
        %603 = vmatprep.subr.mxu0 0.0
        %604 = vmatpush2.msra.mxu0 0.0
        %605 = vmatprep.subr.mxu0 0.0
        %606 = vmatpush2.msra.mxu0 0.0
        %607 = vmatprep.subr.mxu0 0.0
        %608 = vmatpush2.msra.mxu0 0.0
        %609 = vmatprep.mubr.f32.mxu0 0.0
        %610 = vmatmul.mubr.f32.gmra.mxu0 %v524
        %v611 = vpop.f32.mrf.mxu0
        %v612 = vadd.f32 0.0, %v611
        %v613 = vpop.f32.mrf.mxu0
        %614 = vmatprep.mubr.f32.mxu0 0.0
        %615 = vmatmul.mubr.f32.gmra.mxu0 %v525
        %v616 = vpop.f32.mrf.mxu0
        %v617 = vadd.f32 0.0, %v616
        %v618 = vpop.f32.mrf.mxu0
        %619 = vmatprep.mubr.f32.mxu0 0.0
        %620 = vmatmul.mubr.f32.gmra.mxu0 %v526
        %v621 = vpop.f32.mrf.mxu0
        %v622 = vadd.f32 0.0, %v621
        %v623 = vpop.f32.mrf.mxu0
        %624 = vmatprep.mubr.f32.mxu0 0.0
        %625 = vmatmul.mubr.f32.gmra.mxu0 %v527
        %v626 = vpop.f32.mrf.mxu0
        %v627 = vadd.f32 0.0, %v626
        %v628 = vpop.f32.mrf.mxu0
        %629 = vdwg.mxu0
        %630 = vmatprep.subr.mxu0 0.0
        %631 = vmatpush1.msra.mxu0 %v521
        %632 = vmatprep.subr.mxu0 0.0
        %633 = vmatpush1.msra.mxu0 %v520
        %634 = vmatprep.subr.mxu0 0.0
        %635 = vmatpush1.msra.mxu0 %v519
        %636 = vmatprep.subr.mxu0 0.0
        %637 = vmatpush1.msra.mxu0 %v518
        %638 = vmatprep.subr.mxu0 0.0
        %639 = vmatpush1.msra.mxu0 %v517
        %640 = vmatprep.subr.mxu0 0.0
        %641 = vmatpush1.msra.mxu0 %v516
        %642 = vmatprep.subr.mxu0 0.0
        %643 = vmatpush1.msra.mxu0 %v515
        %644 = vmatprep.subr.mxu0 0.0
        %645 = vmatpush1.msra.mxu0 %v514
        %646 = vmatprep.subr.mxu0 0.0
        %647 = vmatpush1.msra.mxu0 %v513
        %648 = vmatprep.subr.mxu0 0.0
        %649 = vmatpush1.msra.mxu0 %v512
        %650 = vmatprep.subr.mxu0 0.0
        %651 = vmatpush1.msra.mxu0 %v511
        %652 = vmatprep.subr.mxu0 0.0
        %653 = vmatpush1.msra.mxu0 %v510
        %654 = vmatprep.subr.mxu0 0.0
        %655 = vmatpush1.msra.mxu0 %v509
        %656 = vmatprep.subr.mxu0 0.0
        %657 = vmatpush1.msra.mxu0 %v508
        %658 = vmatprep.subr.mxu0 0.0
        %659 = vmatpush1.msra.mxu0 %v507
        %660 = vmatprep.subr.mxu0 0.0
        %661 = vmatpush1.msra.mxu0 %v506
        %662 = vmatprep.subr.mxu0 0.0
        %663 = vmatpush2.msra.mxu0 0.0
        %664 = vmatprep.subr.mxu0 0.0
        %665 = vmatpush2.msra.mxu0 0.0
        %666 = vmatprep.subr.mxu0 0.0
        %667 = vmatpush2.msra.mxu0 0.0
        %668 = vmatprep.subr.mxu0 0.0
        %669 = vmatpush2.msra.mxu0 0.0
        %670 = vmatprep.subr.mxu0 0.0
        %671 = vmatpush2.msra.mxu0 0.0
        %672 = vmatprep.subr.mxu0 0.0
        %673 = vmatpush2.msra.mxu0 0.0
        %674 = vmatprep.subr.mxu0 0.0
        %675 = vmatpush2.msra.mxu0 0.0
        %676 = vmatprep.subr.mxu0 0.0
        %677 = vmatpush2.msra.mxu0 0.0
        %678 = vmatprep.subr.mxu0 0.0
        %679 = vmatpush2.msra.mxu0 0.0
        %680 = vmatprep.subr.mxu0 0.0
        %681 = vmatpush2.msra.mxu0 0.0
        %682 = vmatprep.subr.mxu0 0.0
        %683 = vmatpush2.msra.mxu0 0.0
        %684 = vmatprep.subr.mxu0 0.0
        %685 = vmatpush2.msra.mxu0 0.0
        %686 = vmatprep.subr.mxu0 0.0
        %687 = vmatpush2.msra.mxu0 0.0
        %688 = vmatprep.subr.mxu0 0.0
        %689 = vmatpush2.msra.mxu0 0.0
        %690 = vmatprep.subr.mxu0 0.0
        %691 = vmatpush2.msra.mxu0 0.0
        %692 = vmatprep.subr.mxu0 0.0
        %693 = vmatpush2.msra.mxu0 0.0
        %694 = vmatprep.mubr.f32.mxu0 0.0
        %695 = vmatmul.mubr.f32.gmra.mxu0 %v502
        %v696 = vpop.f32.mrf.mxu0
        %v697 = vadd.f32 %v612, %v696
        %v698 = vpop.f32.mrf.mxu0
        %699 = vmatprep.mubr.f32.mxu0 0.0
        %700 = vmatmul.mubr.f32.gmra.mxu0 %v503
        %v701 = vpop.f32.mrf.mxu0
        %v702 = vadd.f32 %v617, %v701
        %v703 = vpop.f32.mrf.mxu0
        %704 = vmatprep.mubr.f32.mxu0 0.0
        %705 = vmatmul.mubr.f32.gmra.mxu0 %v504
        %v706 = vpop.f32.mrf.mxu0
        %v707 = vadd.f32 %v622, %v706
        %v708 = vpop.f32.mrf.mxu0
        %709 = vmatprep.mubr.f32.mxu0 0.0
        %710 = vmatmul.mubr.f32.gmra.mxu0 %v505
        %v711 = vpop.f32.mrf.mxu0
        %v712 = vadd.f32 %v627, %v711
        %v713 = vpop.f32.mrf.mxu0
        %714 = vdwg.mxu0
        %s715 = sadd.s32 %s500, 2
        %s716 = scalar_lea.vmem %s488, %s715
        %v717 = vld [vmem:[%s716] sm:$0xff]
        %v718 = vld [vmem:[%s716 + $0x8] sm:$0xff]
        %v719 = vld [vmem:[%s716 + $0x10] sm:$0xff]
        %v720 = vld [vmem:[%s716 + $0x18] sm:$0x3f]
        %s721 = scalar_lea.vmem %s1, 256
        %v722 = vld [vmem:[%s721] sm:$0xff]
        %v723 = vld [vmem:[%s721 + $0x8] sm:$0xff]
        %v724 = vld [vmem:[%s721 + $0x10] sm:$0xff]
        %v725 = vld [vmem:[%s721 + $0x18] sm:$0xff]
        %v726 = vld [vmem:[%s721 + $0x20] sm:$0xff]
        %v727 = vld [vmem:[%s721 + $0x28] sm:$0xff]
        %v728 = vld [vmem:[%s721 + $0x30] sm:$0xff]
        %v729 = vld [vmem:[%s721 + $0x38] sm:$0xff]
        %v730 = vld [vmem:[%s721 + $0x40] sm:$0xff]
        %v731 = vld [vmem:[%s721 + $0x48] sm:$0xff]
        %v732 = vld [vmem:[%s721 + $0x50] sm:$0xff]
        %v733 = vld [vmem:[%s721 + $0x58] sm:$0xff]
        %v734 = vld [vmem:[%s721 + $0x60] sm:$0xff]
        %v735 = vld [vmem:[%s721 + $0x68] sm:$0xff]
        %v736 = vld [vmem:[%s721 + $0x70] sm:$0xff]
        %v737 = vld [vmem:[%s721 + $0x78] sm:$0xff]
        %738 = vmatprep.subr.mxu0 0.0
        %739 = vmatpush1.msra.mxu0 %v737
        %740 = vmatprep.subr.mxu0 0.0
        %741 = vmatpush1.msra.mxu0 %v736
        %742 = vmatprep.subr.mxu0 0.0
        %743 = vmatpush1.msra.mxu0 %v735
        %744 = vmatprep.subr.mxu0 0.0
        %745 = vmatpush1.msra.mxu0 %v734
        %746 = vmatprep.subr.mxu0 0.0
        %747 = vmatpush1.msra.mxu0 %v733
        %748 = vmatprep.subr.mxu0 0.0
        %749 = vmatpush1.msra.mxu0 %v732
        %750 = vmatprep.subr.mxu0 0.0
        %751 = vmatpush1.msra.mxu0 %v731
        %752 = vmatprep.subr.mxu0 0.0
        %753 = vmatpush1.msra.mxu0 %v730
        %754 = vmatprep.subr.mxu0 0.0
        %755 = vmatpush1.msra.mxu0 %v729
        %756 = vmatprep.subr.mxu0 0.0
        %757 = vmatpush1.msra.mxu0 %v728
        %758 = vmatprep.subr.mxu0 0.0
        %759 = vmatpush1.msra.mxu0 %v727
        %760 = vmatprep.subr.mxu0 0.0
        %761 = vmatpush1.msra.mxu0 %v726
        %762 = vmatprep.subr.mxu0 0.0
        %763 = vmatpush1.msra.mxu0 %v725
        %764 = vmatprep.subr.mxu0 0.0
        %765 = vmatpush1.msra.mxu0 %v724
        %766 = vmatprep.subr.mxu0 0.0
        %767 = vmatpush1.msra.mxu0 %v723
        %768 = vmatprep.subr.mxu0 0.0
        %769 = vmatpush1.msra.mxu0 %v722
        %770 = vmatprep.subr.mxu0 0.0
        %771 = vmatpush2.msra.mxu0 0.0
        %772 = vmatprep.subr.mxu0 0.0
        %773 = vmatpush2.msra.mxu0 0.0
        %774 = vmatprep.subr.mxu0 0.0
        %775 = vmatpush2.msra.mxu0 0.0
        %776 = vmatprep.subr.mxu0 0.0
        %777 = vmatpush2.msra.mxu0 0.0
        %778 = vmatprep.subr.mxu0 0.0
        %779 = vmatpush2.msra.mxu0 0.0
        %780 = vmatprep.subr.mxu0 0.0
        %781 = vmatpush2.msra.mxu0 0.0
        %782 = vmatprep.subr.mxu0 0.0
        %783 = vmatpush2.msra.mxu0 0.0
        %784 = vmatprep.subr.mxu0 0.0
        %785 = vmatpush2.msra.mxu0 0.0
        %786 = vmatprep.subr.mxu0 0.0
        %787 = vmatpush2.msra.mxu0 0.0
        %788 = vmatprep.subr.mxu0 0.0
        %789 = vmatpush2.msra.mxu0 0.0
        %790 = vmatprep.subr.mxu0 0.0
        %791 = vmatpush2.msra.mxu0 0.0
        %792 = vmatprep.subr.mxu0 0.0
        %793 = vmatpush2.msra.mxu0 0.0
        %794 = vmatprep.subr.mxu0 0.0
        %795 = vmatpush2.msra.mxu0 0.0
        %796 = vmatprep.subr.mxu0 0.0
        %797 = vmatpush2.msra.mxu0 0.0
        %798 = vmatprep.subr.mxu0 0.0
        %799 = vmatpush2.msra.mxu0 0.0
        %800 = vmatprep.subr.mxu0 0.0
        %801 = vmatpush2.msra.mxu0 0.0
        %802 = vmatprep.mubr.f32.mxu0 0.0
        %803 = vmatmul.mubr.f32.gmra.mxu0 %v717
        %v804 = vpop.f32.mrf.mxu0
        %v805 = vadd.f32 0.0, %v804
        %v806 = vpop.f32.mrf.mxu0
        %807 = vmatprep.mubr.f32.mxu0 0.0
        %808 = vmatmul.mubr.f32.gmra.mxu0 %v718
        %v809 = vpop.f32.mrf.mxu0
        %v810 = vadd.f32 0.0, %v809
        %v811 = vpop.f32.mrf.mxu0
        %812 = vmatprep.mubr.f32.mxu0 0.0
        %813 = vmatmul.mubr.f32.gmra.mxu0 %v719
        %v814 = vpop.f32.mrf.mxu0
        %v815 = vadd.f32 0.0, %v814
        %v816 = vpop.f32.mrf.mxu0
        %817 = vmatprep.mubr.f32.mxu0 0.0
        %818 = vmatmul.mubr.f32.gmra.mxu0 %v720
        %v819 = vpop.f32.mrf.mxu0
        %v820 = vadd.f32 0.0, %v819
        %v821 = vpop.f32.mrf.mxu0
        %822 = vdwg.mxu0
        %v823 = vadd.f32 %v697, %v805
        %v824 = vadd.f32 %v702, %v810
        %v825 = vadd.f32 %v707, %v815
        %v826 = vadd.f32 %v712, %v820
        %s827 = sadd.s32 %s495, 1
        %s828 = smul.u32 %s827, 32
        %s829 = scalar_lea.vmem %s488, %s828
        %v830 = vld [vmem:[%s829] sm:$0xff]
        %v831 = vld [vmem:[%s829 + $0x8] sm:$0xff]
        %v832 = vld [vmem:[%s829 + $0x10] sm:$0xff]
        %v833 = vld [vmem:[%s829 + $0x18] sm:$0x3f]
        %s834 = scalar_lea.vmem %s1, 384
        %v835 = vld [vmem:[%s834] sm:$0xff]
        %v836 = vld [vmem:[%s834 + $0x8] sm:$0xff]
        %v837 = vld [vmem:[%s834 + $0x10] sm:$0xff]
        %v838 = vld [vmem:[%s834 + $0x18] sm:$0xff]
        %v839 = vld [vmem:[%s834 + $0x20] sm:$0xff]
        %v840 = vld [vmem:[%s834 + $0x28] sm:$0xff]
        %v841 = vld [vmem:[%s834 + $0x30] sm:$0xff]
        %v842 = vld [vmem:[%s834 + $0x38] sm:$0xff]
        %v843 = vld [vmem:[%s834 + $0x40] sm:$0xff]
        %v844 = vld [vmem:[%s834 + $0x48] sm:$0xff]
        %v845 = vld [vmem:[%s834 + $0x50] sm:$0xff]
        %v846 = vld [vmem:[%s834 + $0x58] sm:$0xff]
        %v847 = vld [vmem:[%s834 + $0x60] sm:$0xff]
        %v848 = vld [vmem:[%s834 + $0x68] sm:$0xff]
        %v849 = vld [vmem:[%s834 + $0x70] sm:$0xff]
        %v850 = vld [vmem:[%s834 + $0x78] sm:$0xff]
        %851 = vmatprep.subr.mxu0 0.0
        %852 = vmatpush1.msra.mxu0 %v850
        %853 = vmatprep.subr.mxu0 0.0
        %854 = vmatpush1.msra.mxu0 %v849
        %855 = vmatprep.subr.mxu0 0.0
        %856 = vmatpush1.msra.mxu0 %v848
        %857 = vmatprep.subr.mxu0 0.0
        %858 = vmatpush1.msra.mxu0 %v847
        %859 = vmatprep.subr.mxu0 0.0
        %860 = vmatpush1.msra.mxu0 %v846
        %861 = vmatprep.subr.mxu0 0.0
        %862 = vmatpush1.msra.mxu0 %v845
        %863 = vmatprep.subr.mxu0 0.0
        %864 = vmatpush1.msra.mxu0 %v844
        %865 = vmatprep.subr.mxu0 0.0
        %866 = vmatpush1.msra.mxu0 %v843
        %867 = vmatprep.subr.mxu0 0.0
        %868 = vmatpush1.msra.mxu0 %v842
        %869 = vmatprep.subr.mxu0 0.0
        %870 = vmatpush1.msra.mxu0 %v841
        %871 = vmatprep.subr.mxu0 0.0
        %872 = vmatpush1.msra.mxu0 %v840
        %873 = vmatprep.subr.mxu0 0.0
        %874 = vmatpush1.msra.mxu0 %v839
        %875 = vmatprep.subr.mxu0 0.0
        %876 = vmatpush1.msra.mxu0 %v838
        %877 = vmatprep.subr.mxu0 0.0
        %878 = vmatpush1.msra.mxu0 %v837
        %879 = vmatprep.subr.mxu0 0.0
        %880 = vmatpush1.msra.mxu0 %v836
        %881 = vmatprep.subr.mxu0 0.0
        %882 = vmatpush1.msra.mxu0 %v835
        %883 = vmatprep.subr.mxu0 0.0
        %884 = vmatpush2.msra.mxu0 0.0
        %885 = vmatprep.subr.mxu0 0.0
        %886 = vmatpush2.msra.mxu0 0.0
        %887 = vmatprep.subr.mxu0 0.0
        %888 = vmatpush2.msra.mxu0 0.0
        %889 = vmatprep.subr.mxu0 0.0
        %890 = vmatpush2.msra.mxu0 0.0
        %891 = vmatprep.subr.mxu0 0.0
        %892 = vmatpush2.msra.mxu0 0.0
        %893 = vmatprep.subr.mxu0 0.0
        %894 = vmatpush2.msra.mxu0 0.0
        %895 = vmatprep.subr.mxu0 0.0
        %896 = vmatpush2.msra.mxu0 0.0
        %897 = vmatprep.subr.mxu0 0.0
        %898 = vmatpush2.msra.mxu0 0.0
        %899 = vmatprep.subr.mxu0 0.0
        %900 = vmatpush2.msra.mxu0 0.0
        %901 = vmatprep.subr.mxu0 0.0
        %902 = vmatpush2.msra.mxu0 0.0
        %903 = vmatprep.subr.mxu0 0.0
        %904 = vmatpush2.msra.mxu0 0.0
        %905 = vmatprep.subr.mxu0 0.0
        %906 = vmatpush2.msra.mxu0 0.0
        %907 = vmatprep.subr.mxu0 0.0
        %908 = vmatpush2.msra.mxu0 0.0
        %909 = vmatprep.subr.mxu0 0.0
        %910 = vmatpush2.msra.mxu0 0.0
        %911 = vmatprep.subr.mxu0 0.0
        %912 = vmatpush2.msra.mxu0 0.0
        %913 = vmatprep.subr.mxu0 0.0
        %914 = vmatpush2.msra.mxu0 0.0
        %915 = vmatprep.mubr.f32.mxu0 0.0
        %916 = vmatmul.mubr.f32.gmra.mxu0 %v830
        %v917 = vpop.f32.mrf.mxu0
        %v918 = vadd.f32 0.0, %v917
        %v919 = vpop.f32.mrf.mxu0
        %920 = vmatprep.mubr.f32.mxu0 0.0
        %921 = vmatmul.mubr.f32.gmra.mxu0 %v831
        %v922 = vpop.f32.mrf.mxu0
        %v923 = vadd.f32 0.0, %v922
        %v924 = vpop.f32.mrf.mxu0
        %925 = vmatprep.mubr.f32.mxu0 0.0
        %926 = vmatmul.mubr.f32.gmra.mxu0 %v832
        %v927 = vpop.f32.mrf.mxu0
        %v928 = vadd.f32 0.0, %v927
        %v929 = vpop.f32.mrf.mxu0
        %930 = vmatprep.mubr.f32.mxu0 0.0
        %931 = vmatmul.mubr.f32.gmra.mxu0 %v833
        %v932 = vpop.f32.mrf.mxu0
        %v933 = vadd.f32 0.0, %v932
        %v934 = vpop.f32.mrf.mxu0
        %935 = vdwg.mxu0
        %v936 = vadd.f32 %v823, %v918
        %v937 = vadd.f32 %v824, %v923
        %v938 = vadd.f32 %v825, %v928
        %v939 = vadd.f32 %v826, %v933
        %s940 = sadd.s32 %s828, 1
        %s941 = scalar_lea.vmem %s488, %s940
        %v942 = vld [vmem:[%s941] sm:$0xff]
        %v943 = vld [vmem:[%s941 + $0x8] sm:$0xff]
        %v944 = vld [vmem:[%s941 + $0x10] sm:$0xff]
        %v945 = vld [vmem:[%s941 + $0x18] sm:$0x3f]
        %s946 = scalar_lea.vmem %s1, 512
        %v947 = vld [vmem:[%s946] sm:$0xff]
        %v948 = vld [vmem:[%s946 + $0x8] sm:$0xff]
        %v949 = vld [vmem:[%s946 + $0x10] sm:$0xff]
        %v950 = vld [vmem:[%s946 + $0x18] sm:$0xff]
        %v951 = vld [vmem:[%s946 + $0x20] sm:$0xff]
        %v952 = vld [vmem:[%s946 + $0x28] sm:$0xff]
        %v953 = vld [vmem:[%s946 + $0x30] sm:$0xff]
        %v954 = vld [vmem:[%s946 + $0x38] sm:$0xff]
        %v955 = vld [vmem:[%s946 + $0x40] sm:$0xff]
        %v956 = vld [vmem:[%s946 + $0x48] sm:$0xff]
        %v957 = vld [vmem:[%s946 + $0x50] sm:$0xff]
        %v958 = vld [vmem:[%s946 + $0x58] sm:$0xff]
        %v959 = vld [vmem:[%s946 + $0x60] sm:$0xff]
        %v960 = vld [vmem:[%s946 + $0x68] sm:$0xff]
        %v961 = vld [vmem:[%s946 + $0x70] sm:$0xff]
        %v962 = vld [vmem:[%s946 + $0x78] sm:$0xff]
        %963 = vmatprep.subr.mxu0 0.0
        %964 = vmatpush1.msra.mxu0 %v962
        %965 = vmatprep.subr.mxu0 0.0
        %966 = vmatpush1.msra.mxu0 %v961
        %967 = vmatprep.subr.mxu0 0.0
        %968 = vmatpush1.msra.mxu0 %v960
        %969 = vmatprep.subr.mxu0 0.0
        %970 = vmatpush1.msra.mxu0 %v959
        %971 = vmatprep.subr.mxu0 0.0
        %972 = vmatpush1.msra.mxu0 %v958
        %973 = vmatprep.subr.mxu0 0.0
        %974 = vmatpush1.msra.mxu0 %v957
        %975 = vmatprep.subr.mxu0 0.0
        %976 = vmatpush1.msra.mxu0 %v956
        %977 = vmatprep.subr.mxu0 0.0
        %978 = vmatpush1.msra.mxu0 %v955
        %979 = vmatprep.subr.mxu0 0.0
        %980 = vmatpush1.msra.mxu0 %v954
        %981 = vmatprep.subr.mxu0 0.0
        %982 = vmatpush1.msra.mxu0 %v953
        %983 = vmatprep.subr.mxu0 0.0
        %984 = vmatpush1.msra.mxu0 %v952
        %985 = vmatprep.subr.mxu0 0.0
        %986 = vmatpush1.msra.mxu0 %v951
        %987 = vmatprep.subr.mxu0 0.0
        %988 = vmatpush1.msra.mxu0 %v950
        %989 = vmatprep.subr.mxu0 0.0
        %990 = vmatpush1.msra.mxu0 %v949
        %991 = vmatprep.subr.mxu0 0.0
        %992 = vmatpush1.msra.mxu0 %v948
        %993 = vmatprep.subr.mxu0 0.0
        %994 = vmatpush1.msra.mxu0 %v947
        %995 = vmatprep.subr.mxu0 0.0
        %996 = vmatpush2.msra.mxu0 0.0
        %997 = vmatprep.subr.mxu0 0.0
        %998 = vmatpush2.msra.mxu0 0.0
        %999 = vmatprep.subr.mxu0 0.0
        %1000 = vmatpush2.msra.mxu0 0.0
        %1001 = vmatprep.subr.mxu0 0.0
        %1002 = vmatpush2.msra.mxu0 0.0
        %1003 = vmatprep.subr.mxu0 0.0
        %1004 = vmatpush2.msra.mxu0 0.0
        %1005 = vmatprep.subr.mxu0 0.0
        %1006 = vmatpush2.msra.mxu0 0.0
        %1007 = vmatprep.subr.mxu0 0.0
        %1008 = vmatpush2.msra.mxu0 0.0
        %1009 = vmatprep.subr.mxu0 0.0
        %1010 = vmatpush2.msra.mxu0 0.0
        %1011 = vmatprep.subr.mxu0 0.0
        %1012 = vmatpush2.msra.mxu0 0.0
        %1013 = vmatprep.subr.mxu0 0.0
        %1014 = vmatpush2.msra.mxu0 0.0
        %1015 = vmatprep.subr.mxu0 0.0
        %1016 = vmatpush2.msra.mxu0 0.0
        %1017 = vmatprep.subr.mxu0 0.0
        %1018 = vmatpush2.msra.mxu0 0.0
        %1019 = vmatprep.subr.mxu0 0.0
        %1020 = vmatpush2.msra.mxu0 0.0
        %1021 = vmatprep.subr.mxu0 0.0
        %1022 = vmatpush2.msra.mxu0 0.0
        %1023 = vmatprep.subr.mxu0 0.0
        %1024 = vmatpush2.msra.mxu0 0.0
        %1025 = vmatprep.subr.mxu0 0.0
        %1026 = vmatpush2.msra.mxu0 0.0
        %1027 = vmatprep.mubr.f32.mxu0 0.0
        %1028 = vmatmul.mubr.f32.gmra.mxu0 %v942
        %v1029 = vpop.f32.mrf.mxu0
        %v1030 = vadd.f32 0.0, %v1029
        %v1031 = vpop.f32.mrf.mxu0
        %1032 = vmatprep.mubr.f32.mxu0 0.0
        %1033 = vmatmul.mubr.f32.gmra.mxu0 %v943
        %v1034 = vpop.f32.mrf.mxu0
        %v1035 = vadd.f32 0.0, %v1034
        %v1036 = vpop.f32.mrf.mxu0
        %1037 = vmatprep.mubr.f32.mxu0 0.0
        %1038 = vmatmul.mubr.f32.gmra.mxu0 %v944
        %v1039 = vpop.f32.mrf.mxu0
        %v1040 = vadd.f32 0.0, %v1039
        %v1041 = vpop.f32.mrf.mxu0
        %1042 = vmatprep.mubr.f32.mxu0 0.0
        %1043 = vmatmul.mubr.f32.gmra.mxu0 %v945
        %v1044 = vpop.f32.mrf.mxu0
        %v1045 = vadd.f32 0.0, %v1044
        %v1046 = vpop.f32.mrf.mxu0
        %1047 = vdwg.mxu0
        %v1048 = vadd.f32 %v936, %v1030
        %v1049 = vadd.f32 %v937, %v1035
        %v1050 = vadd.f32 %v938, %v1040
        %v1051 = vadd.f32 %v939, %v1045
        %s1052 = sadd.s32 %s828, 2
        %s1053 = scalar_lea.vmem %s488, %s1052
        %v1054 = vld [vmem:[%s1053] sm:$0xff]
        %v1055 = vld [vmem:[%s1053 + $0x8] sm:$0xff]
        %v1056 = vld [vmem:[%s1053 + $0x10] sm:$0xff]
        %v1057 = vld [vmem:[%s1053 + $0x18] sm:$0x3f]
        %s1058 = scalar_lea.vmem %s1, 640
        %v1059 = vld [vmem:[%s1058] sm:$0xff]
        %v1060 = vld [vmem:[%s1058 + $0x8] sm:$0xff]
        %v1061 = vld [vmem:[%s1058 + $0x10] sm:$0xff]
        %v1062 = vld [vmem:[%s1058 + $0x18] sm:$0xff]
        %v1063 = vld [vmem:[%s1058 + $0x20] sm:$0xff]
        %v1064 = vld [vmem:[%s1058 + $0x28] sm:$0xff]
        %v1065 = vld [vmem:[%s1058 + $0x30] sm:$0xff]
        %v1066 = vld [vmem:[%s1058 + $0x38] sm:$0xff]
        %v1067 = vld [vmem:[%s1058 + $0x40] sm:$0xff]
        %v1068 = vld [vmem:[%s1058 + $0x48] sm:$0xff]
        %v1069 = vld [vmem:[%s1058 + $0x50] sm:$0xff]
        %v1070 = vld [vmem:[%s1058 + $0x58] sm:$0xff]
        %v1071 = vld [vmem:[%s1058 + $0x60] sm:$0xff]
        %v1072 = vld [vmem:[%s1058 + $0x68] sm:$0xff]
        %v1073 = vld [vmem:[%s1058 + $0x70] sm:$0xff]
        %v1074 = vld [vmem:[%s1058 + $0x78] sm:$0xff]
        %1075 = vmatprep.subr.mxu0 0.0
        %1076 = vmatpush1.msra.mxu0 %v1074
        %1077 = vmatprep.subr.mxu0 0.0
        %1078 = vmatpush1.msra.mxu0 %v1073
        %1079 = vmatprep.subr.mxu0 0.0
        %1080 = vmatpush1.msra.mxu0 %v1072
        %1081 = vmatprep.subr.mxu0 0.0
        %1082 = vmatpush1.msra.mxu0 %v1071
        %1083 = vmatprep.subr.mxu0 0.0
        %1084 = vmatpush1.msra.mxu0 %v1070
        %1085 = vmatprep.subr.mxu0 0.0
        %1086 = vmatpush1.msra.mxu0 %v1069
        %1087 = vmatprep.subr.mxu0 0.0
        %1088 = vmatpush1.msra.mxu0 %v1068
        %1089 = vmatprep.subr.mxu0 0.0
        %1090 = vmatpush1.msra.mxu0 %v1067
        %1091 = vmatprep.subr.mxu0 0.0
        %1092 = vmatpush1.msra.mxu0 %v1066
        %1093 = vmatprep.subr.mxu0 0.0
        %1094 = vmatpush1.msra.mxu0 %v1065
        %1095 = vmatprep.subr.mxu0 0.0
        %1096 = vmatpush1.msra.mxu0 %v1064
        %1097 = vmatprep.subr.mxu0 0.0
        %1098 = vmatpush1.msra.mxu0 %v1063
        %1099 = vmatprep.subr.mxu0 0.0
        %1100 = vmatpush1.msra.mxu0 %v1062
        %1101 = vmatprep.subr.mxu0 0.0
        %1102 = vmatpush1.msra.mxu0 %v1061
        %1103 = vmatprep.subr.mxu0 0.0
        %1104 = vmatpush1.msra.mxu0 %v1060
        %1105 = vmatprep.subr.mxu0 0.0
        %1106 = vmatpush1.msra.mxu0 %v1059
        %1107 = vmatprep.subr.mxu0 0.0
        %1108 = vmatpush2.msra.mxu0 0.0
        %1109 = vmatprep.subr.mxu0 0.0
        %1110 = vmatpush2.msra.mxu0 0.0
        %1111 = vmatprep.subr.mxu0 0.0
        %1112 = vmatpush2.msra.mxu0 0.0
        %1113 = vmatprep.subr.mxu0 0.0
        %1114 = vmatpush2.msra.mxu0 0.0
        %1115 = vmatprep.subr.mxu0 0.0
        %1116 = vmatpush2.msra.mxu0 0.0
        %1117 = vmatprep.subr.mxu0 0.0
        %1118 = vmatpush2.msra.mxu0 0.0
        %1119 = vmatprep.subr.mxu0 0.0
        %1120 = vmatpush2.msra.mxu0 0.0
        %1121 = vmatprep.subr.mxu0 0.0
        %1122 = vmatpush2.msra.mxu0 0.0
        %1123 = vmatprep.subr.mxu0 0.0
        %1124 = vmatpush2.msra.mxu0 0.0
        %1125 = vmatprep.subr.mxu0 0.0
        %1126 = vmatpush2.msra.mxu0 0.0
        %1127 = vmatprep.subr.mxu0 0.0
        %1128 = vmatpush2.msra.mxu0 0.0
        %1129 = vmatprep.subr.mxu0 0.0
        %1130 = vmatpush2.msra.mxu0 0.0
        %1131 = vmatprep.subr.mxu0 0.0
        %1132 = vmatpush2.msra.mxu0 0.0
        %1133 = vmatprep.subr.mxu0 0.0
        %1134 = vmatpush2.msra.mxu0 0.0
        %1135 = vmatprep.subr.mxu0 0.0
        %1136 = vmatpush2.msra.mxu0 0.0
        %1137 = vmatprep.subr.mxu0 0.0
        %1138 = vmatpush2.msra.mxu0 0.0
        %1139 = vmatprep.mubr.f32.mxu0 0.0
        %1140 = vmatmul.mubr.f32.gmra.mxu0 %v1054
        %v1141 = vpop.f32.mrf.mxu0
        %v1142 = vadd.f32 0.0, %v1141
        %v1143 = vpop.f32.mrf.mxu0
        %1144 = vmatprep.mubr.f32.mxu0 0.0
        %1145 = vmatmul.mubr.f32.gmra.mxu0 %v1055
        %v1146 = vpop.f32.mrf.mxu0
        %v1147 = vadd.f32 0.0, %v1146
        %v1148 = vpop.f32.mrf.mxu0
        %1149 = vmatprep.mubr.f32.mxu0 0.0
        %1150 = vmatmul.mubr.f32.gmra.mxu0 %v1056
        %v1151 = vpop.f32.mrf.mxu0
        %v1152 = vadd.f32 0.0, %v1151
        %v1153 = vpop.f32.mrf.mxu0
        %1154 = vmatprep.mubr.f32.mxu0 0.0
        %1155 = vmatmul.mubr.f32.gmra.mxu0 %v1057
        %v1156 = vpop.f32.mrf.mxu0
        %v1157 = vadd.f32 0.0, %v1156
        %v1158 = vpop.f32.mrf.mxu0
        %1159 = vdwg.mxu0
        %v1160 = vadd.f32 %v1048, %v1142
        %v1161 = vadd.f32 %v1049, %v1147
        %v1162 = vadd.f32 %v1050, %v1152
        %v1163 = vadd.f32 %v1051, %v1157
        %s1164 = sadd.s32 %s495, 2
        %s1165 = smul.u32 %s1164, 32
        %s1166 = scalar_lea.vmem %s488, %s1165
        %v1167 = vld [vmem:[%s1166] sm:$0xff]
        %v1168 = vld [vmem:[%s1166 + $0x8] sm:$0xff]
        %v1169 = vld [vmem:[%s1166 + $0x10] sm:$0xff]
        %v1170 = vld [vmem:[%s1166 + $0x18] sm:$0x3f]
        %s1171 = scalar_lea.vmem %s1, 768
        %v1172 = vld [vmem:[%s1171] sm:$0xff]
        %v1173 = vld [vmem:[%s1171 + $0x8] sm:$0xff]
        %v1174 = vld [vmem:[%s1171 + $0x10] sm:$0xff]
        %v1175 = vld [vmem:[%s1171 + $0x18] sm:$0xff]
        %v1176 = vld [vmem:[%s1171 + $0x20] sm:$0xff]
        %v1177 = vld [vmem:[%s1171 + $0x28] sm:$0xff]
        %v1178 = vld [vmem:[%s1171 + $0x30] sm:$0xff]
        %v1179 = vld [vmem:[%s1171 + $0x38] sm:$0xff]
        %v1180 = vld [vmem:[%s1171 + $0x40] sm:$0xff]
        %v1181 = vld [vmem:[%s1171 + $0x48] sm:$0xff]
        %v1182 = vld [vmem:[%s1171 + $0x50] sm:$0xff]
        %v1183 = vld [vmem:[%s1171 + $0x58] sm:$0xff]
        %v1184 = vld [vmem:[%s1171 + $0x60] sm:$0xff]
        %v1185 = vld [vmem:[%s1171 + $0x68] sm:$0xff]
        %v1186 = vld [vmem:[%s1171 + $0x70] sm:$0xff]
        %v1187 = vld [vmem:[%s1171 + $0x78] sm:$0xff]
        %1188 = vmatprep.subr.mxu0 0.0
        %1189 = vmatpush1.msra.mxu0 %v1187
        %1190 = vmatprep.subr.mxu0 0.0
        %1191 = vmatpush1.msra.mxu0 %v1186
        %1192 = vmatprep.subr.mxu0 0.0
        %1193 = vmatpush1.msra.mxu0 %v1185
        %1194 = vmatprep.subr.mxu0 0.0
        %1195 = vmatpush1.msra.mxu0 %v1184
        %1196 = vmatprep.subr.mxu0 0.0
        %1197 = vmatpush1.msra.mxu0 %v1183
        %1198 = vmatprep.subr.mxu0 0.0
        %1199 = vmatpush1.msra.mxu0 %v1182
        %1200 = vmatprep.subr.mxu0 0.0
        %1201 = vmatpush1.msra.mxu0 %v1181
        %1202 = vmatprep.subr.mxu0 0.0
        %1203 = vmatpush1.msra.mxu0 %v1180
        %1204 = vmatprep.subr.mxu0 0.0
        %1205 = vmatpush1.msra.mxu0 %v1179
        %1206 = vmatprep.subr.mxu0 0.0
        %1207 = vmatpush1.msra.mxu0 %v1178
        %1208 = vmatprep.subr.mxu0 0.0
        %1209 = vmatpush1.msra.mxu0 %v1177
        %1210 = vmatprep.subr.mxu0 0.0
        %1211 = vmatpush1.msra.mxu0 %v1176
        %1212 = vmatprep.subr.mxu0 0.0
        %1213 = vmatpush1.msra.mxu0 %v1175
        %1214 = vmatprep.subr.mxu0 0.0
        %1215 = vmatpush1.msra.mxu0 %v1174
        %1216 = vmatprep.subr.mxu0 0.0
        %1217 = vmatpush1.msra.mxu0 %v1173
        %1218 = vmatprep.subr.mxu0 0.0
        %1219 = vmatpush1.msra.mxu0 %v1172
        %1220 = vmatprep.subr.mxu0 0.0
        %1221 = vmatpush2.msra.mxu0 0.0
        %1222 = vmatprep.subr.mxu0 0.0
        %1223 = vmatpush2.msra.mxu0 0.0
        %1224 = vmatprep.subr.mxu0 0.0
        %1225 = vmatpush2.msra.mxu0 0.0
        %1226 = vmatprep.subr.mxu0 0.0
        %1227 = vmatpush2.msra.mxu0 0.0
        %1228 = vmatprep.subr.mxu0 0.0
        %1229 = vmatpush2.msra.mxu0 0.0
        %1230 = vmatprep.subr.mxu0 0.0
        %1231 = vmatpush2.msra.mxu0 0.0
        %1232 = vmatprep.subr.mxu0 0.0
        %1233 = vmatpush2.msra.mxu0 0.0
        %1234 = vmatprep.subr.mxu0 0.0
        %1235 = vmatpush2.msra.mxu0 0.0
        %1236 = vmatprep.subr.mxu0 0.0
        %1237 = vmatpush2.msra.mxu0 0.0
        %1238 = vmatprep.subr.mxu0 0.0
        %1239 = vmatpush2.msra.mxu0 0.0
        %1240 = vmatprep.subr.mxu0 0.0
        %1241 = vmatpush2.msra.mxu0 0.0
        %1242 = vmatprep.subr.mxu0 0.0
        %1243 = vmatpush2.msra.mxu0 0.0
        %1244 = vmatprep.subr.mxu0 0.0
        %1245 = vmatpush2.msra.mxu0 0.0
        %1246 = vmatprep.subr.mxu0 0.0
        %1247 = vmatpush2.msra.mxu0 0.0
        %1248 = vmatprep.subr.mxu0 0.0
        %1249 = vmatpush2.msra.mxu0 0.0
        %1250 = vmatprep.subr.mxu0 0.0
        %1251 = vmatpush2.msra.mxu0 0.0
        %1252 = vmatprep.mubr.f32.mxu0 0.0
        %1253 = vmatmul.mubr.f32.gmra.mxu0 %v1167
        %v1254 = vpop.f32.mrf.mxu0
        %v1255 = vadd.f32 0.0, %v1254
        %v1256 = vpop.f32.mrf.mxu0
        %1257 = vmatprep.mubr.f32.mxu0 0.0
        %1258 = vmatmul.mubr.f32.gmra.mxu0 %v1168
        %v1259 = vpop.f32.mrf.mxu0
        %v1260 = vadd.f32 0.0, %v1259
        %v1261 = vpop.f32.mrf.mxu0
        %1262 = vmatprep.mubr.f32.mxu0 0.0
        %1263 = vmatmul.mubr.f32.gmra.mxu0 %v1169
        %v1264 = vpop.f32.mrf.mxu0
        %v1265 = vadd.f32 0.0, %v1264
        %v1266 = vpop.f32.mrf.mxu0
        %1267 = vmatprep.mubr.f32.mxu0 0.0
        %1268 = vmatmul.mubr.f32.gmra.mxu0 %v1170
        %v1269 = vpop.f32.mrf.mxu0
        %v1270 = vadd.f32 0.0, %v1269
        %v1271 = vpop.f32.mrf.mxu0
        %1272 = vdwg.mxu0
        %v1273 = vadd.f32 %v1160, %v1255
        %v1274 = vadd.f32 %v1161, %v1260
        %v1275 = vadd.f32 %v1162, %v1265
        %v1276 = vadd.f32 %v1163, %v1270
        %s1277 = sadd.s32 %s1165, 1
        %s1278 = scalar_lea.vmem %s488, %s1277
        %v1279 = vld [vmem:[%s1278] sm:$0xff]
        %v1280 = vld [vmem:[%s1278 + $0x8] sm:$0xff]
        %v1281 = vld [vmem:[%s1278 + $0x10] sm:$0xff]
        %v1282 = vld [vmem:[%s1278 + $0x18] sm:$0x3f]
        %s1283 = scalar_lea.vmem %s1, 896
        %v1284 = vld [vmem:[%s1283] sm:$0xff]
        %v1285 = vld [vmem:[%s1283 + $0x8] sm:$0xff]
        %v1286 = vld [vmem:[%s1283 + $0x10] sm:$0xff]
        %v1287 = vld [vmem:[%s1283 + $0x18] sm:$0xff]
        %v1288 = vld [vmem:[%s1283 + $0x20] sm:$0xff]
        %v1289 = vld [vmem:[%s1283 + $0x28] sm:$0xff]
        %v1290 = vld [vmem:[%s1283 + $0x30] sm:$0xff]
        %v1291 = vld [vmem:[%s1283 + $0x38] sm:$0xff]
        %v1292 = vld [vmem:[%s1283 + $0x40] sm:$0xff]
        %v1293 = vld [vmem:[%s1283 + $0x48] sm:$0xff]
        %v1294 = vld [vmem:[%s1283 + $0x50] sm:$0xff]
        %v1295 = vld [vmem:[%s1283 + $0x58] sm:$0xff]
        %v1296 = vld [vmem:[%s1283 + $0x60] sm:$0xff]
        %v1297 = vld [vmem:[%s1283 + $0x68] sm:$0xff]
        %v1298 = vld [vmem:[%s1283 + $0x70] sm:$0xff]
        %v1299 = vld [vmem:[%s1283 + $0x78] sm:$0xff]
        %1300 = vmatprep.subr.mxu0 0.0
        %1301 = vmatpush1.msra.mxu0 %v1299
        %1302 = vmatprep.subr.mxu0 0.0
        %1303 = vmatpush1.msra.mxu0 %v1298
        %1304 = vmatprep.subr.mxu0 0.0
        %1305 = vmatpush1.msra.mxu0 %v1297
        %1306 = vmatprep.subr.mxu0 0.0
        %1307 = vmatpush1.msra.mxu0 %v1296
        %1308 = vmatprep.subr.mxu0 0.0
        %1309 = vmatpush1.msra.mxu0 %v1295
        %1310 = vmatprep.subr.mxu0 0.0
        %1311 = vmatpush1.msra.mxu0 %v1294
        %1312 = vmatprep.subr.mxu0 0.0
        %1313 = vmatpush1.msra.mxu0 %v1293
        %1314 = vmatprep.subr.mxu0 0.0
        %1315 = vmatpush1.msra.mxu0 %v1292
        %1316 = vmatprep.subr.mxu0 0.0
        %1317 = vmatpush1.msra.mxu0 %v1291
        %1318 = vmatprep.subr.mxu0 0.0
        %1319 = vmatpush1.msra.mxu0 %v1290
        %1320 = vmatprep.subr.mxu0 0.0
        %1321 = vmatpush1.msra.mxu0 %v1289
        %1322 = vmatprep.subr.mxu0 0.0
        %1323 = vmatpush1.msra.mxu0 %v1288
        %1324 = vmatprep.subr.mxu0 0.0
        %1325 = vmatpush1.msra.mxu0 %v1287
        %1326 = vmatprep.subr.mxu0 0.0
        %1327 = vmatpush1.msra.mxu0 %v1286
        %1328 = vmatprep.subr.mxu0 0.0
        %1329 = vmatpush1.msra.mxu0 %v1285
        %1330 = vmatprep.subr.mxu0 0.0
        %1331 = vmatpush1.msra.mxu0 %v1284
        %1332 = vmatprep.subr.mxu0 0.0
        %1333 = vmatpush2.msra.mxu0 0.0
        %1334 = vmatprep.subr.mxu0 0.0
        %1335 = vmatpush2.msra.mxu0 0.0
        %1336 = vmatprep.subr.mxu0 0.0
        %1337 = vmatpush2.msra.mxu0 0.0
        %1338 = vmatprep.subr.mxu0 0.0
        %1339 = vmatpush2.msra.mxu0 0.0
        %1340 = vmatprep.subr.mxu0 0.0
        %1341 = vmatpush2.msra.mxu0 0.0
        %1342 = vmatprep.subr.mxu0 0.0
        %1343 = vmatpush2.msra.mxu0 0.0
        %1344 = vmatprep.subr.mxu0 0.0
        %1345 = vmatpush2.msra.mxu0 0.0
        %1346 = vmatprep.subr.mxu0 0.0
        %1347 = vmatpush2.msra.mxu0 0.0
        %1348 = vmatprep.subr.mxu0 0.0
        %1349 = vmatpush2.msra.mxu0 0.0
        %1350 = vmatprep.subr.mxu0 0.0
        %1351 = vmatpush2.msra.mxu0 0.0
        %1352 = vmatprep.subr.mxu0 0.0
        %1353 = vmatpush2.msra.mxu0 0.0
        %1354 = vmatprep.subr.mxu0 0.0
        %1355 = vmatpush2.msra.mxu0 0.0
        %1356 = vmatprep.subr.mxu0 0.0
        %1357 = vmatpush2.msra.mxu0 0.0
        %1358 = vmatprep.subr.mxu0 0.0
        %1359 = vmatpush2.msra.mxu0 0.0
        %1360 = vmatprep.subr.mxu0 0.0
        %1361 = vmatpush2.msra.mxu0 0.0
        %1362 = vmatprep.subr.mxu0 0.0
        %1363 = vmatpush2.msra.mxu0 0.0
        %1364 = vmatprep.mubr.f32.mxu0 0.0
        %1365 = vmatmul.mubr.f32.gmra.mxu0 %v1279
        %v1366 = vpop.f32.mrf.mxu0
        %v1367 = vadd.f32 0.0, %v1366
        %v1368 = vpop.f32.mrf.mxu0
        %1369 = vmatprep.mubr.f32.mxu0 0.0
        %1370 = vmatmul.mubr.f32.gmra.mxu0 %v1280
        %v1371 = vpop.f32.mrf.mxu0
        %v1372 = vadd.f32 0.0, %v1371
        %v1373 = vpop.f32.mrf.mxu0
        %1374 = vmatprep.mubr.f32.mxu0 0.0
        %1375 = vmatmul.mubr.f32.gmra.mxu0 %v1281
        %v1376 = vpop.f32.mrf.mxu0
        %v1377 = vadd.f32 0.0, %v1376
        %v1378 = vpop.f32.mrf.mxu0
        %1379 = vmatprep.mubr.f32.mxu0 0.0
        %1380 = vmatmul.mubr.f32.gmra.mxu0 %v1282
        %v1381 = vpop.f32.mrf.mxu0
        %v1382 = vadd.f32 0.0, %v1381
        %v1383 = vpop.f32.mrf.mxu0
        %1384 = vdwg.mxu0
        %v1385 = vadd.f32 %v1273, %v1367
        %v1386 = vadd.f32 %v1274, %v1372
        %v1387 = vadd.f32 %v1275, %v1377
        %v1388 = vadd.f32 %v1276, %v1382
        %s1389 = sadd.s32 %s1165, 2
        %s1390 = scalar_lea.vmem %s488, %s1389
        %v1391 = vld [vmem:[%s1390] sm:$0xff]
        %v1392 = vld [vmem:[%s1390 + $0x8] sm:$0xff]
        %v1393 = vld [vmem:[%s1390 + $0x10] sm:$0xff]
        %v1394 = vld [vmem:[%s1390 + $0x18] sm:$0x3f]
        %s1395 = scalar_lea.vmem %s1, 1024
        %v1396 = vld [vmem:[%s1395] sm:$0xff]
        %v1397 = vld [vmem:[%s1395 + $0x8] sm:$0xff]
        %v1398 = vld [vmem:[%s1395 + $0x10] sm:$0xff]
        %v1399 = vld [vmem:[%s1395 + $0x18] sm:$0xff]
        %v1400 = vld [vmem:[%s1395 + $0x20] sm:$0xff]
        %v1401 = vld [vmem:[%s1395 + $0x28] sm:$0xff]
        %v1402 = vld [vmem:[%s1395 + $0x30] sm:$0xff]
        %v1403 = vld [vmem:[%s1395 + $0x38] sm:$0xff]
        %v1404 = vld [vmem:[%s1395 + $0x40] sm:$0xff]
        %v1405 = vld [vmem:[%s1395 + $0x48] sm:$0xff]
        %v1406 = vld [vmem:[%s1395 + $0x50] sm:$0xff]
        %v1407 = vld [vmem:[%s1395 + $0x58] sm:$0xff]
        %v1408 = vld [vmem:[%s1395 + $0x60] sm:$0xff]
        %v1409 = vld [vmem:[%s1395 + $0x68] sm:$0xff]
        %v1410 = vld [vmem:[%s1395 + $0x70] sm:$0xff]
        %v1411 = vld [vmem:[%s1395 + $0x78] sm:$0xff]
        %1412 = vmatprep.subr.mxu0 0.0
        %1413 = vmatpush1.msra.mxu0 %v1411
        %1414 = vmatprep.subr.mxu0 0.0
        %1415 = vmatpush1.msra.mxu0 %v1410
        %1416 = vmatprep.subr.mxu0 0.0
        %1417 = vmatpush1.msra.mxu0 %v1409
        %1418 = vmatprep.subr.mxu0 0.0
        %1419 = vmatpush1.msra.mxu0 %v1408
        %1420 = vmatprep.subr.mxu0 0.0
        %1421 = vmatpush1.msra.mxu0 %v1407
        %1422 = vmatprep.subr.mxu0 0.0
        %1423 = vmatpush1.msra.mxu0 %v1406
        %1424 = vmatprep.subr.mxu0 0.0
        %1425 = vmatpush1.msra.mxu0 %v1405
        %1426 = vmatprep.subr.mxu0 0.0
        %1427 = vmatpush1.msra.mxu0 %v1404
        %1428 = vmatprep.subr.mxu0 0.0
        %1429 = vmatpush1.msra.mxu0 %v1403
        %1430 = vmatprep.subr.mxu0 0.0
        %1431 = vmatpush1.msra.mxu0 %v1402
        %1432 = vmatprep.subr.mxu0 0.0
        %1433 = vmatpush1.msra.mxu0 %v1401
        %1434 = vmatprep.subr.mxu0 0.0
        %1435 = vmatpush1.msra.mxu0 %v1400
        %1436 = vmatprep.subr.mxu0 0.0
        %1437 = vmatpush1.msra.mxu0 %v1399
        %1438 = vmatprep.subr.mxu0 0.0
        %1439 = vmatpush1.msra.mxu0 %v1398
        %1440 = vmatprep.subr.mxu0 0.0
        %1441 = vmatpush1.msra.mxu0 %v1397
        %1442 = vmatprep.subr.mxu0 0.0
        %1443 = vmatpush1.msra.mxu0 %v1396
        %1444 = vmatprep.subr.mxu0 0.0
        %1445 = vmatpush2.msra.mxu0 0.0
        %1446 = vmatprep.subr.mxu0 0.0
        %1447 = vmatpush2.msra.mxu0 0.0
        %1448 = vmatprep.subr.mxu0 0.0
        %1449 = vmatpush2.msra.mxu0 0.0
        %1450 = vmatprep.subr.mxu0 0.0
        %1451 = vmatpush2.msra.mxu0 0.0
        %1452 = vmatprep.subr.mxu0 0.0
        %1453 = vmatpush2.msra.mxu0 0.0
        %1454 = vmatprep.subr.mxu0 0.0
        %1455 = vmatpush2.msra.mxu0 0.0
        %1456 = vmatprep.subr.mxu0 0.0
        %1457 = vmatpush2.msra.mxu0 0.0
        %1458 = vmatprep.subr.mxu0 0.0
        %1459 = vmatpush2.msra.mxu0 0.0
        %1460 = vmatprep.subr.mxu0 0.0
        %1461 = vmatpush2.msra.mxu0 0.0
        %1462 = vmatprep.subr.mxu0 0.0
        %1463 = vmatpush2.msra.mxu0 0.0
        %1464 = vmatprep.subr.mxu0 0.0
        %1465 = vmatpush2.msra.mxu0 0.0
        %1466 = vmatprep.subr.mxu0 0.0
        %1467 = vmatpush2.msra.mxu0 0.0
        %1468 = vmatprep.subr.mxu0 0.0
        %1469 = vmatpush2.msra.mxu0 0.0
        %1470 = vmatprep.subr.mxu0 0.0
        %1471 = vmatpush2.msra.mxu0 0.0
        %1472 = vmatprep.subr.mxu0 0.0
        %1473 = vmatpush2.msra.mxu0 0.0
        %1474 = vmatprep.subr.mxu0 0.0
        %1475 = vmatpush2.msra.mxu0 0.0
        %1476 = vmatprep.mubr.f32.mxu0 0.0
        %1477 = vmatmul.mubr.f32.gmra.mxu0 %v1391
        %v1478 = vpop.f32.mrf.mxu0
        %v1479 = vadd.f32 0.0, %v1478
        %v1480 = vpop.f32.mrf.mxu0
        %1481 = vmatprep.mubr.f32.mxu0 0.0
        %1482 = vmatmul.mubr.f32.gmra.mxu0 %v1392
        %v1483 = vpop.f32.mrf.mxu0
        %v1484 = vadd.f32 0.0, %v1483
        %v1485 = vpop.f32.mrf.mxu0
        %1486 = vmatprep.mubr.f32.mxu0 0.0
        %1487 = vmatmul.mubr.f32.gmra.mxu0 %v1393
        %v1488 = vpop.f32.mrf.mxu0
        %v1489 = vadd.f32 0.0, %v1488
        %v1490 = vpop.f32.mrf.mxu0
        %1491 = vmatprep.mubr.f32.mxu0 0.0
        %1492 = vmatmul.mubr.f32.gmra.mxu0 %v1394
        %v1493 = vpop.f32.mrf.mxu0
        %v1494 = vadd.f32 0.0, %v1493
        %v1495 = vpop.f32.mrf.mxu0
        %1496 = vdwg.mxu0
        %v1497 = vadd.f32 %v1385, %v1479
        %v1498 = vadd.f32 %v1386, %v1484
        %v1499 = vadd.f32 %v1387, %v1489
        %v1500 = vadd.f32 %v1388, %v1494
        %v1502 = vlaneseq
        %v1503 = vshrl.u32 %v1502, 7
        %v1504 = vsub.s32 0, %v1503
        %v1505 = vrot.slane %v493, %v1504
        %v1507 = vadd.f32 %v1497, %v1505
        %v1508 = vadd.f32 %v1498, %v1505
        %v1509 = vadd.f32 %v1499, %v1505
        %v1510 = vadd.f32 %v1500, %v1505
        %v1511 = vmax.f32 %v1507, 0.0
        %v1512 = vmax.f32 %v1508, 0.0
        %v1513 = vmax.f32 %v1509, 0.0
        %v1514 = vmax.f32 %v1510, 0.0
        %s1515 = smul.u32 %s495, 30
        %s1516 = scalar_lea.vmem [#allocation2], %s1515
        %1517 = vst [vmem:[%s1516] sm:$0xff] %v1511
        %1518 = vst [vmem:[%s1516 + $0x8] sm:$0xff] %v1512
        %1519 = vst [vmem:[%s1516 + $0x10] sm:$0xff] %v1513
        %1520 = vst [vmem:[%s1516 + $0x18] sm:$0x3f] %v1514
      $region85: #{lenet5_forward.1} parent=79 // loop_footer
        %s499 = sadd.s32 1, %s495
      $region86: #{lenet5_forward.1} parent=79 // loop_footer_branch
        %494 = sbr.rel target = $region82
      $region87: #{lenet5_forward.1} parent=79 // loop_exit
        _
      %v1521 = vld [vmem:[#allocation2] ss:$2 sm:$0xff]
      %s1522 = scalar_lea.vmem [#allocation2], 16
      %v1523 = vld [vmem:[%s1522] ss:$2 sm:$0x7f]
      %s1524 = scalar_lea.vmem [#allocation2], 1
      %v1525 = vld [vmem:[%s1524] ss:$2 sm:$0xff]
      %s1526 = scalar_lea.vmem [#allocation2], 17
      %v1527 = vld [vmem:[%s1526] ss:$2 sm:$0x7f]
      %s1528 = scalar_lea.vmem [#allocation2], 30
      %v1529 = vld [vmem:[%s1528] ss:$2 sm:$0xff]
      %s1530 = scalar_lea.vmem [#allocation2], 46
      %v1531 = vld [vmem:[%s1530] ss:$2 sm:$0x7f]
      %s1532 = scalar_lea.vmem [#allocation2], 31
      %v1533 = vld [vmem:[%s1532] ss:$2 sm:$0xff]
      %s1534 = scalar_lea.vmem [#allocation2], 47
      %v1535 = vld [vmem:[%s1534] ss:$2 sm:$0x7f]
      %v1536 = vmax.f32 %v1521, %v1525
      %v1537 = vmax.f32 %v1523, %v1527
      %v1538 = vmax.f32 %v1529, %v1533
      %v1539 = vmax.f32 %v1531, %v1535
      %v1540 = vmax.f32 %v1536, %v1538
      %v1541 = vmax.f32 %v1537, %v1539
      %1542 = vst [vmem:[#allocation3] sm:$0xff] %v1540
      %1543 = vst [vmem:[#allocation3 + $0x8] sm:$0x7f] %v1541
      %s1544 = scalar_lea.vmem [#allocation2], 60
      %v1545 = vld [vmem:[%s1544] ss:$2 sm:$0xff]
      %s1546 = scalar_lea.vmem [#allocation2], 76
      %v1547 = vld [vmem:[%s1546] ss:$2 sm:$0x7f]
      %s1548 = scalar_lea.vmem [#allocation2], 61
      %v1549 = vld [vmem:[%s1548] ss:$2 sm:$0xff]
      %s1550 = scalar_lea.vmem [#allocation2], 77
      %v1551 = vld [vmem:[%s1550] ss:$2 sm:$0x7f]
      %s1552 = scalar_lea.vmem [#allocation2], 90
      %v1553 = vld [vmem:[%s1552] ss:$2 sm:$0xff]
      %s1554 = scalar_lea.vmem [#allocation2], 106
      %v1555 = vld [vmem:[%s1554] ss:$2 sm:$0x7f]
      %s1556 = scalar_lea.vmem [#allocation2], 91
      %v1557 = vld [vmem:[%s1556] ss:$2 sm:$0xff]
      %s1558 = scalar_lea.vmem [#allocation2], 107
      %v1559 = vld [vmem:[%s1558] ss:$2 sm:$0x7f]
      %v1560 = vmax.f32 %v1545, %v1549
      %v1561 = vmax.f32 %v1547, %v1551
      %v1562 = vmax.f32 %v1553, %v1557
      %v1563 = vmax.f32 %v1555, %v1559
      %v1564 = vmax.f32 %v1560, %v1562
      %v1565 = vmax.f32 %v1561, %v1563
      %1566 = vst [vmem:[#allocation3 + $0xf] sm:$0xff] %v1564
      %1567 = vst [vmem:[#allocation3 + $0x17] sm:$0x7f] %v1565
      %s1568 = scalar_lea.vmem [#allocation2], 120
      %v1569 = vld [vmem:[%s1568] ss:$2 sm:$0xff]
      %s1570 = scalar_lea.vmem [#allocation2], 136
      %v1571 = vld [vmem:[%s1570] ss:$2 sm:$0x7f]
      %s1572 = scalar_lea.vmem [#allocation2], 121
      %v1573 = vld [vmem:[%s1572] ss:$2 sm:$0xff]
      %s1574 = scalar_lea.vmem [#allocation2], 137
      %v1575 = vld [vmem:[%s1574] ss:$2 sm:$0x7f]
      %s1576 = scalar_lea.vmem [#allocation2], 150
      %v1577 = vld [vmem:[%s1576] ss:$2 sm:$0xff]
      %s1578 = scalar_lea.vmem [#allocation2], 166
      %v1579 = vld [vmem:[%s1578] ss:$2 sm:$0x7f]
      %s1580 = scalar_lea.vmem [#allocation2], 151
      %v1581 = vld [vmem:[%s1580] ss:$2 sm:$0xff]
      %s1582 = scalar_lea.vmem [#allocation2], 167
      %v1583 = vld [vmem:[%s1582] ss:$2 sm:$0x7f]
      %v1584 = vmax.f32 %v1569, %v1573
      %v1585 = vmax.f32 %v1571, %v1575
      %v1586 = vmax.f32 %v1577, %v1581
      %v1587 = vmax.f32 %v1579, %v1583
      %v1588 = vmax.f32 %v1584, %v1586
      %v1589 = vmax.f32 %v1585, %v1587
      %1590 = vst [vmem:[#allocation3 + $0x1e] sm:$0xff] %v1588
      %1591 = vst [vmem:[#allocation3 + $0x26] sm:$0x7f] %v1589
      %s1592 = scalar_lea.vmem [#allocation2], 180
      %v1593 = vld [vmem:[%s1592] ss:$2 sm:$0xff]
      %s1594 = scalar_lea.vmem [#allocation2], 196
      %v1595 = vld [vmem:[%s1594] ss:$2 sm:$0x7f]
      %s1596 = scalar_lea.vmem [#allocation2], 181
      %v1597 = vld [vmem:[%s1596] ss:$2 sm:$0xff]
      %s1598 = scalar_lea.vmem [#allocation2], 197
      %v1599 = vld [vmem:[%s1598] ss:$2 sm:$0x7f]
      %s1600 = scalar_lea.vmem [#allocation2], 210
      %v1601 = vld [vmem:[%s1600] ss:$2 sm:$0xff]
      %s1602 = scalar_lea.vmem [#allocation2], 226
      %v1603 = vld [vmem:[%s1602] ss:$2 sm:$0x7f]
      %s1604 = scalar_lea.vmem [#allocation2], 211
      %v1605 = vld [vmem:[%s1604] ss:$2 sm:$0xff]
      %s1606 = scalar_lea.vmem [#allocation2], 227
      %v1607 = vld [vmem:[%s1606] ss:$2 sm:$0x7f]
      %v1608 = vmax.f32 %v1593, %v1597
      %v1609 = vmax.f32 %v1595, %v1599
      %v1610 = vmax.f32 %v1601, %v1605
      %v1611 = vmax.f32 %v1603, %v1607
      %v1612 = vmax.f32 %v1608, %v1610
      %v1613 = vmax.f32 %v1609, %v1611
      %1614 = vst [vmem:[#allocation3 + $0x2d] sm:$0xff] %v1612
      %1615 = vst [vmem:[#allocation3 + $0x35] sm:$0x7f] %v1613
      %s1616 = scalar_lea.vmem [#allocation2], 240
      %v1617 = vld [vmem:[%s1616] ss:$2 sm:$0xff]
      %s1618 = scalar_lea.vmem [#allocation2], 256
      %v1619 = vld [vmem:[%s1618] ss:$2 sm:$0x7f]
      %s1620 = scalar_lea.vmem [#allocation2], 241
      %v1621 = vld [vmem:[%s1620] ss:$2 sm:$0xff]
      %s1622 = scalar_lea.vmem [#allocation2], 257
      %v1623 = vld [vmem:[%s1622] ss:$2 sm:$0x7f]
      %s1624 = scalar_lea.vmem [#allocation2], 270
      %v1625 = vld [vmem:[%s1624] ss:$2 sm:$0xff]
      %s1626 = scalar_lea.vmem [#allocation2], 286
      %v1627 = vld [vmem:[%s1626] ss:$2 sm:$0x7f]
      %s1628 = scalar_lea.vmem [#allocation2], 271
      %v1629 = vld [vmem:[%s1628] ss:$2 sm:$0xff]
      %s1630 = scalar_lea.vmem [#allocation2], 287
      %v1631 = vld [vmem:[%s1630] ss:$2 sm:$0x7f]
      %v1632 = vmax.f32 %v1617, %v1621
      %v1633 = vmax.f32 %v1619, %v1623
      %v1634 = vmax.f32 %v1625, %v1629
      %v1635 = vmax.f32 %v1627, %v1631
      %v1636 = vmax.f32 %v1632, %v1634
      %v1637 = vmax.f32 %v1633, %v1635
      %1638 = vst [vmem:[#allocation3 + $0x3c] sm:$0xff] %v1636
      %1639 = vst [vmem:[#allocation3 + $0x44] sm:$0x7f] %v1637
      %s1640 = scalar_lea.vmem [#allocation2], 300
      %v1641 = vld [vmem:[%s1640] ss:$2 sm:$0xff]
      %s1642 = scalar_lea.vmem [#allocation2], 316
      %v1643 = vld [vmem:[%s1642] ss:$2 sm:$0x7f]
      %s1644 = scalar_lea.vmem [#allocation2], 301
      %v1645 = vld [vmem:[%s1644] ss:$2 sm:$0xff]
      %s1646 = scalar_lea.vmem [#allocation2], 317
      %v1647 = vld [vmem:[%s1646] ss:$2 sm:$0x7f]
      %s1648 = scalar_lea.vmem [#allocation2], 330
      %v1649 = vld [vmem:[%s1648] ss:$2 sm:$0xff]
      %s1650 = scalar_lea.vmem [#allocation2], 346
      %v1651 = vld [vmem:[%s1650] ss:$2 sm:$0x7f]
      %s1652 = scalar_lea.vmem [#allocation2], 331
      %v1653 = vld [vmem:[%s1652] ss:$2 sm:$0xff]
      %s1654 = scalar_lea.vmem [#allocation2], 347
      %v1655 = vld [vmem:[%s1654] ss:$2 sm:$0x7f]
      %v1656 = vmax.f32 %v1641, %v1645
      %v1657 = vmax.f32 %v1643, %v1647
      %v1658 = vmax.f32 %v1649, %v1653
      %v1659 = vmax.f32 %v1651, %v1655
      %v1660 = vmax.f32 %v1656, %v1658
      %v1661 = vmax.f32 %v1657, %v1659
      %1662 = vst [vmem:[#allocation3 + $0x4b] sm:$0xff] %v1660
      %1663 = vst [vmem:[#allocation3 + $0x53] sm:$0x7f] %v1661
      %s1664 = scalar_lea.vmem [#allocation2], 360
      %v1665 = vld [vmem:[%s1664] ss:$2 sm:$0xff]
      %s1666 = scalar_lea.vmem [#allocation2], 376
      %v1667 = vld [vmem:[%s1666] ss:$2 sm:$0x7f]
      %s1668 = scalar_lea.vmem [#allocation2], 361
      %v1669 = vld [vmem:[%s1668] ss:$2 sm:$0xff]
      %s1670 = scalar_lea.vmem [#allocation2], 377
      %v1671 = vld [vmem:[%s1670] ss:$2 sm:$0x7f]
      %s1672 = scalar_lea.vmem [#allocation2], 390
      %v1673 = vld [vmem:[%s1672] ss:$2 sm:$0xff]
      %s1674 = scalar_lea.vmem [#allocation2], 406
      %v1675 = vld [vmem:[%s1674] ss:$2 sm:$0x7f]
      %s1676 = scalar_lea.vmem [#allocation2], 391
      %v1677 = vld [vmem:[%s1676] ss:$2 sm:$0xff]
      %s1678 = scalar_lea.vmem [#allocation2], 407
      %v1679 = vld [vmem:[%s1678] ss:$2 sm:$0x7f]
      %v1680 = vmax.f32 %v1665, %v1669
      %v1681 = vmax.f32 %v1667, %v1671
      %v1682 = vmax.f32 %v1673, %v1677
      %v1683 = vmax.f32 %v1675, %v1679
      %v1684 = vmax.f32 %v1680, %v1682
      %v1685 = vmax.f32 %v1681, %v1683
      %1686 = vst [vmem:[#allocation3 + $0x5a] sm:$0xff] %v1684
      %1687 = vst [vmem:[#allocation3 + $0x62] sm:$0x7f] %v1685
      %s1688 = scalar_lea.vmem [#allocation2], 420
      %v1689 = vld [vmem:[%s1688] ss:$2 sm:$0xff]
      %s1690 = scalar_lea.vmem [#allocation2], 436
      %v1691 = vld [vmem:[%s1690] ss:$2 sm:$0x7f]
      %s1692 = scalar_lea.vmem [#allocation2], 421
      %v1693 = vld [vmem:[%s1692] ss:$2 sm:$0xff]
      %s1694 = scalar_lea.vmem [#allocation2], 437
      %v1695 = vld [vmem:[%s1694] ss:$2 sm:$0x7f]
      %s1696 = scalar_lea.vmem [#allocation2], 450
      %v1697 = vld [vmem:[%s1696] ss:$2 sm:$0xff]
      %s1698 = scalar_lea.vmem [#allocation2], 466
      %v1699 = vld [vmem:[%s1698] ss:$2 sm:$0x7f]
      %s1700 = scalar_lea.vmem [#allocation2], 451
      %v1701 = vld [vmem:[%s1700] ss:$2 sm:$0xff]
      %s1702 = scalar_lea.vmem [#allocation2], 467
      %v1703 = vld [vmem:[%s1702] ss:$2 sm:$0x7f]
      %v1704 = vmax.f32 %v1689, %v1693
      %v1705 = vmax.f32 %v1691, %v1695
      %v1706 = vmax.f32 %v1697, %v1701
      %v1707 = vmax.f32 %v1699, %v1703
      %v1708 = vmax.f32 %v1704, %v1706
      %v1709 = vmax.f32 %v1705, %v1707
      %1710 = vst [vmem:[#allocation3 + $0x69] sm:$0xff] %v1708
      %1711 = vst [vmem:[#allocation3 + $0x71] sm:$0x7f] %v1709
      %s1712 = scalar_lea.vmem [#allocation2], 480
      %v1713 = vld [vmem:[%s1712] ss:$2 sm:$0xff]
      %s1714 = scalar_lea.vmem [#allocation2], 496
      %v1715 = vld [vmem:[%s1714] ss:$2 sm:$0x7f]
      %s1716 = scalar_lea.vmem [#allocation2], 481
      %v1717 = vld [vmem:[%s1716] ss:$2 sm:$0xff]
      %s1718 = scalar_lea.vmem [#allocation2], 497
      %v1719 = vld [vmem:[%s1718] ss:$2 sm:$0x7f]
      %s1720 = scalar_lea.vmem [#allocation2], 510
      %v1721 = vld [vmem:[%s1720] ss:$2 sm:$0xff]
      %s1722 = scalar_lea.vmem [#allocation2], 526
      %v1723 = vld [vmem:[%s1722] ss:$2 sm:$0x7f]
      %s1724 = scalar_lea.vmem [#allocation2], 511
      %v1725 = vld [vmem:[%s1724] ss:$2 sm:$0xff]
      %s1726 = scalar_lea.vmem [#allocation2], 527
      %v1727 = vld [vmem:[%s1726] ss:$2 sm:$0x7f]
      %v1728 = vmax.f32 %v1713, %v1717
      %v1729 = vmax.f32 %v1715, %v1719
      %v1730 = vmax.f32 %v1721, %v1725
      %v1731 = vmax.f32 %v1723, %v1727
      %v1732 = vmax.f32 %v1728, %v1730
      %v1733 = vmax.f32 %v1729, %v1731
      %1734 = vst [vmem:[#allocation3 + $0x78] sm:$0xff] %v1732
      %1735 = vst [vmem:[#allocation3 + $0x80] sm:$0x7f] %v1733
      %s1736 = scalar_lea.vmem [#allocation2], 540
      %v1737 = vld [vmem:[%s1736] ss:$2 sm:$0xff]
      %s1738 = scalar_lea.vmem [#allocation2], 556
      %v1739 = vld [vmem:[%s1738] ss:$2 sm:$0x7f]
      %s1740 = scalar_lea.vmem [#allocation2], 541
      %v1741 = vld [vmem:[%s1740] ss:$2 sm:$0xff]
      %s1742 = scalar_lea.vmem [#allocation2], 557
      %v1743 = vld [vmem:[%s1742] ss:$2 sm:$0x7f]
      %s1744 = scalar_lea.vmem [#allocation2], 570
      %v1745 = vld [vmem:[%s1744] ss:$2 sm:$0xff]
      %s1746 = scalar_lea.vmem [#allocation2], 586
      %v1747 = vld [vmem:[%s1746] ss:$2 sm:$0x7f]
      %s1748 = scalar_lea.vmem [#allocation2], 571
      %v1749 = vld [vmem:[%s1748] ss:$2 sm:$0xff]
      %s1750 = scalar_lea.vmem [#allocation2], 587
      %v1751 = vld [vmem:[%s1750] ss:$2 sm:$0x7f]
      %v1752 = vmax.f32 %v1737, %v1741
      %v1753 = vmax.f32 %v1739, %v1743
      %v1754 = vmax.f32 %v1745, %v1749
      %v1755 = vmax.f32 %v1747, %v1751
      %v1756 = vmax.f32 %v1752, %v1754
      %v1757 = vmax.f32 %v1753, %v1755
      %1758 = vst [vmem:[#allocation3 + $0x87] sm:$0xff] %v1756
      %1759 = vst [vmem:[#allocation3 + $0x8f] sm:$0x7f] %v1757
      %s1760 = scalar_lea.vmem [#allocation2], 600
      %v1761 = vld [vmem:[%s1760] ss:$2 sm:$0xff]
      %s1762 = scalar_lea.vmem [#allocation2], 616
      %v1763 = vld [vmem:[%s1762] ss:$2 sm:$0x7f]
      %s1764 = scalar_lea.vmem [#allocation2], 601
      %v1765 = vld [vmem:[%s1764] ss:$2 sm:$0xff]
      %s1766 = scalar_lea.vmem [#allocation2], 617
      %v1767 = vld [vmem:[%s1766] ss:$2 sm:$0x7f]
      %s1768 = scalar_lea.vmem [#allocation2], 630
      %v1769 = vld [vmem:[%s1768] ss:$2 sm:$0xff]
      %s1770 = scalar_lea.vmem [#allocation2], 646
      %v1771 = vld [vmem:[%s1770] ss:$2 sm:$0x7f]
      %s1772 = scalar_lea.vmem [#allocation2], 631
      %v1773 = vld [vmem:[%s1772] ss:$2 sm:$0xff]
      %s1774 = scalar_lea.vmem [#allocation2], 647
      %v1775 = vld [vmem:[%s1774] ss:$2 sm:$0x7f]
      %v1776 = vmax.f32 %v1761, %v1765
      %v1777 = vmax.f32 %v1763, %v1767
      %v1778 = vmax.f32 %v1769, %v1773
      %v1779 = vmax.f32 %v1771, %v1775
      %v1780 = vmax.f32 %v1776, %v1778
      %v1781 = vmax.f32 %v1777, %v1779
      %1782 = vst [vmem:[#allocation3 + $0x96] sm:$0xff] %v1780
      %1783 = vst [vmem:[#allocation3 + $0x9e] sm:$0x7f] %v1781
      %s1784 = scalar_lea.vmem [#allocation2], 660
      %v1785 = vld [vmem:[%s1784] ss:$2 sm:$0xff]
      %s1786 = scalar_lea.vmem [#allocation2], 676
      %v1787 = vld [vmem:[%s1786] ss:$2 sm:$0x7f]
      %s1788 = scalar_lea.vmem [#allocation2], 661
      %v1789 = vld [vmem:[%s1788] ss:$2 sm:$0xff]
      %s1790 = scalar_lea.vmem [#allocation2], 677
      %v1791 = vld [vmem:[%s1790] ss:$2 sm:$0x7f]
      %s1792 = scalar_lea.vmem [#allocation2], 690
      %v1793 = vld [vmem:[%s1792] ss:$2 sm:$0xff]
      %s1794 = scalar_lea.vmem [#allocation2], 706
      %v1795 = vld [vmem:[%s1794] ss:$2 sm:$0x7f]
      %s1796 = scalar_lea.vmem [#allocation2], 691
      %v1797 = vld [vmem:[%s1796] ss:$2 sm:$0xff]
      %s1798 = scalar_lea.vmem [#allocation2], 707
      %v1799 = vld [vmem:[%s1798] ss:$2 sm:$0x7f]
      %v1800 = vmax.f32 %v1785, %v1789
      %v1801 = vmax.f32 %v1787, %v1791
      %v1802 = vmax.f32 %v1793, %v1797
      %v1803 = vmax.f32 %v1795, %v1799
      %v1804 = vmax.f32 %v1800, %v1802
      %v1805 = vmax.f32 %v1801, %v1803
      %1806 = vst [vmem:[#allocation3 + $0xa5] sm:$0xff] %v1804
      %1807 = vst [vmem:[#allocation3 + $0xad] sm:$0x7f] %v1805
      %s1808 = scalar_lea.vmem [#allocation2], 720
      %v1809 = vld [vmem:[%s1808] ss:$2 sm:$0xff]
      %s1810 = scalar_lea.vmem [#allocation2], 736
      %v1811 = vld [vmem:[%s1810] ss:$2 sm:$0x7f]
      %s1812 = scalar_lea.vmem [#allocation2], 721
      %v1813 = vld [vmem:[%s1812] ss:$2 sm:$0xff]
      %s1814 = scalar_lea.vmem [#allocation2], 737
      %v1815 = vld [vmem:[%s1814] ss:$2 sm:$0x7f]
      %s1816 = scalar_lea.vmem [#allocation2], 750
      %v1817 = vld [vmem:[%s1816] ss:$2 sm:$0xff]
      %s1818 = scalar_lea.vmem [#allocation2], 766
      %v1819 = vld [vmem:[%s1818] ss:$2 sm:$0x7f]
      %s1820 = scalar_lea.vmem [#allocation2], 751
      %v1821 = vld [vmem:[%s1820] ss:$2 sm:$0xff]
      %s1822 = scalar_lea.vmem [#allocation2], 767
      %v1823 = vld [vmem:[%s1822] ss:$2 sm:$0x7f]
      %v1824 = vmax.f32 %v1809, %v1813
      %v1825 = vmax.f32 %v1811, %v1815
      %v1826 = vmax.f32 %v1817, %v1821
      %v1827 = vmax.f32 %v1819, %v1823
      %v1828 = vmax.f32 %v1824, %v1826
      %v1829 = vmax.f32 %v1825, %v1827
      %1830 = vst [vmem:[#allocation3 + $0xb4] sm:$0xff] %v1828
      %1831 = vst [vmem:[#allocation3 + $0xbc] sm:$0x7f] %v1829
      %s1832 = scalar_lea.vmem [#allocation2], 780
      %v1833 = vld [vmem:[%s1832] ss:$2 sm:$0xff]
      %s1834 = scalar_lea.vmem [#allocation2], 796
      %v1835 = vld [vmem:[%s1834] ss:$2 sm:$0x7f]
      %s1836 = scalar_lea.vmem [#allocation2], 781
      %v1837 = vld [vmem:[%s1836] ss:$2 sm:$0xff]
      %s1838 = scalar_lea.vmem [#allocation2], 797
      %v1839 = vld [vmem:[%s1838] ss:$2 sm:$0x7f]
      %s1840 = scalar_lea.vmem [#allocation2], 810
      %v1841 = vld [vmem:[%s1840] ss:$2 sm:$0xff]
      %s1842 = scalar_lea.vmem [#allocation2], 826
      %v1843 = vld [vmem:[%s1842] ss:$2 sm:$0x7f]
      %s1844 = scalar_lea.vmem [#allocation2], 811
      %v1845 = vld [vmem:[%s1844] ss:$2 sm:$0xff]
      %s1846 = scalar_lea.vmem [#allocation2], 827
      %v1847 = vld [vmem:[%s1846] ss:$2 sm:$0x7f]
      %v1848 = vmax.f32 %v1833, %v1837
      %v1849 = vmax.f32 %v1835, %v1839
      %v1850 = vmax.f32 %v1841, %v1845
      %v1851 = vmax.f32 %v1843, %v1847
      %v1852 = vmax.f32 %v1848, %v1850
      %v1853 = vmax.f32 %v1849, %v1851
      %1854 = vst [vmem:[#allocation3 + $0xc3] sm:$0xff] %v1852
      %1855 = vst [vmem:[#allocation3 + $0xcb] sm:$0x7f] %v1853
      %s1856 = scalar_lea.vmem [#allocation2], 840
      %v1857 = vld [vmem:[%s1856] ss:$2 sm:$0xff]
      %s1858 = scalar_lea.vmem [#allocation2], 856
      %v1859 = vld [vmem:[%s1858] ss:$2 sm:$0x7f]
      %s1860 = scalar_lea.vmem [#allocation2], 841
      %v1861 = vld [vmem:[%s1860] ss:$2 sm:$0xff]
      %s1862 = scalar_lea.vmem [#allocation2], 857
      %v1863 = vld [vmem:[%s1862] ss:$2 sm:$0x7f]
      %s1864 = scalar_lea.vmem [#allocation2], 870
      %v1865 = vld [vmem:[%s1864] ss:$2 sm:$0xff]
      %s1866 = scalar_lea.vmem [#allocation2], 886
      %v1867 = vld [vmem:[%s1866] ss:$2 sm:$0x7f]
      %s1868 = scalar_lea.vmem [#allocation2], 871
      %v1869 = vld [vmem:[%s1868] ss:$2 sm:$0xff]
      %s1870 = scalar_lea.vmem [#allocation2], 887
      %v1871 = vld [vmem:[%s1870] ss:$2 sm:$0x7f]
      %v1872 = vmax.f32 %v1857, %v1861
      %v1873 = vmax.f32 %v1859, %v1863
      %v1874 = vmax.f32 %v1865, %v1869
      %v1875 = vmax.f32 %v1867, %v1871
      %v1876 = vmax.f32 %v1872, %v1874
      %v1877 = vmax.f32 %v1873, %v1875
      %1878 = vst [vmem:[#allocation3 + $0xd2] sm:$0xff] %v1876
      %1879 = vst [vmem:[#allocation3 + $0xda] sm:$0x7f] %v1877
      %v1880 = vld [vmem:[%s4] sm:$0x1]
      loop: start=0, step=1, limit=13
      $region88: #{lenet5_forward.1} parent=79 // loop_pre_header
        _
      $region89: #{lenet5_forward.1} parent=79 // loop_header
        %s1882 = sphi 0, %s1886
        %p1883 = scmp.ge.s32.totalorder %s1882, 13
      $region90: #{lenet5_forward.1} parent=79 // loop_header_branch
        %1885 = sbr.rel (%p1883) target = $region94
      $region91: #{lenet5_forward.1} parent=79 // loop_body
        %s1887 = smul.u32 %s1882, 15
        %s1888 = scalar_lea.vmem [#allocation3], %s1887
        %v1889 = vld [vmem:[%s1888] sm:$0xff]
        %v1890 = vld [vmem:[%s1888 + $0x8] sm:$0x1f]
        %v1891 = vld [vmem:[%s3] sm:$0xff]
        %v1892 = vld [vmem:[%s3 + $0x8] sm:$0xff]
        %v1893 = vld [vmem:[%s3 + $0x10] sm:$0xff]
        %v1894 = vld [vmem:[%s3 + $0x18] sm:$0xff]
        %v1895 = vld [vmem:[%s3 + $0x20] sm:$0xff]
        %v1896 = vld [vmem:[%s3 + $0x28] sm:$0xff]
        %v1897 = vld [vmem:[%s3 + $0x30] sm:$0xff]
        %v1898 = vld [vmem:[%s3 + $0x38] sm:$0xff]
        %v1899 = vld [vmem:[%s3 + $0x40] sm:$0xff]
        %v1900 = vld [vmem:[%s3 + $0x48] sm:$0xff]
        %v1901 = vld [vmem:[%s3 + $0x50] sm:$0xff]
        %v1902 = vld [vmem:[%s3 + $0x58] sm:$0xff]
        %v1903 = vld [vmem:[%s3 + $0x60] sm:$0xff]
        %v1904 = vld [vmem:[%s3 + $0x68] sm:$0xff]
        %v1905 = vld [vmem:[%s3 + $0x70] sm:$0xff]
        %v1906 = vld [vmem:[%s3 + $0x78] sm:$0xff]
        %s1907 = sadd.s32 %s1887, 1
        %s1908 = scalar_lea.vmem [#allocation3], %s1907
        %v1909 = vld [vmem:[%s1908] sm:$0xff]
        %v1910 = vld [vmem:[%s1908 + $0x8] sm:$0x1f]
        %s1911 = scalar_lea.vmem %s3, 128
        %v1912 = vld [vmem:[%s1911] sm:$0xff]
        %v1913 = vld [vmem:[%s1911 + $0x8] sm:$0xff]
        %v1914 = vld [vmem:[%s1911 + $0x10] sm:$0xff]
        %v1915 = vld [vmem:[%s1911 + $0x18] sm:$0xff]
        %v1916 = vld [vmem:[%s1911 + $0x20] sm:$0xff]
        %v1917 = vld [vmem:[%s1911 + $0x28] sm:$0xff]
        %v1918 = vld [vmem:[%s1911 + $0x30] sm:$0xff]
        %v1919 = vld [vmem:[%s1911 + $0x38] sm:$0xff]
        %v1920 = vld [vmem:[%s1911 + $0x40] sm:$0xff]
        %v1921 = vld [vmem:[%s1911 + $0x48] sm:$0xff]
        %v1922 = vld [vmem:[%s1911 + $0x50] sm:$0xff]
        %v1923 = vld [vmem:[%s1911 + $0x58] sm:$0xff]
        %v1924 = vld [vmem:[%s1911 + $0x60] sm:$0xff]
        %v1925 = vld [vmem:[%s1911 + $0x68] sm:$0xff]
        %v1926 = vld [vmem:[%s1911 + $0x70] sm:$0xff]
        %v1927 = vld [vmem:[%s1911 + $0x78] sm:$0xff]
        %1928 = vmatprep.subr.mxu0 0.0
        %1929 = vmatpush1.msra.mxu0 %v1927
        %1930 = vmatprep.subr.mxu0 0.0
        %1931 = vmatpush1.msra.mxu0 %v1926
        %1932 = vmatprep.subr.mxu0 0.0
        %1933 = vmatpush1.msra.mxu0 %v1925
        %1934 = vmatprep.subr.mxu0 0.0
        %1935 = vmatpush1.msra.mxu0 %v1924
        %1936 = vmatprep.subr.mxu0 0.0
        %1937 = vmatpush1.msra.mxu0 %v1923
        %1938 = vmatprep.subr.mxu0 0.0
        %1939 = vmatpush1.msra.mxu0 %v1922
        %1940 = vmatprep.subr.mxu0 0.0
        %1941 = vmatpush1.msra.mxu0 %v1921
        %1942 = vmatprep.subr.mxu0 0.0
        %1943 = vmatpush1.msra.mxu0 %v1920
        %1944 = vmatprep.subr.mxu0 0.0
        %1945 = vmatpush1.msra.mxu0 %v1919
        %1946 = vmatprep.subr.mxu0 0.0
        %1947 = vmatpush1.msra.mxu0 %v1918
        %1948 = vmatprep.subr.mxu0 0.0
        %1949 = vmatpush1.msra.mxu0 %v1917
        %1950 = vmatprep.subr.mxu0 0.0
        %1951 = vmatpush1.msra.mxu0 %v1916
        %1952 = vmatprep.subr.mxu0 0.0
        %1953 = vmatpush1.msra.mxu0 %v1915
        %1954 = vmatprep.subr.mxu0 0.0
        %1955 = vmatpush1.msra.mxu0 %v1914
        %1956 = vmatprep.subr.mxu0 0.0
        %1957 = vmatpush1.msra.mxu0 %v1913
        %1958 = vmatprep.subr.mxu0 0.0
        %1959 = vmatpush1.msra.mxu0 %v1912
        %1960 = vmatprep.subr.mxu0 0.0
        %1961 = vmatpush2.msra.mxu0 0.0
        %1962 = vmatprep.subr.mxu0 0.0
        %1963 = vmatpush2.msra.mxu0 0.0
        %1964 = vmatprep.subr.mxu0 0.0
        %1965 = vmatpush2.msra.mxu0 0.0
        %1966 = vmatprep.subr.mxu0 0.0
        %1967 = vmatpush2.msra.mxu0 0.0
        %1968 = vmatprep.subr.mxu0 0.0
        %1969 = vmatpush2.msra.mxu0 0.0
        %1970 = vmatprep.subr.mxu0 0.0
        %1971 = vmatpush2.msra.mxu0 0.0
        %1972 = vmatprep.subr.mxu0 0.0
        %1973 = vmatpush2.msra.mxu0 0.0
        %1974 = vmatprep.subr.mxu0 0.0
        %1975 = vmatpush2.msra.mxu0 0.0
        %1976 = vmatprep.subr.mxu0 0.0
        %1977 = vmatpush2.msra.mxu0 0.0
        %1978 = vmatprep.subr.mxu0 0.0
        %1979 = vmatpush2.msra.mxu0 0.0
        %1980 = vmatprep.subr.mxu0 0.0
        %1981 = vmatpush2.msra.mxu0 0.0
        %1982 = vmatprep.subr.mxu0 0.0
        %1983 = vmatpush2.msra.mxu0 0.0
        %1984 = vmatprep.subr.mxu0 0.0
        %1985 = vmatpush2.msra.mxu0 0.0
        %1986 = vmatprep.subr.mxu0 0.0
        %1987 = vmatpush2.msra.mxu0 0.0
        %1988 = vmatprep.subr.mxu0 0.0
        %1989 = vmatpush2.msra.mxu0 0.0
        %1990 = vmatprep.subr.mxu0 0.0
        %1991 = vmatpush2.msra.mxu0 0.0
        %1992 = vmatprep.mubr.f32.mxu0 0.0
        %1993 = vmatmul.mubr.f32.gmra.mxu0 %v1909
        %v1994 = vpop.f32.mrf.mxu0
        %v1995 = vadd.f32 0.0, %v1994
        %v1996 = vpop.f32.mrf.mxu0
        %1997 = vmatprep.mubr.f32.mxu0 0.0
        %1998 = vmatmul.mubr.f32.gmra.mxu0 %v1910
        %v1999 = vpop.f32.mrf.mxu0
        %v2000 = vadd.f32 0.0, %v1999
        %v2001 = vpop.f32.mrf.mxu0
        %2002 = vdwg.mxu0
        %2003 = vmatprep.subr.mxu0 0.0
        %2004 = vmatpush1.msra.mxu0 %v1906
        %2005 = vmatprep.subr.mxu0 0.0
        %2006 = vmatpush1.msra.mxu0 %v1905
        %2007 = vmatprep.subr.mxu0 0.0
        %2008 = vmatpush1.msra.mxu0 %v1904
        %2009 = vmatprep.subr.mxu0 0.0
        %2010 = vmatpush1.msra.mxu0 %v1903
        %2011 = vmatprep.subr.mxu0 0.0
        %2012 = vmatpush1.msra.mxu0 %v1902
        %2013 = vmatprep.subr.mxu0 0.0
        %2014 = vmatpush1.msra.mxu0 %v1901
        %2015 = vmatprep.subr.mxu0 0.0
        %2016 = vmatpush1.msra.mxu0 %v1900
        %2017 = vmatprep.subr.mxu0 0.0
        %2018 = vmatpush1.msra.mxu0 %v1899
        %2019 = vmatprep.subr.mxu0 0.0
        %2020 = vmatpush1.msra.mxu0 %v1898
        %2021 = vmatprep.subr.mxu0 0.0
        %2022 = vmatpush1.msra.mxu0 %v1897
        %2023 = vmatprep.subr.mxu0 0.0
        %2024 = vmatpush1.msra.mxu0 %v1896
        %2025 = vmatprep.subr.mxu0 0.0
        %2026 = vmatpush1.msra.mxu0 %v1895
        %2027 = vmatprep.subr.mxu0 0.0
        %2028 = vmatpush1.msra.mxu0 %v1894
        %2029 = vmatprep.subr.mxu0 0.0
        %2030 = vmatpush1.msra.mxu0 %v1893
        %2031 = vmatprep.subr.mxu0 0.0
        %2032 = vmatpush1.msra.mxu0 %v1892
        %2033 = vmatprep.subr.mxu0 0.0
        %2034 = vmatpush1.msra.mxu0 %v1891
        %2035 = vmatprep.subr.mxu0 0.0
        %2036 = vmatpush2.msra.mxu0 0.0
        %2037 = vmatprep.subr.mxu0 0.0
        %2038 = vmatpush2.msra.mxu0 0.0
        %2039 = vmatprep.subr.mxu0 0.0
        %2040 = vmatpush2.msra.mxu0 0.0
        %2041 = vmatprep.subr.mxu0 0.0
        %2042 = vmatpush2.msra.mxu0 0.0
        %2043 = vmatprep.subr.mxu0 0.0
        %2044 = vmatpush2.msra.mxu0 0.0
        %2045 = vmatprep.subr.mxu0 0.0
        %2046 = vmatpush2.msra.mxu0 0.0
        %2047 = vmatprep.subr.mxu0 0.0
        %2048 = vmatpush2.msra.mxu0 0.0
        %2049 = vmatprep.subr.mxu0 0.0
        %2050 = vmatpush2.msra.mxu0 0.0
        %2051 = vmatprep.subr.mxu0 0.0
        %2052 = vmatpush2.msra.mxu0 0.0
        %2053 = vmatprep.subr.mxu0 0.0
        %2054 = vmatpush2.msra.mxu0 0.0
        %2055 = vmatprep.subr.mxu0 0.0
        %2056 = vmatpush2.msra.mxu0 0.0
        %2057 = vmatprep.subr.mxu0 0.0
        %2058 = vmatpush2.msra.mxu0 0.0
        %2059 = vmatprep.subr.mxu0 0.0
        %2060 = vmatpush2.msra.mxu0 0.0
        %2061 = vmatprep.subr.mxu0 0.0
        %2062 = vmatpush2.msra.mxu0 0.0
        %2063 = vmatprep.subr.mxu0 0.0
        %2064 = vmatpush2.msra.mxu0 0.0
        %2065 = vmatprep.subr.mxu0 0.0
        %2066 = vmatpush2.msra.mxu0 0.0
        %2067 = vmatprep.mubr.f32.mxu0 0.0
        %2068 = vmatmul.mubr.f32.gmra.mxu0 %v1889
        %v2069 = vpop.f32.mrf.mxu0
        %v2070 = vadd.f32 %v1995, %v2069
        %v2071 = vpop.f32.mrf.mxu0
        %2072 = vmatprep.mubr.f32.mxu0 0.0
        %2073 = vmatmul.mubr.f32.gmra.mxu0 %v1890
        %v2074 = vpop.f32.mrf.mxu0
        %v2075 = vadd.f32 %v2000, %v2074
        %v2076 = vpop.f32.mrf.mxu0
        %2077 = vdwg.mxu0
        %s2078 = sadd.s32 %s1887, 2
        %s2079 = scalar_lea.vmem [#allocation3], %s2078
        %v2080 = vld [vmem:[%s2079] sm:$0xff]
        %v2081 = vld [vmem:[%s2079 + $0x8] sm:$0x1f]
        %s2082 = scalar_lea.vmem %s3, 256
        %v2083 = vld [vmem:[%s2082] sm:$0xff]
        %v2084 = vld [vmem:[%s2082 + $0x8] sm:$0xff]
        %v2085 = vld [vmem:[%s2082 + $0x10] sm:$0xff]
        %v2086 = vld [vmem:[%s2082 + $0x18] sm:$0xff]
        %v2087 = vld [vmem:[%s2082 + $0x20] sm:$0xff]
        %v2088 = vld [vmem:[%s2082 + $0x28] sm:$0xff]
        %v2089 = vld [vmem:[%s2082 + $0x30] sm:$0xff]
        %v2090 = vld [vmem:[%s2082 + $0x38] sm:$0xff]
        %v2091 = vld [vmem:[%s2082 + $0x40] sm:$0xff]
        %v2092 = vld [vmem:[%s2082 + $0x48] sm:$0xff]
        %v2093 = vld [vmem:[%s2082 + $0x50] sm:$0xff]
        %v2094 = vld [vmem:[%s2082 + $0x58] sm:$0xff]
        %v2095 = vld [vmem:[%s2082 + $0x60] sm:$0xff]
        %v2096 = vld [vmem:[%s2082 + $0x68] sm:$0xff]
        %v2097 = vld [vmem:[%s2082 + $0x70] sm:$0xff]
        %v2098 = vld [vmem:[%s2082 + $0x78] sm:$0xff]
        %2099 = vmatprep.subr.mxu0 0.0
        %2100 = vmatpush1.msra.mxu0 %v2098
        %2101 = vmatprep.subr.mxu0 0.0
        %2102 = vmatpush1.msra.mxu0 %v2097
        %2103 = vmatprep.subr.mxu0 0.0
        %2104 = vmatpush1.msra.mxu0 %v2096
        %2105 = vmatprep.subr.mxu0 0.0
        %2106 = vmatpush1.msra.mxu0 %v2095
        %2107 = vmatprep.subr.mxu0 0.0
        %2108 = vmatpush1.msra.mxu0 %v2094
        %2109 = vmatprep.subr.mxu0 0.0
        %2110 = vmatpush1.msra.mxu0 %v2093
        %2111 = vmatprep.subr.mxu0 0.0
        %2112 = vmatpush1.msra.mxu0 %v2092
        %2113 = vmatprep.subr.mxu0 0.0
        %2114 = vmatpush1.msra.mxu0 %v2091
        %2115 = vmatprep.subr.mxu0 0.0
        %2116 = vmatpush1.msra.mxu0 %v2090
        %2117 = vmatprep.subr.mxu0 0.0
        %2118 = vmatpush1.msra.mxu0 %v2089
        %2119 = vmatprep.subr.mxu0 0.0
        %2120 = vmatpush1.msra.mxu0 %v2088
        %2121 = vmatprep.subr.mxu0 0.0
        %2122 = vmatpush1.msra.mxu0 %v2087
        %2123 = vmatprep.subr.mxu0 0.0
        %2124 = vmatpush1.msra.mxu0 %v2086
        %2125 = vmatprep.subr.mxu0 0.0
        %2126 = vmatpush1.msra.mxu0 %v2085
        %2127 = vmatprep.subr.mxu0 0.0
        %2128 = vmatpush1.msra.mxu0 %v2084
        %2129 = vmatprep.subr.mxu0 0.0
        %2130 = vmatpush1.msra.mxu0 %v2083
        %2131 = vmatprep.subr.mxu0 0.0
        %2132 = vmatpush2.msra.mxu0 0.0
        %2133 = vmatprep.subr.mxu0 0.0
        %2134 = vmatpush2.msra.mxu0 0.0
        %2135 = vmatprep.subr.mxu0 0.0
        %2136 = vmatpush2.msra.mxu0 0.0
        %2137 = vmatprep.subr.mxu0 0.0
        %2138 = vmatpush2.msra.mxu0 0.0
        %2139 = vmatprep.subr.mxu0 0.0
        %2140 = vmatpush2.msra.mxu0 0.0
        %2141 = vmatprep.subr.mxu0 0.0
        %2142 = vmatpush2.msra.mxu0 0.0
        %2143 = vmatprep.subr.mxu0 0.0
        %2144 = vmatpush2.msra.mxu0 0.0
        %2145 = vmatprep.subr.mxu0 0.0
        %2146 = vmatpush2.msra.mxu0 0.0
        %2147 = vmatprep.subr.mxu0 0.0
        %2148 = vmatpush2.msra.mxu0 0.0
        %2149 = vmatprep.subr.mxu0 0.0
        %2150 = vmatpush2.msra.mxu0 0.0
        %2151 = vmatprep.subr.mxu0 0.0
        %2152 = vmatpush2.msra.mxu0 0.0
        %2153 = vmatprep.subr.mxu0 0.0
        %2154 = vmatpush2.msra.mxu0 0.0
        %2155 = vmatprep.subr.mxu0 0.0
        %2156 = vmatpush2.msra.mxu0 0.0
        %2157 = vmatprep.subr.mxu0 0.0
        %2158 = vmatpush2.msra.mxu0 0.0
        %2159 = vmatprep.subr.mxu0 0.0
        %2160 = vmatpush2.msra.mxu0 0.0
        %2161 = vmatprep.subr.mxu0 0.0
        %2162 = vmatpush2.msra.mxu0 0.0
        %2163 = vmatprep.mubr.f32.mxu0 0.0
        %2164 = vmatmul.mubr.f32.gmra.mxu0 %v2080
        %v2165 = vpop.f32.mrf.mxu0
        %v2166 = vadd.f32 0.0, %v2165
        %v2167 = vpop.f32.mrf.mxu0
        %2168 = vmatprep.mubr.f32.mxu0 0.0
        %2169 = vmatmul.mubr.f32.gmra.mxu0 %v2081
        %v2170 = vpop.f32.mrf.mxu0
        %v2171 = vadd.f32 0.0, %v2170
        %v2172 = vpop.f32.mrf.mxu0
        %2173 = vdwg.mxu0
        %v2174 = vadd.f32 %v2070, %v2166
        %v2175 = vadd.f32 %v2075, %v2171
        %s2176 = sadd.s32 %s1882, 1
        %s2177 = smul.u32 %s2176, 15
        %s2178 = scalar_lea.vmem [#allocation3], %s2177
        %v2179 = vld [vmem:[%s2178] sm:$0xff]
        %v2180 = vld [vmem:[%s2178 + $0x8] sm:$0x1f]
        %s2181 = scalar_lea.vmem %s3, 384
        %v2182 = vld [vmem:[%s2181] sm:$0xff]
        %v2183 = vld [vmem:[%s2181 + $0x8] sm:$0xff]
        %v2184 = vld [vmem:[%s2181 + $0x10] sm:$0xff]
        %v2185 = vld [vmem:[%s2181 + $0x18] sm:$0xff]
        %v2186 = vld [vmem:[%s2181 + $0x20] sm:$0xff]
        %v2187 = vld [vmem:[%s2181 + $0x28] sm:$0xff]
        %v2188 = vld [vmem:[%s2181 + $0x30] sm:$0xff]
        %v2189 = vld [vmem:[%s2181 + $0x38] sm:$0xff]
        %v2190 = vld [vmem:[%s2181 + $0x40] sm:$0xff]
        %v2191 = vld [vmem:[%s2181 + $0x48] sm:$0xff]
        %v2192 = vld [vmem:[%s2181 + $0x50] sm:$0xff]
        %v2193 = vld [vmem:[%s2181 + $0x58] sm:$0xff]
        %v2194 = vld [vmem:[%s2181 + $0x60] sm:$0xff]
        %v2195 = vld [vmem:[%s2181 + $0x68] sm:$0xff]
        %v2196 = vld [vmem:[%s2181 + $0x70] sm:$0xff]
        %v2197 = vld [vmem:[%s2181 + $0x78] sm:$0xff]
        %2198 = vmatprep.subr.mxu0 0.0
        %2199 = vmatpush1.msra.mxu0 %v2197
        %2200 = vmatprep.subr.mxu0 0.0
        %2201 = vmatpush1.msra.mxu0 %v2196
        %2202 = vmatprep.subr.mxu0 0.0
        %2203 = vmatpush1.msra.mxu0 %v2195
        %2204 = vmatprep.subr.mxu0 0.0
        %2205 = vmatpush1.msra.mxu0 %v2194
        %2206 = vmatprep.subr.mxu0 0.0
        %2207 = vmatpush1.msra.mxu0 %v2193
        %2208 = vmatprep.subr.mxu0 0.0
        %2209 = vmatpush1.msra.mxu0 %v2192
        %2210 = vmatprep.subr.mxu0 0.0
        %2211 = vmatpush1.msra.mxu0 %v2191
        %2212 = vmatprep.subr.mxu0 0.0
        %2213 = vmatpush1.msra.mxu0 %v2190
        %2214 = vmatprep.subr.mxu0 0.0
        %2215 = vmatpush1.msra.mxu0 %v2189
        %2216 = vmatprep.subr.mxu0 0.0
        %2217 = vmatpush1.msra.mxu0 %v2188
        %2218 = vmatprep.subr.mxu0 0.0
        %2219 = vmatpush1.msra.mxu0 %v2187
        %2220 = vmatprep.subr.mxu0 0.0
        %2221 = vmatpush1.msra.mxu0 %v2186
        %2222 = vmatprep.subr.mxu0 0.0
        %2223 = vmatpush1.msra.mxu0 %v2185
        %2224 = vmatprep.subr.mxu0 0.0
        %2225 = vmatpush1.msra.mxu0 %v2184
        %2226 = vmatprep.subr.mxu0 0.0
        %2227 = vmatpush1.msra.mxu0 %v2183
        %2228 = vmatprep.subr.mxu0 0.0
        %2229 = vmatpush1.msra.mxu0 %v2182
        %2230 = vmatprep.subr.mxu0 0.0
        %2231 = vmatpush2.msra.mxu0 0.0
        %2232 = vmatprep.subr.mxu0 0.0
        %2233 = vmatpush2.msra.mxu0 0.0
        %2234 = vmatprep.subr.mxu0 0.0
        %2235 = vmatpush2.msra.mxu0 0.0
        %2236 = vmatprep.subr.mxu0 0.0
        %2237 = vmatpush2.msra.mxu0 0.0
        %2238 = vmatprep.subr.mxu0 0.0
        %2239 = vmatpush2.msra.mxu0 0.0
        %2240 = vmatprep.subr.mxu0 0.0
        %2241 = vmatpush2.msra.mxu0 0.0
        %2242 = vmatprep.subr.mxu0 0.0
        %2243 = vmatpush2.msra.mxu0 0.0
        %2244 = vmatprep.subr.mxu0 0.0
        %2245 = vmatpush2.msra.mxu0 0.0
        %2246 = vmatprep.subr.mxu0 0.0
        %2247 = vmatpush2.msra.mxu0 0.0
        %2248 = vmatprep.subr.mxu0 0.0
        %2249 = vmatpush2.msra.mxu0 0.0
        %2250 = vmatprep.subr.mxu0 0.0
        %2251 = vmatpush2.msra.mxu0 0.0
        %2252 = vmatprep.subr.mxu0 0.0
        %2253 = vmatpush2.msra.mxu0 0.0
        %2254 = vmatprep.subr.mxu0 0.0
        %2255 = vmatpush2.msra.mxu0 0.0
        %2256 = vmatprep.subr.mxu0 0.0
        %2257 = vmatpush2.msra.mxu0 0.0
        %2258 = vmatprep.subr.mxu0 0.0
        %2259 = vmatpush2.msra.mxu0 0.0
        %2260 = vmatprep.subr.mxu0 0.0
        %2261 = vmatpush2.msra.mxu0 0.0
        %2262 = vmatprep.mubr.f32.mxu0 0.0
        %2263 = vmatmul.mubr.f32.gmra.mxu0 %v2179
        %v2264 = vpop.f32.mrf.mxu0
        %v2265 = vadd.f32 0.0, %v2264
        %v2266 = vpop.f32.mrf.mxu0
        %2267 = vmatprep.mubr.f32.mxu0 0.0
        %2268 = vmatmul.mubr.f32.gmra.mxu0 %v2180
        %v2269 = vpop.f32.mrf.mxu0
        %v2270 = vadd.f32 0.0, %v2269
        %v2271 = vpop.f32.mrf.mxu0
        %2272 = vdwg.mxu0
        %v2273 = vadd.f32 %v2174, %v2265
        %v2274 = vadd.f32 %v2175, %v2270
        %s2275 = sadd.s32 %s2177, 1
        %s2276 = scalar_lea.vmem [#allocation3], %s2275
        %v2277 = vld [vmem:[%s2276] sm:$0xff]
        %v2278 = vld [vmem:[%s2276 + $0x8] sm:$0x1f]
        %s2279 = scalar_lea.vmem %s3, 512
        %v2280 = vld [vmem:[%s2279] sm:$0xff]
        %v2281 = vld [vmem:[%s2279 + $0x8] sm:$0xff]
        %v2282 = vld [vmem:[%s2279 + $0x10] sm:$0xff]
        %v2283 = vld [vmem:[%s2279 + $0x18] sm:$0xff]
        %v2284 = vld [vmem:[%s2279 + $0x20] sm:$0xff]
        %v2285 = vld [vmem:[%s2279 + $0x28] sm:$0xff]
        %v2286 = vld [vmem:[%s2279 + $0x30] sm:$0xff]
        %v2287 = vld [vmem:[%s2279 + $0x38] sm:$0xff]
        %v2288 = vld [vmem:[%s2279 + $0x40] sm:$0xff]
        %v2289 = vld [vmem:[%s2279 + $0x48] sm:$0xff]
        %v2290 = vld [vmem:[%s2279 + $0x50] sm:$0xff]
        %v2291 = vld [vmem:[%s2279 + $0x58] sm:$0xff]
        %v2292 = vld [vmem:[%s2279 + $0x60] sm:$0xff]
        %v2293 = vld [vmem:[%s2279 + $0x68] sm:$0xff]
        %v2294 = vld [vmem:[%s2279 + $0x70] sm:$0xff]
        %v2295 = vld [vmem:[%s2279 + $0x78] sm:$0xff]
        %2296 = vmatprep.subr.mxu0 0.0
        %2297 = vmatpush1.msra.mxu0 %v2295
        %2298 = vmatprep.subr.mxu0 0.0
        %2299 = vmatpush1.msra.mxu0 %v2294
        %2300 = vmatprep.subr.mxu0 0.0
        %2301 = vmatpush1.msra.mxu0 %v2293
        %2302 = vmatprep.subr.mxu0 0.0
        %2303 = vmatpush1.msra.mxu0 %v2292
        %2304 = vmatprep.subr.mxu0 0.0
        %2305 = vmatpush1.msra.mxu0 %v2291
        %2306 = vmatprep.subr.mxu0 0.0
        %2307 = vmatpush1.msra.mxu0 %v2290
        %2308 = vmatprep.subr.mxu0 0.0
        %2309 = vmatpush1.msra.mxu0 %v2289
        %2310 = vmatprep.subr.mxu0 0.0
        %2311 = vmatpush1.msra.mxu0 %v2288
        %2312 = vmatprep.subr.mxu0 0.0
        %2313 = vmatpush1.msra.mxu0 %v2287
        %2314 = vmatprep.subr.mxu0 0.0
        %2315 = vmatpush1.msra.mxu0 %v2286
        %2316 = vmatprep.subr.mxu0 0.0
        %2317 = vmatpush1.msra.mxu0 %v2285
        %2318 = vmatprep.subr.mxu0 0.0
        %2319 = vmatpush1.msra.mxu0 %v2284
        %2320 = vmatprep.subr.mxu0 0.0
        %2321 = vmatpush1.msra.mxu0 %v2283
        %2322 = vmatprep.subr.mxu0 0.0
        %2323 = vmatpush1.msra.mxu0 %v2282
        %2324 = vmatprep.subr.mxu0 0.0
        %2325 = vmatpush1.msra.mxu0 %v2281
        %2326 = vmatprep.subr.mxu0 0.0
        %2327 = vmatpush1.msra.mxu0 %v2280
        %2328 = vmatprep.subr.mxu0 0.0
        %2329 = vmatpush2.msra.mxu0 0.0
        %2330 = vmatprep.subr.mxu0 0.0
        %2331 = vmatpush2.msra.mxu0 0.0
        %2332 = vmatprep.subr.mxu0 0.0
        %2333 = vmatpush2.msra.mxu0 0.0
        %2334 = vmatprep.subr.mxu0 0.0
        %2335 = vmatpush2.msra.mxu0 0.0
        %2336 = vmatprep.subr.mxu0 0.0
        %2337 = vmatpush2.msra.mxu0 0.0
        %2338 = vmatprep.subr.mxu0 0.0
        %2339 = vmatpush2.msra.mxu0 0.0
        %2340 = vmatprep.subr.mxu0 0.0
        %2341 = vmatpush2.msra.mxu0 0.0
        %2342 = vmatprep.subr.mxu0 0.0
        %2343 = vmatpush2.msra.mxu0 0.0
        %2344 = vmatprep.subr.mxu0 0.0
        %2345 = vmatpush2.msra.mxu0 0.0
        %2346 = vmatprep.subr.mxu0 0.0
        %2347 = vmatpush2.msra.mxu0 0.0
        %2348 = vmatprep.subr.mxu0 0.0
        %2349 = vmatpush2.msra.mxu0 0.0
        %2350 = vmatprep.subr.mxu0 0.0
        %2351 = vmatpush2.msra.mxu0 0.0
        %2352 = vmatprep.subr.mxu0 0.0
        %2353 = vmatpush2.msra.mxu0 0.0
        %2354 = vmatprep.subr.mxu0 0.0
        %2355 = vmatpush2.msra.mxu0 0.0
        %2356 = vmatprep.subr.mxu0 0.0
        %2357 = vmatpush2.msra.mxu0 0.0
        %2358 = vmatprep.subr.mxu0 0.0
        %2359 = vmatpush2.msra.mxu0 0.0
        %2360 = vmatprep.mubr.f32.mxu0 0.0
        %2361 = vmatmul.mubr.f32.gmra.mxu0 %v2277
        %v2362 = vpop.f32.mrf.mxu0
        %v2363 = vadd.f32 0.0, %v2362
        %v2364 = vpop.f32.mrf.mxu0
        %2365 = vmatprep.mubr.f32.mxu0 0.0
        %2366 = vmatmul.mubr.f32.gmra.mxu0 %v2278
        %v2367 = vpop.f32.mrf.mxu0
        %v2368 = vadd.f32 0.0, %v2367
        %v2369 = vpop.f32.mrf.mxu0
        %2370 = vdwg.mxu0
        %v2371 = vadd.f32 %v2273, %v2363
        %v2372 = vadd.f32 %v2274, %v2368
        %s2373 = sadd.s32 %s2177, 2
        %s2374 = scalar_lea.vmem [#allocation3], %s2373
        %v2375 = vld [vmem:[%s2374] sm:$0xff]
        %v2376 = vld [vmem:[%s2374 + $0x8] sm:$0x1f]
        %s2377 = scalar_lea.vmem %s3, 640
        %v2378 = vld [vmem:[%s2377] sm:$0xff]
        %v2379 = vld [vmem:[%s2377 + $0x8] sm:$0xff]
        %v2380 = vld [vmem:[%s2377 + $0x10] sm:$0xff]
        %v2381 = vld [vmem:[%s2377 + $0x18] sm:$0xff]
        %v2382 = vld [vmem:[%s2377 + $0x20] sm:$0xff]
        %v2383 = vld [vmem:[%s2377 + $0x28] sm:$0xff]
        %v2384 = vld [vmem:[%s2377 + $0x30] sm:$0xff]
        %v2385 = vld [vmem:[%s2377 + $0x38] sm:$0xff]
        %v2386 = vld [vmem:[%s2377 + $0x40] sm:$0xff]
        %v2387 = vld [vmem:[%s2377 + $0x48] sm:$0xff]
        %v2388 = vld [vmem:[%s2377 + $0x50] sm:$0xff]
        %v2389 = vld [vmem:[%s2377 + $0x58] sm:$0xff]
        %v2390 = vld [vmem:[%s2377 + $0x60] sm:$0xff]
        %v2391 = vld [vmem:[%s2377 + $0x68] sm:$0xff]
        %v2392 = vld [vmem:[%s2377 + $0x70] sm:$0xff]
        %v2393 = vld [vmem:[%s2377 + $0x78] sm:$0xff]
        %2394 = vmatprep.subr.mxu0 0.0
        %2395 = vmatpush1.msra.mxu0 %v2393
        %2396 = vmatprep.subr.mxu0 0.0
        %2397 = vmatpush1.msra.mxu0 %v2392
        %2398 = vmatprep.subr.mxu0 0.0
        %2399 = vmatpush1.msra.mxu0 %v2391
        %2400 = vmatprep.subr.mxu0 0.0
        %2401 = vmatpush1.msra.mxu0 %v2390
        %2402 = vmatprep.subr.mxu0 0.0
        %2403 = vmatpush1.msra.mxu0 %v2389
        %2404 = vmatprep.subr.mxu0 0.0
        %2405 = vmatpush1.msra.mxu0 %v2388
        %2406 = vmatprep.subr.mxu0 0.0
        %2407 = vmatpush1.msra.mxu0 %v2387
        %2408 = vmatprep.subr.mxu0 0.0
        %2409 = vmatpush1.msra.mxu0 %v2386
        %2410 = vmatprep.subr.mxu0 0.0
        %2411 = vmatpush1.msra.mxu0 %v2385
        %2412 = vmatprep.subr.mxu0 0.0
        %2413 = vmatpush1.msra.mxu0 %v2384
        %2414 = vmatprep.subr.mxu0 0.0
        %2415 = vmatpush1.msra.mxu0 %v2383
        %2416 = vmatprep.subr.mxu0 0.0
        %2417 = vmatpush1.msra.mxu0 %v2382
        %2418 = vmatprep.subr.mxu0 0.0
        %2419 = vmatpush1.msra.mxu0 %v2381
        %2420 = vmatprep.subr.mxu0 0.0
        %2421 = vmatpush1.msra.mxu0 %v2380
        %2422 = vmatprep.subr.mxu0 0.0
        %2423 = vmatpush1.msra.mxu0 %v2379
        %2424 = vmatprep.subr.mxu0 0.0
        %2425 = vmatpush1.msra.mxu0 %v2378
        %2426 = vmatprep.subr.mxu0 0.0
        %2427 = vmatpush2.msra.mxu0 0.0
        %2428 = vmatprep.subr.mxu0 0.0
        %2429 = vmatpush2.msra.mxu0 0.0
        %2430 = vmatprep.subr.mxu0 0.0
        %2431 = vmatpush2.msra.mxu0 0.0
        %2432 = vmatprep.subr.mxu0 0.0
        %2433 = vmatpush2.msra.mxu0 0.0
        %2434 = vmatprep.subr.mxu0 0.0
        %2435 = vmatpush2.msra.mxu0 0.0
        %2436 = vmatprep.subr.mxu0 0.0
        %2437 = vmatpush2.msra.mxu0 0.0
        %2438 = vmatprep.subr.mxu0 0.0
        %2439 = vmatpush2.msra.mxu0 0.0
        %2440 = vmatprep.subr.mxu0 0.0
        %2441 = vmatpush2.msra.mxu0 0.0
        %2442 = vmatprep.subr.mxu0 0.0
        %2443 = vmatpush2.msra.mxu0 0.0
        %2444 = vmatprep.subr.mxu0 0.0
        %2445 = vmatpush2.msra.mxu0 0.0
        %2446 = vmatprep.subr.mxu0 0.0
        %2447 = vmatpush2.msra.mxu0 0.0
        %2448 = vmatprep.subr.mxu0 0.0
        %2449 = vmatpush2.msra.mxu0 0.0
        %2450 = vmatprep.subr.mxu0 0.0
        %2451 = vmatpush2.msra.mxu0 0.0
        %2452 = vmatprep.subr.mxu0 0.0
        %2453 = vmatpush2.msra.mxu0 0.0
        %2454 = vmatprep.subr.mxu0 0.0
        %2455 = vmatpush2.msra.mxu0 0.0
        %2456 = vmatprep.subr.mxu0 0.0
        %2457 = vmatpush2.msra.mxu0 0.0
        %2458 = vmatprep.mubr.f32.mxu0 0.0
        %2459 = vmatmul.mubr.f32.gmra.mxu0 %v2375
        %v2460 = vpop.f32.mrf.mxu0
        %v2461 = vadd.f32 0.0, %v2460
        %v2462 = vpop.f32.mrf.mxu0
        %2463 = vmatprep.mubr.f32.mxu0 0.0
        %2464 = vmatmul.mubr.f32.gmra.mxu0 %v2376
        %v2465 = vpop.f32.mrf.mxu0
        %v2466 = vadd.f32 0.0, %v2465
        %v2467 = vpop.f32.mrf.mxu0
        %2468 = vdwg.mxu0
        %v2469 = vadd.f32 %v2371, %v2461
        %v2470 = vadd.f32 %v2372, %v2466
        %s2471 = sadd.s32 %s1882, 2
        %s2472 = smul.u32 %s2471, 15
        %s2473 = scalar_lea.vmem [#allocation3], %s2472
        %v2474 = vld [vmem:[%s2473] sm:$0xff]
        %v2475 = vld [vmem:[%s2473 + $0x8] sm:$0x1f]
        %s2476 = scalar_lea.vmem %s3, 768
        %v2477 = vld [vmem:[%s2476] sm:$0xff]
        %v2478 = vld [vmem:[%s2476 + $0x8] sm:$0xff]
        %v2479 = vld [vmem:[%s2476 + $0x10] sm:$0xff]
        %v2480 = vld [vmem:[%s2476 + $0x18] sm:$0xff]
        %v2481 = vld [vmem:[%s2476 + $0x20] sm:$0xff]
        %v2482 = vld [vmem:[%s2476 + $0x28] sm:$0xff]
        %v2483 = vld [vmem:[%s2476 + $0x30] sm:$0xff]
        %v2484 = vld [vmem:[%s2476 + $0x38] sm:$0xff]
        %v2485 = vld [vmem:[%s2476 + $0x40] sm:$0xff]
        %v2486 = vld [vmem:[%s2476 + $0x48] sm:$0xff]
        %v2487 = vld [vmem:[%s2476 + $0x50] sm:$0xff]
        %v2488 = vld [vmem:[%s2476 + $0x58] sm:$0xff]
        %v2489 = vld [vmem:[%s2476 + $0x60] sm:$0xff]
        %v2490 = vld [vmem:[%s2476 + $0x68] sm:$0xff]
        %v2491 = vld [vmem:[%s2476 + $0x70] sm:$0xff]
        %v2492 = vld [vmem:[%s2476 + $0x78] sm:$0xff]
        %2493 = vmatprep.subr.mxu0 0.0
        %2494 = vmatpush1.msra.mxu0 %v2492
        %2495 = vmatprep.subr.mxu0 0.0
        %2496 = vmatpush1.msra.mxu0 %v2491
        %2497 = vmatprep.subr.mxu0 0.0
        %2498 = vmatpush1.msra.mxu0 %v2490
        %2499 = vmatprep.subr.mxu0 0.0
        %2500 = vmatpush1.msra.mxu0 %v2489
        %2501 = vmatprep.subr.mxu0 0.0
        %2502 = vmatpush1.msra.mxu0 %v2488
        %2503 = vmatprep.subr.mxu0 0.0
        %2504 = vmatpush1.msra.mxu0 %v2487
        %2505 = vmatprep.subr.mxu0 0.0
        %2506 = vmatpush1.msra.mxu0 %v2486
        %2507 = vmatprep.subr.mxu0 0.0
        %2508 = vmatpush1.msra.mxu0 %v2485
        %2509 = vmatprep.subr.mxu0 0.0
        %2510 = vmatpush1.msra.mxu0 %v2484
        %2511 = vmatprep.subr.mxu0 0.0
        %2512 = vmatpush1.msra.mxu0 %v2483
        %2513 = vmatprep.subr.mxu0 0.0
        %2514 = vmatpush1.msra.mxu0 %v2482
        %2515 = vmatprep.subr.mxu0 0.0
        %2516 = vmatpush1.msra.mxu0 %v2481
        %2517 = vmatprep.subr.mxu0 0.0
        %2518 = vmatpush1.msra.mxu0 %v2480
        %2519 = vmatprep.subr.mxu0 0.0
        %2520 = vmatpush1.msra.mxu0 %v2479
        %2521 = vmatprep.subr.mxu0 0.0
        %2522 = vmatpush1.msra.mxu0 %v2478
        %2523 = vmatprep.subr.mxu0 0.0
        %2524 = vmatpush1.msra.mxu0 %v2477
        %2525 = vmatprep.subr.mxu0 0.0
        %2526 = vmatpush2.msra.mxu0 0.0
        %2527 = vmatprep.subr.mxu0 0.0
        %2528 = vmatpush2.msra.mxu0 0.0
        %2529 = vmatprep.subr.mxu0 0.0
        %2530 = vmatpush2.msra.mxu0 0.0
        %2531 = vmatprep.subr.mxu0 0.0
        %2532 = vmatpush2.msra.mxu0 0.0
        %2533 = vmatprep.subr.mxu0 0.0
        %2534 = vmatpush2.msra.mxu0 0.0
        %2535 = vmatprep.subr.mxu0 0.0
        %2536 = vmatpush2.msra.mxu0 0.0
        %2537 = vmatprep.subr.mxu0 0.0
        %2538 = vmatpush2.msra.mxu0 0.0
        %2539 = vmatprep.subr.mxu0 0.0
        %2540 = vmatpush2.msra.mxu0 0.0
        %2541 = vmatprep.subr.mxu0 0.0
        %2542 = vmatpush2.msra.mxu0 0.0
        %2543 = vmatprep.subr.mxu0 0.0
        %2544 = vmatpush2.msra.mxu0 0.0
        %2545 = vmatprep.subr.mxu0 0.0
        %2546 = vmatpush2.msra.mxu0 0.0
        %2547 = vmatprep.subr.mxu0 0.0
        %2548 = vmatpush2.msra.mxu0 0.0
        %2549 = vmatprep.subr.mxu0 0.0
        %2550 = vmatpush2.msra.mxu0 0.0
        %2551 = vmatprep.subr.mxu0 0.0
        %2552 = vmatpush2.msra.mxu0 0.0
        %2553 = vmatprep.subr.mxu0 0.0
        %2554 = vmatpush2.msra.mxu0 0.0
        %2555 = vmatprep.subr.mxu0 0.0
        %2556 = vmatpush2.msra.mxu0 0.0
        %2557 = vmatprep.mubr.f32.mxu0 0.0
        %2558 = vmatmul.mubr.f32.gmra.mxu0 %v2474
        %v2559 = vpop.f32.mrf.mxu0
        %v2560 = vadd.f32 0.0, %v2559
        %v2561 = vpop.f32.mrf.mxu0
        %2562 = vmatprep.mubr.f32.mxu0 0.0
        %2563 = vmatmul.mubr.f32.gmra.mxu0 %v2475
        %v2564 = vpop.f32.mrf.mxu0
        %v2565 = vadd.f32 0.0, %v2564
        %v2566 = vpop.f32.mrf.mxu0
        %2567 = vdwg.mxu0
        %v2568 = vadd.f32 %v2469, %v2560
        %v2569 = vadd.f32 %v2470, %v2565
        %s2570 = sadd.s32 %s2472, 1
        %s2571 = scalar_lea.vmem [#allocation3], %s2570
        %v2572 = vld [vmem:[%s2571] sm:$0xff]
        %v2573 = vld [vmem:[%s2571 + $0x8] sm:$0x1f]
        %s2574 = scalar_lea.vmem %s3, 896
        %v2575 = vld [vmem:[%s2574] sm:$0xff]
        %v2576 = vld [vmem:[%s2574 + $0x8] sm:$0xff]
        %v2577 = vld [vmem:[%s2574 + $0x10] sm:$0xff]
        %v2578 = vld [vmem:[%s2574 + $0x18] sm:$0xff]
        %v2579 = vld [vmem:[%s2574 + $0x20] sm:$0xff]
        %v2580 = vld [vmem:[%s2574 + $0x28] sm:$0xff]
        %v2581 = vld [vmem:[%s2574 + $0x30] sm:$0xff]
        %v2582 = vld [vmem:[%s2574 + $0x38] sm:$0xff]
        %v2583 = vld [vmem:[%s2574 + $0x40] sm:$0xff]
        %v2584 = vld [vmem:[%s2574 + $0x48] sm:$0xff]
        %v2585 = vld [vmem:[%s2574 + $0x50] sm:$0xff]
        %v2586 = vld [vmem:[%s2574 + $0x58] sm:$0xff]
        %v2587 = vld [vmem:[%s2574 + $0x60] sm:$0xff]
        %v2588 = vld [vmem:[%s2574 + $0x68] sm:$0xff]
        %v2589 = vld [vmem:[%s2574 + $0x70] sm:$0xff]
        %v2590 = vld [vmem:[%s2574 + $0x78] sm:$0xff]
        %2591 = vmatprep.subr.mxu0 0.0
        %2592 = vmatpush1.msra.mxu0 %v2590
        %2593 = vmatprep.subr.mxu0 0.0
        %2594 = vmatpush1.msra.mxu0 %v2589
        %2595 = vmatprep.subr.mxu0 0.0
        %2596 = vmatpush1.msra.mxu0 %v2588
        %2597 = vmatprep.subr.mxu0 0.0
        %2598 = vmatpush1.msra.mxu0 %v2587
        %2599 = vmatprep.subr.mxu0 0.0
        %2600 = vmatpush1.msra.mxu0 %v2586
        %2601 = vmatprep.subr.mxu0 0.0
        %2602 = vmatpush1.msra.mxu0 %v2585
        %2603 = vmatprep.subr.mxu0 0.0
        %2604 = vmatpush1.msra.mxu0 %v2584
        %2605 = vmatprep.subr.mxu0 0.0
        %2606 = vmatpush1.msra.mxu0 %v2583
        %2607 = vmatprep.subr.mxu0 0.0
        %2608 = vmatpush1.msra.mxu0 %v2582
        %2609 = vmatprep.subr.mxu0 0.0
        %2610 = vmatpush1.msra.mxu0 %v2581
        %2611 = vmatprep.subr.mxu0 0.0
        %2612 = vmatpush1.msra.mxu0 %v2580
        %2613 = vmatprep.subr.mxu0 0.0
        %2614 = vmatpush1.msra.mxu0 %v2579
        %2615 = vmatprep.subr.mxu0 0.0
        %2616 = vmatpush1.msra.mxu0 %v2578
        %2617 = vmatprep.subr.mxu0 0.0
        %2618 = vmatpush1.msra.mxu0 %v2577
        %2619 = vmatprep.subr.mxu0 0.0
        %2620 = vmatpush1.msra.mxu0 %v2576
        %2621 = vmatprep.subr.mxu0 0.0
        %2622 = vmatpush1.msra.mxu0 %v2575
        %2623 = vmatprep.subr.mxu0 0.0
        %2624 = vmatpush2.msra.mxu0 0.0
        %2625 = vmatprep.subr.mxu0 0.0
        %2626 = vmatpush2.msra.mxu0 0.0
        %2627 = vmatprep.subr.mxu0 0.0
        %2628 = vmatpush2.msra.mxu0 0.0
        %2629 = vmatprep.subr.mxu0 0.0
        %2630 = vmatpush2.msra.mxu0 0.0
        %2631 = vmatprep.subr.mxu0 0.0
        %2632 = vmatpush2.msra.mxu0 0.0
        %2633 = vmatprep.subr.mxu0 0.0
        %2634 = vmatpush2.msra.mxu0 0.0
        %2635 = vmatprep.subr.mxu0 0.0
        %2636 = vmatpush2.msra.mxu0 0.0
        %2637 = vmatprep.subr.mxu0 0.0
        %2638 = vmatpush2.msra.mxu0 0.0
        %2639 = vmatprep.subr.mxu0 0.0
        %2640 = vmatpush2.msra.mxu0 0.0
        %2641 = vmatprep.subr.mxu0 0.0
        %2642 = vmatpush2.msra.mxu0 0.0
        %2643 = vmatprep.subr.mxu0 0.0
        %2644 = vmatpush2.msra.mxu0 0.0
        %2645 = vmatprep.subr.mxu0 0.0
        %2646 = vmatpush2.msra.mxu0 0.0
        %2647 = vmatprep.subr.mxu0 0.0
        %2648 = vmatpush2.msra.mxu0 0.0
        %2649 = vmatprep.subr.mxu0 0.0
        %2650 = vmatpush2.msra.mxu0 0.0
        %2651 = vmatprep.subr.mxu0 0.0
        %2652 = vmatpush2.msra.mxu0 0.0
        %2653 = vmatprep.subr.mxu0 0.0
        %2654 = vmatpush2.msra.mxu0 0.0
        %2655 = vmatprep.mubr.f32.mxu0 0.0
        %2656 = vmatmul.mubr.f32.gmra.mxu0 %v2572
        %v2657 = vpop.f32.mrf.mxu0
        %v2658 = vadd.f32 0.0, %v2657
        %v2659 = vpop.f32.mrf.mxu0
        %2660 = vmatprep.mubr.f32.mxu0 0.0
        %2661 = vmatmul.mubr.f32.gmra.mxu0 %v2573
        %v2662 = vpop.f32.mrf.mxu0
        %v2663 = vadd.f32 0.0, %v2662
        %v2664 = vpop.f32.mrf.mxu0
        %2665 = vdwg.mxu0
        %v2666 = vadd.f32 %v2568, %v2658
        %v2667 = vadd.f32 %v2569, %v2663
        %s2668 = sadd.s32 %s2472, 2
        %s2669 = scalar_lea.vmem [#allocation3], %s2668
        %v2670 = vld [vmem:[%s2669] sm:$0xff]
        %v2671 = vld [vmem:[%s2669 + $0x8] sm:$0x1f]
        %s2672 = scalar_lea.vmem %s3, 1024
        %v2673 = vld [vmem:[%s2672] sm:$0xff]
        %v2674 = vld [vmem:[%s2672 + $0x8] sm:$0xff]
        %v2675 = vld [vmem:[%s2672 + $0x10] sm:$0xff]
        %v2676 = vld [vmem:[%s2672 + $0x18] sm:$0xff]
        %v2677 = vld [vmem:[%s2672 + $0x20] sm:$0xff]
        %v2678 = vld [vmem:[%s2672 + $0x28] sm:$0xff]
        %v2679 = vld [vmem:[%s2672 + $0x30] sm:$0xff]
        %v2680 = vld [vmem:[%s2672 + $0x38] sm:$0xff]
        %v2681 = vld [vmem:[%s2672 + $0x40] sm:$0xff]
        %v2682 = vld [vmem:[%s2672 + $0x48] sm:$0xff]
        %v2683 = vld [vmem:[%s2672 + $0x50] sm:$0xff]
        %v2684 = vld [vmem:[%s2672 + $0x58] sm:$0xff]
        %v2685 = vld [vmem:[%s2672 + $0x60] sm:$0xff]
        %v2686 = vld [vmem:[%s2672 + $0x68] sm:$0xff]
        %v2687 = vld [vmem:[%s2672 + $0x70] sm:$0xff]
        %v2688 = vld [vmem:[%s2672 + $0x78] sm:$0xff]
        %2689 = vmatprep.subr.mxu0 0.0
        %2690 = vmatpush1.msra.mxu0 %v2688
        %2691 = vmatprep.subr.mxu0 0.0
        %2692 = vmatpush1.msra.mxu0 %v2687
        %2693 = vmatprep.subr.mxu0 0.0
        %2694 = vmatpush1.msra.mxu0 %v2686
        %2695 = vmatprep.subr.mxu0 0.0
        %2696 = vmatpush1.msra.mxu0 %v2685
        %2697 = vmatprep.subr.mxu0 0.0
        %2698 = vmatpush1.msra.mxu0 %v2684
        %2699 = vmatprep.subr.mxu0 0.0
        %2700 = vmatpush1.msra.mxu0 %v2683
        %2701 = vmatprep.subr.mxu0 0.0
        %2702 = vmatpush1.msra.mxu0 %v2682
        %2703 = vmatprep.subr.mxu0 0.0
        %2704 = vmatpush1.msra.mxu0 %v2681
        %2705 = vmatprep.subr.mxu0 0.0
        %2706 = vmatpush1.msra.mxu0 %v2680
        %2707 = vmatprep.subr.mxu0 0.0
        %2708 = vmatpush1.msra.mxu0 %v2679
        %2709 = vmatprep.subr.mxu0 0.0
        %2710 = vmatpush1.msra.mxu0 %v2678
        %2711 = vmatprep.subr.mxu0 0.0
        %2712 = vmatpush1.msra.mxu0 %v2677
        %2713 = vmatprep.subr.mxu0 0.0
        %2714 = vmatpush1.msra.mxu0 %v2676
        %2715 = vmatprep.subr.mxu0 0.0
        %2716 = vmatpush1.msra.mxu0 %v2675
        %2717 = vmatprep.subr.mxu0 0.0
        %2718 = vmatpush1.msra.mxu0 %v2674
        %2719 = vmatprep.subr.mxu0 0.0
        %2720 = vmatpush1.msra.mxu0 %v2673
        %2721 = vmatprep.subr.mxu0 0.0
        %2722 = vmatpush2.msra.mxu0 0.0
        %2723 = vmatprep.subr.mxu0 0.0
        %2724 = vmatpush2.msra.mxu0 0.0
        %2725 = vmatprep.subr.mxu0 0.0
        %2726 = vmatpush2.msra.mxu0 0.0
        %2727 = vmatprep.subr.mxu0 0.0
        %2728 = vmatpush2.msra.mxu0 0.0
        %2729 = vmatprep.subr.mxu0 0.0
        %2730 = vmatpush2.msra.mxu0 0.0
        %2731 = vmatprep.subr.mxu0 0.0
        %2732 = vmatpush2.msra.mxu0 0.0
        %2733 = vmatprep.subr.mxu0 0.0
        %2734 = vmatpush2.msra.mxu0 0.0
        %2735 = vmatprep.subr.mxu0 0.0
        %2736 = vmatpush2.msra.mxu0 0.0
        %2737 = vmatprep.subr.mxu0 0.0
        %2738 = vmatpush2.msra.mxu0 0.0
        %2739 = vmatprep.subr.mxu0 0.0
        %2740 = vmatpush2.msra.mxu0 0.0
        %2741 = vmatprep.subr.mxu0 0.0
        %2742 = vmatpush2.msra.mxu0 0.0
        %2743 = vmatprep.subr.mxu0 0.0
        %2744 = vmatpush2.msra.mxu0 0.0
        %2745 = vmatprep.subr.mxu0 0.0
        %2746 = vmatpush2.msra.mxu0 0.0
        %2747 = vmatprep.subr.mxu0 0.0
        %2748 = vmatpush2.msra.mxu0 0.0
        %2749 = vmatprep.subr.mxu0 0.0
        %2750 = vmatpush2.msra.mxu0 0.0
        %2751 = vmatprep.subr.mxu0 0.0
        %2752 = vmatpush2.msra.mxu0 0.0
        %2753 = vmatprep.mubr.f32.mxu0 0.0
        %2754 = vmatmul.mubr.f32.gmra.mxu0 %v2670
        %v2755 = vpop.f32.mrf.mxu0
        %v2756 = vadd.f32 0.0, %v2755
        %v2757 = vpop.f32.mrf.mxu0
        %2758 = vmatprep.mubr.f32.mxu0 0.0
        %2759 = vmatmul.mubr.f32.gmra.mxu0 %v2671
        %v2760 = vpop.f32.mrf.mxu0
        %v2761 = vadd.f32 0.0, %v2760
        %v2762 = vpop.f32.mrf.mxu0
        %2763 = vdwg.mxu0
        %v2764 = vadd.f32 %v2666, %v2756
        %v2765 = vadd.f32 %v2667, %v2761
        %v2767 = vlaneseq
        %v2768 = vshrl.u32 %v2767, 7
        %v2769 = vsub.s32 0, %v2768
        %v2770 = vrot.slane %v1880, %v2769
        %v2772 = vadd.f32 %v2764, %v2770
        %v2773 = vadd.f32 %v2765, %v2770
        %v2774 = vmax.f32 %v2772, 0.0
        %v2775 = vmax.f32 %v2773, 0.0
        %s2776 = smul.u32 %s1882, 13
        %s2777 = scalar_lea.vmem [#allocation4], %s2776
        %2778 = vst [vmem:[%s2777] sm:$0xff] %v2774
        %2779 = vst [vmem:[%s2777 + $0x8] sm:$0x1f] %v2775
      $region92: #{lenet5_forward.1} parent=79 // loop_footer
        %s1886 = sadd.s32 1, %s1882
      $region93: #{lenet5_forward.1} parent=79 // loop_footer_branch
        %1881 = sbr.rel target = $region89
      $region94: #{lenet5_forward.1} parent=79 // loop_exit
        _
      %v2780 = vld [vmem:[#allocation4] ss:$2 sm:$0x3f]
      %s2781 = scalar_lea.vmem [#allocation4], 1
      %v2782 = vld [vmem:[%s2781] ss:$2 sm:$0x3f]
      %s2783 = scalar_lea.vmem [#allocation4], 13
      %v2784 = vld [vmem:[%s2783] ss:$2 sm:$0x3f]
      %s2785 = scalar_lea.vmem [#allocation4], 14
      %v2786 = vld [vmem:[%s2785] ss:$2 sm:$0x3f]
      %v2787 = vmax.f32 %v2780, %v2782
      %v2788 = vmax.f32 %v2784, %v2786
      %v2789 = vmax.f32 %v2787, %v2788
      %2790 = vst [vmem:[#allocation5] sm:$0x3f] %v2789
      %s2791 = scalar_lea.vmem [#allocation4], 26
      %v2792 = vld [vmem:[%s2791] ss:$2 sm:$0x3f]
      %s2793 = scalar_lea.vmem [#allocation4], 27
      %v2794 = vld [vmem:[%s2793] ss:$2 sm:$0x3f]
      %s2795 = scalar_lea.vmem [#allocation4], 39
      %v2796 = vld [vmem:[%s2795] ss:$2 sm:$0x3f]
      %s2797 = scalar_lea.vmem [#allocation4], 40
      %v2798 = vld [vmem:[%s2797] ss:$2 sm:$0x3f]
      %v2799 = vmax.f32 %v2792, %v2794
      %v2800 = vmax.f32 %v2796, %v2798
      %v2801 = vmax.f32 %v2799, %v2800
      %2802 = vst [vmem:[#allocation5 + $0x6] sm:$0x3f] %v2801
      %s2803 = scalar_lea.vmem [#allocation4], 52
      %v2804 = vld [vmem:[%s2803] ss:$2 sm:$0x3f]
      %s2805 = scalar_lea.vmem [#allocation4], 53
      %v2806 = vld [vmem:[%s2805] ss:$2 sm:$0x3f]
      %s2807 = scalar_lea.vmem [#allocation4], 65
      %v2808 = vld [vmem:[%s2807] ss:$2 sm:$0x3f]
      %s2809 = scalar_lea.vmem [#allocation4], 66
      %v2810 = vld [vmem:[%s2809] ss:$2 sm:$0x3f]
      %v2811 = vmax.f32 %v2804, %v2806
      %v2812 = vmax.f32 %v2808, %v2810
      %v2813 = vmax.f32 %v2811, %v2812
      %2814 = vst [vmem:[#allocation5 + $0xc] sm:$0x3f] %v2813
      %s2815 = scalar_lea.vmem [#allocation4], 78
      %v2816 = vld [vmem:[%s2815] ss:$2 sm:$0x3f]
      %s2817 = scalar_lea.vmem [#allocation4], 79
      %v2818 = vld [vmem:[%s2817] ss:$2 sm:$0x3f]
      %s2819 = scalar_lea.vmem [#allocation4], 91
      %v2820 = vld [vmem:[%s2819] ss:$2 sm:$0x3f]
      %s2821 = scalar_lea.vmem [#allocation4], 92
      %v2822 = vld [vmem:[%s2821] ss:$2 sm:$0x3f]
      %v2823 = vmax.f32 %v2816, %v2818
      %v2824 = vmax.f32 %v2820, %v2822
      %v2825 = vmax.f32 %v2823, %v2824
      %2826 = vst [vmem:[#allocation5 + $0x12] sm:$0x3f] %v2825
      %s2827 = scalar_lea.vmem [#allocation4], 104
      %v2828 = vld [vmem:[%s2827] ss:$2 sm:$0x3f]
      %s2829 = scalar_lea.vmem [#allocation4], 105
      %v2830 = vld [vmem:[%s2829] ss:$2 sm:$0x3f]
      %s2831 = scalar_lea.vmem [#allocation4], 117
      %v2832 = vld [vmem:[%s2831] ss:$2 sm:$0x3f]
      %s2833 = scalar_lea.vmem [#allocation4], 118
      %v2834 = vld [vmem:[%s2833] ss:$2 sm:$0x3f]
      %v2835 = vmax.f32 %v2828, %v2830
      %v2836 = vmax.f32 %v2832, %v2834
      %v2837 = vmax.f32 %v2835, %v2836
      %2838 = vst [vmem:[#allocation5 + $0x18] sm:$0x3f] %v2837
      %s2839 = scalar_lea.vmem [#allocation4], 130
      %v2840 = vld [vmem:[%s2839] ss:$2 sm:$0x3f]
      %s2841 = scalar_lea.vmem [#allocation4], 131
      %v2842 = vld [vmem:[%s2841] ss:$2 sm:$0x3f]
      %s2843 = scalar_lea.vmem [#allocation4], 143
      %v2844 = vld [vmem:[%s2843] ss:$2 sm:$0x3f]
      %s2845 = scalar_lea.vmem [#allocation4], 144
      %v2846 = vld [vmem:[%s2845] ss:$2 sm:$0x3f]
      %v2847 = vmax.f32 %v2840, %v2842
      %v2848 = vmax.f32 %v2844, %v2846
      %v2849 = vmax.f32 %v2847, %v2848
      %2850 = vst [vmem:[#allocation5 + $0x1e] sm:$0x3f] %v2849
      %v2851 = vld [vmem:[%s6] sm:$0x1]
      loop: start=0, step=1, limit=4
      $region95: #{lenet5_forward.1} parent=79 // loop_pre_header
        _
      $region96: #{lenet5_forward.1} parent=79 // loop_header
        %s2853 = sphi 0, %s2857
        %p2854 = scmp.ge.s32.totalorder %s2853, 4
      $region97: #{lenet5_forward.1} parent=79 // loop_header_branch
        %2856 = sbr.rel (%p2854) target = $region101
      $region98: #{lenet5_forward.1} parent=79 // loop_body
        %s2858 = smul.u32 %s2853, 6
        %s2859 = scalar_lea.vmem [#allocation5], %s2858
        %v2860 = vld [vmem:[%s2859] sm:$0xf]
        %v2861 = vld [vmem:[%s5] sm:$0xff]
        %v2862 = vld [vmem:[%s5 + $0x8] sm:$0xff]
        %v2863 = vld [vmem:[%s5 + $0x10] sm:$0xff]
        %v2864 = vld [vmem:[%s5 + $0x18] sm:$0xff]
        %v2865 = vld [vmem:[%s5 + $0x20] sm:$0xff]
        %v2866 = vld [vmem:[%s5 + $0x28] sm:$0xff]
        %v2867 = vld [vmem:[%s5 + $0x30] sm:$0xff]
        %v2868 = vld [vmem:[%s5 + $0x38] sm:$0xff]
        %v2869 = vld [vmem:[%s5 + $0x40] sm:$0xff]
        %v2870 = vld [vmem:[%s5 + $0x48] sm:$0xff]
        %v2871 = vld [vmem:[%s5 + $0x50] sm:$0xff]
        %v2872 = vld [vmem:[%s5 + $0x58] sm:$0xff]
        %v2873 = vld [vmem:[%s5 + $0x60] sm:$0xff]
        %v2874 = vld [vmem:[%s5 + $0x68] sm:$0xff]
        %v2875 = vld [vmem:[%s5 + $0x70] sm:$0xff]
        %v2876 = vld [vmem:[%s5 + $0x78] sm:$0xff]
        %s2877 = sadd.s32 %s2858, 1
        %s2878 = scalar_lea.vmem [#allocation5], %s2877
        %v2879 = vld [vmem:[%s2878] sm:$0xf]
        %s2880 = scalar_lea.vmem %s5, 128
        %v2881 = vld [vmem:[%s2880] sm:$0xff]
        %v2882 = vld [vmem:[%s2880 + $0x8] sm:$0xff]
        %v2883 = vld [vmem:[%s2880 + $0x10] sm:$0xff]
        %v2884 = vld [vmem:[%s2880 + $0x18] sm:$0xff]
        %v2885 = vld [vmem:[%s2880 + $0x20] sm:$0xff]
        %v2886 = vld [vmem:[%s2880 + $0x28] sm:$0xff]
        %v2887 = vld [vmem:[%s2880 + $0x30] sm:$0xff]
        %v2888 = vld [vmem:[%s2880 + $0x38] sm:$0xff]
        %v2889 = vld [vmem:[%s2880 + $0x40] sm:$0xff]
        %v2890 = vld [vmem:[%s2880 + $0x48] sm:$0xff]
        %v2891 = vld [vmem:[%s2880 + $0x50] sm:$0xff]
        %v2892 = vld [vmem:[%s2880 + $0x58] sm:$0xff]
        %v2893 = vld [vmem:[%s2880 + $0x60] sm:$0xff]
        %v2894 = vld [vmem:[%s2880 + $0x68] sm:$0xff]
        %v2895 = vld [vmem:[%s2880 + $0x70] sm:$0xff]
        %v2896 = vld [vmem:[%s2880 + $0x78] sm:$0xff]
        %2897 = vmatprep.subr.mxu0 0.0
        %2898 = vmatpush1.msra.mxu0 %v2896
        %2899 = vmatprep.subr.mxu0 0.0
        %2900 = vmatpush1.msra.mxu0 %v2895
        %2901 = vmatprep.subr.mxu0 0.0
        %2902 = vmatpush1.msra.mxu0 %v2894
        %2903 = vmatprep.subr.mxu0 0.0
        %2904 = vmatpush1.msra.mxu0 %v2893
        %2905 = vmatprep.subr.mxu0 0.0
        %2906 = vmatpush1.msra.mxu0 %v2892
        %2907 = vmatprep.subr.mxu0 0.0
        %2908 = vmatpush1.msra.mxu0 %v2891
        %2909 = vmatprep.subr.mxu0 0.0
        %2910 = vmatpush1.msra.mxu0 %v2890
        %2911 = vmatprep.subr.mxu0 0.0
        %2912 = vmatpush1.msra.mxu0 %v2889
        %2913 = vmatprep.subr.mxu0 0.0
        %2914 = vmatpush1.msra.mxu0 %v2888
        %2915 = vmatprep.subr.mxu0 0.0
        %2916 = vmatpush1.msra.mxu0 %v2887
        %2917 = vmatprep.subr.mxu0 0.0
        %2918 = vmatpush1.msra.mxu0 %v2886
        %2919 = vmatprep.subr.mxu0 0.0
        %2920 = vmatpush1.msra.mxu0 %v2885
        %2921 = vmatprep.subr.mxu0 0.0
        %2922 = vmatpush1.msra.mxu0 %v2884
        %2923 = vmatprep.subr.mxu0 0.0
        %2924 = vmatpush1.msra.mxu0 %v2883
        %2925 = vmatprep.subr.mxu0 0.0
        %2926 = vmatpush1.msra.mxu0 %v2882
        %2927 = vmatprep.subr.mxu0 0.0
        %2928 = vmatpush1.msra.mxu0 %v2881
        %2929 = vmatprep.subr.mxu0 0.0
        %2930 = vmatpush2.msra.mxu0 0.0
        %2931 = vmatprep.subr.mxu0 0.0
        %2932 = vmatpush2.msra.mxu0 0.0
        %2933 = vmatprep.subr.mxu0 0.0
        %2934 = vmatpush2.msra.mxu0 0.0
        %2935 = vmatprep.subr.mxu0 0.0
        %2936 = vmatpush2.msra.mxu0 0.0
        %2937 = vmatprep.subr.mxu0 0.0
        %2938 = vmatpush2.msra.mxu0 0.0
        %2939 = vmatprep.subr.mxu0 0.0
        %2940 = vmatpush2.msra.mxu0 0.0
        %2941 = vmatprep.subr.mxu0 0.0
        %2942 = vmatpush2.msra.mxu0 0.0
        %2943 = vmatprep.subr.mxu0 0.0
        %2944 = vmatpush2.msra.mxu0 0.0
        %2945 = vmatprep.subr.mxu0 0.0
        %2946 = vmatpush2.msra.mxu0 0.0
        %2947 = vmatprep.subr.mxu0 0.0
        %2948 = vmatpush2.msra.mxu0 0.0
        %2949 = vmatprep.subr.mxu0 0.0
        %2950 = vmatpush2.msra.mxu0 0.0
        %2951 = vmatprep.subr.mxu0 0.0
        %2952 = vmatpush2.msra.mxu0 0.0
        %2953 = vmatprep.subr.mxu0 0.0
        %2954 = vmatpush2.msra.mxu0 0.0
        %2955 = vmatprep.subr.mxu0 0.0
        %2956 = vmatpush2.msra.mxu0 0.0
        %2957 = vmatprep.subr.mxu0 0.0
        %2958 = vmatpush2.msra.mxu0 0.0
        %2959 = vmatprep.subr.mxu0 0.0
        %2960 = vmatpush2.msra.mxu0 0.0
        %2961 = vmatprep.mubr.f32.mxu0 0.0
        %2962 = vmatmul.mubr.f32.gmra.mxu0 %v2879
        %v2963 = vpop.f32.mrf.mxu0
        %v2964 = vadd.f32 0.0, %v2963
        %v2965 = vpop.f32.mrf.mxu0
        %2966 = vdwg.mxu0
        %2967 = vmatprep.subr.mxu0 0.0
        %2968 = vmatpush1.msra.mxu0 %v2876
        %2969 = vmatprep.subr.mxu0 0.0
        %2970 = vmatpush1.msra.mxu0 %v2875
        %2971 = vmatprep.subr.mxu0 0.0
        %2972 = vmatpush1.msra.mxu0 %v2874
        %2973 = vmatprep.subr.mxu0 0.0
        %2974 = vmatpush1.msra.mxu0 %v2873
        %2975 = vmatprep.subr.mxu0 0.0
        %2976 = vmatpush1.msra.mxu0 %v2872
        %2977 = vmatprep.subr.mxu0 0.0
        %2978 = vmatpush1.msra.mxu0 %v2871
        %2979 = vmatprep.subr.mxu0 0.0
        %2980 = vmatpush1.msra.mxu0 %v2870
        %2981 = vmatprep.subr.mxu0 0.0
        %2982 = vmatpush1.msra.mxu0 %v2869
        %2983 = vmatprep.subr.mxu0 0.0
        %2984 = vmatpush1.msra.mxu0 %v2868
        %2985 = vmatprep.subr.mxu0 0.0
        %2986 = vmatpush1.msra.mxu0 %v2867
        %2987 = vmatprep.subr.mxu0 0.0
        %2988 = vmatpush1.msra.mxu0 %v2866
        %2989 = vmatprep.subr.mxu0 0.0
        %2990 = vmatpush1.msra.mxu0 %v2865
        %2991 = vmatprep.subr.mxu0 0.0
        %2992 = vmatpush1.msra.mxu0 %v2864
        %2993 = vmatprep.subr.mxu0 0.0
        %2994 = vmatpush1.msra.mxu0 %v2863
        %2995 = vmatprep.subr.mxu0 0.0
        %2996 = vmatpush1.msra.mxu0 %v2862
        %2997 = vmatprep.subr.mxu0 0.0
        %2998 = vmatpush1.msra.mxu0 %v2861
        %2999 = vmatprep.subr.mxu0 0.0
        %3000 = vmatpush2.msra.mxu0 0.0
        %3001 = vmatprep.subr.mxu0 0.0
        %3002 = vmatpush2.msra.mxu0 0.0
        %3003 = vmatprep.subr.mxu0 0.0
        %3004 = vmatpush2.msra.mxu0 0.0
        %3005 = vmatprep.subr.mxu0 0.0
        %3006 = vmatpush2.msra.mxu0 0.0
        %3007 = vmatprep.subr.mxu0 0.0
        %3008 = vmatpush2.msra.mxu0 0.0
        %3009 = vmatprep.subr.mxu0 0.0
        %3010 = vmatpush2.msra.mxu0 0.0
        %3011 = vmatprep.subr.mxu0 0.0
        %3012 = vmatpush2.msra.mxu0 0.0
        %3013 = vmatprep.subr.mxu0 0.0
        %3014 = vmatpush2.msra.mxu0 0.0
        %3015 = vmatprep.subr.mxu0 0.0
        %3016 = vmatpush2.msra.mxu0 0.0
        %3017 = vmatprep.subr.mxu0 0.0
        %3018 = vmatpush2.msra.mxu0 0.0
        %3019 = vmatprep.subr.mxu0 0.0
        %3020 = vmatpush2.msra.mxu0 0.0
        %3021 = vmatprep.subr.mxu0 0.0
        %3022 = vmatpush2.msra.mxu0 0.0
        %3023 = vmatprep.subr.mxu0 0.0
        %3024 = vmatpush2.msra.mxu0 0.0
        %3025 = vmatprep.subr.mxu0 0.0
        %3026 = vmatpush2.msra.mxu0 0.0
        %3027 = vmatprep.subr.mxu0 0.0
        %3028 = vmatpush2.msra.mxu0 0.0
        %3029 = vmatprep.subr.mxu0 0.0
        %3030 = vmatpush2.msra.mxu0 0.0
        %3031 = vmatprep.mubr.f32.mxu0 0.0
        %3032 = vmatmul.mubr.f32.gmra.mxu0 %v2860
        %v3033 = vpop.f32.mrf.mxu0
        %v3034 = vadd.f32 %v2964, %v3033
        %v3035 = vpop.f32.mrf.mxu0
        %3036 = vdwg.mxu0
        %s3037 = sadd.s32 %s2858, 2
        %s3038 = scalar_lea.vmem [#allocation5], %s3037
        %v3039 = vld [vmem:[%s3038] sm:$0xf]
        %s3040 = scalar_lea.vmem %s5, 256
        %v3041 = vld [vmem:[%s3040] sm:$0xff]
        %v3042 = vld [vmem:[%s3040 + $0x8] sm:$0xff]
        %v3043 = vld [vmem:[%s3040 + $0x10] sm:$0xff]
        %v3044 = vld [vmem:[%s3040 + $0x18] sm:$0xff]
        %v3045 = vld [vmem:[%s3040 + $0x20] sm:$0xff]
        %v3046 = vld [vmem:[%s3040 + $0x28] sm:$0xff]
        %v3047 = vld [vmem:[%s3040 + $0x30] sm:$0xff]
        %v3048 = vld [vmem:[%s3040 + $0x38] sm:$0xff]
        %v3049 = vld [vmem:[%s3040 + $0x40] sm:$0xff]
        %v3050 = vld [vmem:[%s3040 + $0x48] sm:$0xff]
        %v3051 = vld [vmem:[%s3040 + $0x50] sm:$0xff]
        %v3052 = vld [vmem:[%s3040 + $0x58] sm:$0xff]
        %v3053 = vld [vmem:[%s3040 + $0x60] sm:$0xff]
        %v3054 = vld [vmem:[%s3040 + $0x68] sm:$0xff]
        %v3055 = vld [vmem:[%s3040 + $0x70] sm:$0xff]
        %v3056 = vld [vmem:[%s3040 + $0x78] sm:$0xff]
        %3057 = vmatprep.subr.mxu0 0.0
        %3058 = vmatpush1.msra.mxu0 %v3056
        %3059 = vmatprep.subr.mxu0 0.0
        %3060 = vmatpush1.msra.mxu0 %v3055
        %3061 = vmatprep.subr.mxu0 0.0
        %3062 = vmatpush1.msra.mxu0 %v3054
        %3063 = vmatprep.subr.mxu0 0.0
        %3064 = vmatpush1.msra.mxu0 %v3053
        %3065 = vmatprep.subr.mxu0 0.0
        %3066 = vmatpush1.msra.mxu0 %v3052
        %3067 = vmatprep.subr.mxu0 0.0
        %3068 = vmatpush1.msra.mxu0 %v3051
        %3069 = vmatprep.subr.mxu0 0.0
        %3070 = vmatpush1.msra.mxu0 %v3050
        %3071 = vmatprep.subr.mxu0 0.0
        %3072 = vmatpush1.msra.mxu0 %v3049
        %3073 = vmatprep.subr.mxu0 0.0
        %3074 = vmatpush1.msra.mxu0 %v3048
        %3075 = vmatprep.subr.mxu0 0.0
        %3076 = vmatpush1.msra.mxu0 %v3047
        %3077 = vmatprep.subr.mxu0 0.0
        %3078 = vmatpush1.msra.mxu0 %v3046
        %3079 = vmatprep.subr.mxu0 0.0
        %3080 = vmatpush1.msra.mxu0 %v3045
        %3081 = vmatprep.subr.mxu0 0.0
        %3082 = vmatpush1.msra.mxu0 %v3044
        %3083 = vmatprep.subr.mxu0 0.0
        %3084 = vmatpush1.msra.mxu0 %v3043
        %3085 = vmatprep.subr.mxu0 0.0
        %3086 = vmatpush1.msra.mxu0 %v3042
        %3087 = vmatprep.subr.mxu0 0.0
        %3088 = vmatpush1.msra.mxu0 %v3041
        %3089 = vmatprep.subr.mxu0 0.0
        %3090 = vmatpush2.msra.mxu0 0.0
        %3091 = vmatprep.subr.mxu0 0.0
        %3092 = vmatpush2.msra.mxu0 0.0
        %3093 = vmatprep.subr.mxu0 0.0
        %3094 = vmatpush2.msra.mxu0 0.0
        %3095 = vmatprep.subr.mxu0 0.0
        %3096 = vmatpush2.msra.mxu0 0.0
        %3097 = vmatprep.subr.mxu0 0.0
        %3098 = vmatpush2.msra.mxu0 0.0
        %3099 = vmatprep.subr.mxu0 0.0
        %3100 = vmatpush2.msra.mxu0 0.0
        %3101 = vmatprep.subr.mxu0 0.0
        %3102 = vmatpush2.msra.mxu0 0.0
        %3103 = vmatprep.subr.mxu0 0.0
        %3104 = vmatpush2.msra.mxu0 0.0
        %3105 = vmatprep.subr.mxu0 0.0
        %3106 = vmatpush2.msra.mxu0 0.0
        %3107 = vmatprep.subr.mxu0 0.0
        %3108 = vmatpush2.msra.mxu0 0.0
        %3109 = vmatprep.subr.mxu0 0.0
        %3110 = vmatpush2.msra.mxu0 0.0
        %3111 = vmatprep.subr.mxu0 0.0
        %3112 = vmatpush2.msra.mxu0 0.0
        %3113 = vmatprep.subr.mxu0 0.0
        %3114 = vmatpush2.msra.mxu0 0.0
        %3115 = vmatprep.subr.mxu0 0.0
        %3116 = vmatpush2.msra.mxu0 0.0
        %3117 = vmatprep.subr.mxu0 0.0
        %3118 = vmatpush2.msra.mxu0 0.0
        %3119 = vmatprep.subr.mxu0 0.0
        %3120 = vmatpush2.msra.mxu0 0.0
        %3121 = vmatprep.mubr.f32.mxu0 0.0
        %3122 = vmatmul.mubr.f32.gmra.mxu0 %v3039
        %v3123 = vpop.f32.mrf.mxu0
        %v3124 = vadd.f32 0.0, %v3123
        %v3125 = vpop.f32.mrf.mxu0
        %3126 = vdwg.mxu0
        %v3127 = vadd.f32 %v3034, %v3124
        %s3128 = sadd.s32 %s2853, 1
        %s3129 = smul.u32 %s3128, 6
        %s3130 = scalar_lea.vmem [#allocation5], %s3129
        %v3131 = vld [vmem:[%s3130] sm:$0xf]
        %s3132 = scalar_lea.vmem %s5, 384
        %v3133 = vld [vmem:[%s3132] sm:$0xff]
        %v3134 = vld [vmem:[%s3132 + $0x8] sm:$0xff]
        %v3135 = vld [vmem:[%s3132 + $0x10] sm:$0xff]
        %v3136 = vld [vmem:[%s3132 + $0x18] sm:$0xff]
        %v3137 = vld [vmem:[%s3132 + $0x20] sm:$0xff]
        %v3138 = vld [vmem:[%s3132 + $0x28] sm:$0xff]
        %v3139 = vld [vmem:[%s3132 + $0x30] sm:$0xff]
        %v3140 = vld [vmem:[%s3132 + $0x38] sm:$0xff]
        %v3141 = vld [vmem:[%s3132 + $0x40] sm:$0xff]
        %v3142 = vld [vmem:[%s3132 + $0x48] sm:$0xff]
        %v3143 = vld [vmem:[%s3132 + $0x50] sm:$0xff]
        %v3144 = vld [vmem:[%s3132 + $0x58] sm:$0xff]
        %v3145 = vld [vmem:[%s3132 + $0x60] sm:$0xff]
        %v3146 = vld [vmem:[%s3132 + $0x68] sm:$0xff]
        %v3147 = vld [vmem:[%s3132 + $0x70] sm:$0xff]
        %v3148 = vld [vmem:[%s3132 + $0x78] sm:$0xff]
        %3149 = vmatprep.subr.mxu0 0.0
        %3150 = vmatpush1.msra.mxu0 %v3148
        %3151 = vmatprep.subr.mxu0 0.0
        %3152 = vmatpush1.msra.mxu0 %v3147
        %3153 = vmatprep.subr.mxu0 0.0
        %3154 = vmatpush1.msra.mxu0 %v3146
        %3155 = vmatprep.subr.mxu0 0.0
        %3156 = vmatpush1.msra.mxu0 %v3145
        %3157 = vmatprep.subr.mxu0 0.0
        %3158 = vmatpush1.msra.mxu0 %v3144
        %3159 = vmatprep.subr.mxu0 0.0
        %3160 = vmatpush1.msra.mxu0 %v3143
        %3161 = vmatprep.subr.mxu0 0.0
        %3162 = vmatpush1.msra.mxu0 %v3142
        %3163 = vmatprep.subr.mxu0 0.0
        %3164 = vmatpush1.msra.mxu0 %v3141
        %3165 = vmatprep.subr.mxu0 0.0
        %3166 = vmatpush1.msra.mxu0 %v3140
        %3167 = vmatprep.subr.mxu0 0.0
        %3168 = vmatpush1.msra.mxu0 %v3139
        %3169 = vmatprep.subr.mxu0 0.0
        %3170 = vmatpush1.msra.mxu0 %v3138
        %3171 = vmatprep.subr.mxu0 0.0
        %3172 = vmatpush1.msra.mxu0 %v3137
        %3173 = vmatprep.subr.mxu0 0.0
        %3174 = vmatpush1.msra.mxu0 %v3136
        %3175 = vmatprep.subr.mxu0 0.0
        %3176 = vmatpush1.msra.mxu0 %v3135
        %3177 = vmatprep.subr.mxu0 0.0
        %3178 = vmatpush1.msra.mxu0 %v3134
        %3179 = vmatprep.subr.mxu0 0.0
        %3180 = vmatpush1.msra.mxu0 %v3133
        %3181 = vmatprep.subr.mxu0 0.0
        %3182 = vmatpush2.msra.mxu0 0.0
        %3183 = vmatprep.subr.mxu0 0.0
        %3184 = vmatpush2.msra.mxu0 0.0
        %3185 = vmatprep.subr.mxu0 0.0
        %3186 = vmatpush2.msra.mxu0 0.0
        %3187 = vmatprep.subr.mxu0 0.0
        %3188 = vmatpush2.msra.mxu0 0.0
        %3189 = vmatprep.subr.mxu0 0.0
        %3190 = vmatpush2.msra.mxu0 0.0
        %3191 = vmatprep.subr.mxu0 0.0
        %3192 = vmatpush2.msra.mxu0 0.0
        %3193 = vmatprep.subr.mxu0 0.0
        %3194 = vmatpush2.msra.mxu0 0.0
        %3195 = vmatprep.subr.mxu0 0.0
        %3196 = vmatpush2.msra.mxu0 0.0
        %3197 = vmatprep.subr.mxu0 0.0
        %3198 = vmatpush2.msra.mxu0 0.0
        %3199 = vmatprep.subr.mxu0 0.0
        %3200 = vmatpush2.msra.mxu0 0.0
        %3201 = vmatprep.subr.mxu0 0.0
        %3202 = vmatpush2.msra.mxu0 0.0
        %3203 = vmatprep.subr.mxu0 0.0
        %3204 = vmatpush2.msra.mxu0 0.0
        %3205 = vmatprep.subr.mxu0 0.0
        %3206 = vmatpush2.msra.mxu0 0.0
        %3207 = vmatprep.subr.mxu0 0.0
        %3208 = vmatpush2.msra.mxu0 0.0
        %3209 = vmatprep.subr.mxu0 0.0
        %3210 = vmatpush2.msra.mxu0 0.0
        %3211 = vmatprep.subr.mxu0 0.0
        %3212 = vmatpush2.msra.mxu0 0.0
        %3213 = vmatprep.mubr.f32.mxu0 0.0
        %3214 = vmatmul.mubr.f32.gmra.mxu0 %v3131
        %v3215 = vpop.f32.mrf.mxu0
        %v3216 = vadd.f32 0.0, %v3215
        %v3217 = vpop.f32.mrf.mxu0
        %3218 = vdwg.mxu0
        %v3219 = vadd.f32 %v3127, %v3216
        %s3220 = sadd.s32 %s3129, 1
        %s3221 = scalar_lea.vmem [#allocation5], %s3220
        %v3222 = vld [vmem:[%s3221] sm:$0xf]
        %s3223 = scalar_lea.vmem %s5, 512
        %v3224 = vld [vmem:[%s3223] sm:$0xff]
        %v3225 = vld [vmem:[%s3223 + $0x8] sm:$0xff]
        %v3226 = vld [vmem:[%s3223 + $0x10] sm:$0xff]
        %v3227 = vld [vmem:[%s3223 + $0x18] sm:$0xff]
        %v3228 = vld [vmem:[%s3223 + $0x20] sm:$0xff]
        %v3229 = vld [vmem:[%s3223 + $0x28] sm:$0xff]
        %v3230 = vld [vmem:[%s3223 + $0x30] sm:$0xff]
        %v3231 = vld [vmem:[%s3223 + $0x38] sm:$0xff]
        %v3232 = vld [vmem:[%s3223 + $0x40] sm:$0xff]
        %v3233 = vld [vmem:[%s3223 + $0x48] sm:$0xff]
        %v3234 = vld [vmem:[%s3223 + $0x50] sm:$0xff]
        %v3235 = vld [vmem:[%s3223 + $0x58] sm:$0xff]
        %v3236 = vld [vmem:[%s3223 + $0x60] sm:$0xff]
        %v3237 = vld [vmem:[%s3223 + $0x68] sm:$0xff]
        %v3238 = vld [vmem:[%s3223 + $0x70] sm:$0xff]
        %v3239 = vld [vmem:[%s3223 + $0x78] sm:$0xff]
        %3240 = vmatprep.subr.mxu0 0.0
        %3241 = vmatpush1.msra.mxu0 %v3239
        %3242 = vmatprep.subr.mxu0 0.0
        %3243 = vmatpush1.msra.mxu0 %v3238
        %3244 = vmatprep.subr.mxu0 0.0
        %3245 = vmatpush1.msra.mxu0 %v3237
        %3246 = vmatprep.subr.mxu0 0.0
        %3247 = vmatpush1.msra.mxu0 %v3236
        %3248 = vmatprep.subr.mxu0 0.0
        %3249 = vmatpush1.msra.mxu0 %v3235
        %3250 = vmatprep.subr.mxu0 0.0
        %3251 = vmatpush1.msra.mxu0 %v3234
        %3252 = vmatprep.subr.mxu0 0.0
        %3253 = vmatpush1.msra.mxu0 %v3233
        %3254 = vmatprep.subr.mxu0 0.0
        %3255 = vmatpush1.msra.mxu0 %v3232
        %3256 = vmatprep.subr.mxu0 0.0
        %3257 = vmatpush1.msra.mxu0 %v3231
        %3258 = vmatprep.subr.mxu0 0.0
        %3259 = vmatpush1.msra.mxu0 %v3230
        %3260 = vmatprep.subr.mxu0 0.0
        %3261 = vmatpush1.msra.mxu0 %v3229
        %3262 = vmatprep.subr.mxu0 0.0
        %3263 = vmatpush1.msra.mxu0 %v3228
        %3264 = vmatprep.subr.mxu0 0.0
        %3265 = vmatpush1.msra.mxu0 %v3227
        %3266 = vmatprep.subr.mxu0 0.0
        %3267 = vmatpush1.msra.mxu0 %v3226
        %3268 = vmatprep.subr.mxu0 0.0
        %3269 = vmatpush1.msra.mxu0 %v3225
        %3270 = vmatprep.subr.mxu0 0.0
        %3271 = vmatpush1.msra.mxu0 %v3224
        %3272 = vmatprep.subr.mxu0 0.0
        %3273 = vmatpush2.msra.mxu0 0.0
        %3274 = vmatprep.subr.mxu0 0.0
        %3275 = vmatpush2.msra.mxu0 0.0
        %3276 = vmatprep.subr.mxu0 0.0
        %3277 = vmatpush2.msra.mxu0 0.0
        %3278 = vmatprep.subr.mxu0 0.0
        %3279 = vmatpush2.msra.mxu0 0.0
        %3280 = vmatprep.subr.mxu0 0.0
        %3281 = vmatpush2.msra.mxu0 0.0
        %3282 = vmatprep.subr.mxu0 0.0
        %3283 = vmatpush2.msra.mxu0 0.0
        %3284 = vmatprep.subr.mxu0 0.0
        %3285 = vmatpush2.msra.mxu0 0.0
        %3286 = vmatprep.subr.mxu0 0.0
        %3287 = vmatpush2.msra.mxu0 0.0
        %3288 = vmatprep.subr.mxu0 0.0
        %3289 = vmatpush2.msra.mxu0 0.0
        %3290 = vmatprep.subr.mxu0 0.0
        %3291 = vmatpush2.msra.mxu0 0.0
        %3292 = vmatprep.subr.mxu0 0.0
        %3293 = vmatpush2.msra.mxu0 0.0
        %3294 = vmatprep.subr.mxu0 0.0
        %3295 = vmatpush2.msra.mxu0 0.0
        %3296 = vmatprep.subr.mxu0 0.0
        %3297 = vmatpush2.msra.mxu0 0.0
        %3298 = vmatprep.subr.mxu0 0.0
        %3299 = vmatpush2.msra.mxu0 0.0
        %3300 = vmatprep.subr.mxu0 0.0
        %3301 = vmatpush2.msra.mxu0 0.0
        %3302 = vmatprep.subr.mxu0 0.0
        %3303 = vmatpush2.msra.mxu0 0.0
        %3304 = vmatprep.mubr.f32.mxu0 0.0
        %3305 = vmatmul.mubr.f32.gmra.mxu0 %v3222
        %v3306 = vpop.f32.mrf.mxu0
        %v3307 = vadd.f32 0.0, %v3306
        %v3308 = vpop.f32.mrf.mxu0
        %3309 = vdwg.mxu0
        %v3310 = vadd.f32 %v3219, %v3307
        %s3311 = sadd.s32 %s3129, 2
        %s3312 = scalar_lea.vmem [#allocation5], %s3311
        %v3313 = vld [vmem:[%s3312] sm:$0xf]
        %s3314 = scalar_lea.vmem %s5, 640
        %v3315 = vld [vmem:[%s3314] sm:$0xff]
        %v3316 = vld [vmem:[%s3314 + $0x8] sm:$0xff]
        %v3317 = vld [vmem:[%s3314 + $0x10] sm:$0xff]
        %v3318 = vld [vmem:[%s3314 + $0x18] sm:$0xff]
        %v3319 = vld [vmem:[%s3314 + $0x20] sm:$0xff]
        %v3320 = vld [vmem:[%s3314 + $0x28] sm:$0xff]
        %v3321 = vld [vmem:[%s3314 + $0x30] sm:$0xff]
        %v3322 = vld [vmem:[%s3314 + $0x38] sm:$0xff]
        %v3323 = vld [vmem:[%s3314 + $0x40] sm:$0xff]
        %v3324 = vld [vmem:[%s3314 + $0x48] sm:$0xff]
        %v3325 = vld [vmem:[%s3314 + $0x50] sm:$0xff]
        %v3326 = vld [vmem:[%s3314 + $0x58] sm:$0xff]
        %v3327 = vld [vmem:[%s3314 + $0x60] sm:$0xff]
        %v3328 = vld [vmem:[%s3314 + $0x68] sm:$0xff]
        %v3329 = vld [vmem:[%s3314 + $0x70] sm:$0xff]
        %v3330 = vld [vmem:[%s3314 + $0x78] sm:$0xff]
        %3331 = vmatprep.subr.mxu0 0.0
        %3332 = vmatpush1.msra.mxu0 %v3330
        %3333 = vmatprep.subr.mxu0 0.0
        %3334 = vmatpush1.msra.mxu0 %v3329
        %3335 = vmatprep.subr.mxu0 0.0
        %3336 = vmatpush1.msra.mxu0 %v3328
        %3337 = vmatprep.subr.mxu0 0.0
        %3338 = vmatpush1.msra.mxu0 %v3327
        %3339 = vmatprep.subr.mxu0 0.0
        %3340 = vmatpush1.msra.mxu0 %v3326
        %3341 = vmatprep.subr.mxu0 0.0
        %3342 = vmatpush1.msra.mxu0 %v3325
        %3343 = vmatprep.subr.mxu0 0.0
        %3344 = vmatpush1.msra.mxu0 %v3324
        %3345 = vmatprep.subr.mxu0 0.0
        %3346 = vmatpush1.msra.mxu0 %v3323
        %3347 = vmatprep.subr.mxu0 0.0
        %3348 = vmatpush1.msra.mxu0 %v3322
        %3349 = vmatprep.subr.mxu0 0.0
        %3350 = vmatpush1.msra.mxu0 %v3321
        %3351 = vmatprep.subr.mxu0 0.0
        %3352 = vmatpush1.msra.mxu0 %v3320
        %3353 = vmatprep.subr.mxu0 0.0
        %3354 = vmatpush1.msra.mxu0 %v3319
        %3355 = vmatprep.subr.mxu0 0.0
        %3356 = vmatpush1.msra.mxu0 %v3318
        %3357 = vmatprep.subr.mxu0 0.0
        %3358 = vmatpush1.msra.mxu0 %v3317
        %3359 = vmatprep.subr.mxu0 0.0
        %3360 = vmatpush1.msra.mxu0 %v3316
        %3361 = vmatprep.subr.mxu0 0.0
        %3362 = vmatpush1.msra.mxu0 %v3315
        %3363 = vmatprep.subr.mxu0 0.0
        %3364 = vmatpush2.msra.mxu0 0.0
        %3365 = vmatprep.subr.mxu0 0.0
        %3366 = vmatpush2.msra.mxu0 0.0
        %3367 = vmatprep.subr.mxu0 0.0
        %3368 = vmatpush2.msra.mxu0 0.0
        %3369 = vmatprep.subr.mxu0 0.0
        %3370 = vmatpush2.msra.mxu0 0.0
        %3371 = vmatprep.subr.mxu0 0.0
        %3372 = vmatpush2.msra.mxu0 0.0
        %3373 = vmatprep.subr.mxu0 0.0
        %3374 = vmatpush2.msra.mxu0 0.0
        %3375 = vmatprep.subr.mxu0 0.0
        %3376 = vmatpush2.msra.mxu0 0.0
        %3377 = vmatprep.subr.mxu0 0.0
        %3378 = vmatpush2.msra.mxu0 0.0
        %3379 = vmatprep.subr.mxu0 0.0
        %3380 = vmatpush2.msra.mxu0 0.0
        %3381 = vmatprep.subr.mxu0 0.0
        %3382 = vmatpush2.msra.mxu0 0.0
        %3383 = vmatprep.subr.mxu0 0.0
        %3384 = vmatpush2.msra.mxu0 0.0
        %3385 = vmatprep.subr.mxu0 0.0
        %3386 = vmatpush2.msra.mxu0 0.0
        %3387 = vmatprep.subr.mxu0 0.0
        %3388 = vmatpush2.msra.mxu0 0.0
        %3389 = vmatprep.subr.mxu0 0.0
        %3390 = vmatpush2.msra.mxu0 0.0
        %3391 = vmatprep.subr.mxu0 0.0
        %3392 = vmatpush2.msra.mxu0 0.0
        %3393 = vmatprep.subr.mxu0 0.0
        %3394 = vmatpush2.msra.mxu0 0.0
        %3395 = vmatprep.mubr.f32.mxu0 0.0
        %3396 = vmatmul.mubr.f32.gmra.mxu0 %v3313
        %v3397 = vpop.f32.mrf.mxu0
        %v3398 = vadd.f32 0.0, %v3397
        %v3399 = vpop.f32.mrf.mxu0
        %3400 = vdwg.mxu0
        %v3401 = vadd.f32 %v3310, %v3398
        %s3402 = sadd.s32 %s2853, 2
        %s3403 = smul.u32 %s3402, 6
        %s3404 = scalar_lea.vmem [#allocation5], %s3403
        %v3405 = vld [vmem:[%s3404] sm:$0xf]
        %s3406 = scalar_lea.vmem %s5, 768
        %v3407 = vld [vmem:[%s3406] sm:$0xff]
        %v3408 = vld [vmem:[%s3406 + $0x8] sm:$0xff]
        %v3409 = vld [vmem:[%s3406 + $0x10] sm:$0xff]
        %v3410 = vld [vmem:[%s3406 + $0x18] sm:$0xff]
        %v3411 = vld [vmem:[%s3406 + $0x20] sm:$0xff]
        %v3412 = vld [vmem:[%s3406 + $0x28] sm:$0xff]
        %v3413 = vld [vmem:[%s3406 + $0x30] sm:$0xff]
        %v3414 = vld [vmem:[%s3406 + $0x38] sm:$0xff]
        %v3415 = vld [vmem:[%s3406 + $0x40] sm:$0xff]
        %v3416 = vld [vmem:[%s3406 + $0x48] sm:$0xff]
        %v3417 = vld [vmem:[%s3406 + $0x50] sm:$0xff]
        %v3418 = vld [vmem:[%s3406 + $0x58] sm:$0xff]
        %v3419 = vld [vmem:[%s3406 + $0x60] sm:$0xff]
        %v3420 = vld [vmem:[%s3406 + $0x68] sm:$0xff]
        %v3421 = vld [vmem:[%s3406 + $0x70] sm:$0xff]
        %v3422 = vld [vmem:[%s3406 + $0x78] sm:$0xff]
        %3423 = vmatprep.subr.mxu0 0.0
        %3424 = vmatpush1.msra.mxu0 %v3422
        %3425 = vmatprep.subr.mxu0 0.0
        %3426 = vmatpush1.msra.mxu0 %v3421
        %3427 = vmatprep.subr.mxu0 0.0
        %3428 = vmatpush1.msra.mxu0 %v3420
        %3429 = vmatprep.subr.mxu0 0.0
        %3430 = vmatpush1.msra.mxu0 %v3419
        %3431 = vmatprep.subr.mxu0 0.0
        %3432 = vmatpush1.msra.mxu0 %v3418
        %3433 = vmatprep.subr.mxu0 0.0
        %3434 = vmatpush1.msra.mxu0 %v3417
        %3435 = vmatprep.subr.mxu0 0.0
        %3436 = vmatpush1.msra.mxu0 %v3416
        %3437 = vmatprep.subr.mxu0 0.0
        %3438 = vmatpush1.msra.mxu0 %v3415
        %3439 = vmatprep.subr.mxu0 0.0
        %3440 = vmatpush1.msra.mxu0 %v3414
        %3441 = vmatprep.subr.mxu0 0.0
        %3442 = vmatpush1.msra.mxu0 %v3413
        %3443 = vmatprep.subr.mxu0 0.0
        %3444 = vmatpush1.msra.mxu0 %v3412
        %3445 = vmatprep.subr.mxu0 0.0
        %3446 = vmatpush1.msra.mxu0 %v3411
        %3447 = vmatprep.subr.mxu0 0.0
        %3448 = vmatpush1.msra.mxu0 %v3410
        %3449 = vmatprep.subr.mxu0 0.0
        %3450 = vmatpush1.msra.mxu0 %v3409
        %3451 = vmatprep.subr.mxu0 0.0
        %3452 = vmatpush1.msra.mxu0 %v3408
        %3453 = vmatprep.subr.mxu0 0.0
        %3454 = vmatpush1.msra.mxu0 %v3407
        %3455 = vmatprep.subr.mxu0 0.0
        %3456 = vmatpush2.msra.mxu0 0.0
        %3457 = vmatprep.subr.mxu0 0.0
        %3458 = vmatpush2.msra.mxu0 0.0
        %3459 = vmatprep.subr.mxu0 0.0
        %3460 = vmatpush2.msra.mxu0 0.0
        %3461 = vmatprep.subr.mxu0 0.0
        %3462 = vmatpush2.msra.mxu0 0.0
        %3463 = vmatprep.subr.mxu0 0.0
        %3464 = vmatpush2.msra.mxu0 0.0
        %3465 = vmatprep.subr.mxu0 0.0
        %3466 = vmatpush2.msra.mxu0 0.0
        %3467 = vmatprep.subr.mxu0 0.0
        %3468 = vmatpush2.msra.mxu0 0.0
        %3469 = vmatprep.subr.mxu0 0.0
        %3470 = vmatpush2.msra.mxu0 0.0
        %3471 = vmatprep.subr.mxu0 0.0
        %3472 = vmatpush2.msra.mxu0 0.0
        %3473 = vmatprep.subr.mxu0 0.0
        %3474 = vmatpush2.msra.mxu0 0.0
        %3475 = vmatprep.subr.mxu0 0.0
        %3476 = vmatpush2.msra.mxu0 0.0
        %3477 = vmatprep.subr.mxu0 0.0
        %3478 = vmatpush2.msra.mxu0 0.0
        %3479 = vmatprep.subr.mxu0 0.0
        %3480 = vmatpush2.msra.mxu0 0.0
        %3481 = vmatprep.subr.mxu0 0.0
        %3482 = vmatpush2.msra.mxu0 0.0
        %3483 = vmatprep.subr.mxu0 0.0
        %3484 = vmatpush2.msra.mxu0 0.0
        %3485 = vmatprep.subr.mxu0 0.0
        %3486 = vmatpush2.msra.mxu0 0.0
        %3487 = vmatprep.mubr.f32.mxu0 0.0
        %3488 = vmatmul.mubr.f32.gmra.mxu0 %v3405
        %v3489 = vpop.f32.mrf.mxu0
        %v3490 = vadd.f32 0.0, %v3489
        %v3491 = vpop.f32.mrf.mxu0
        %3492 = vdwg.mxu0
        %v3493 = vadd.f32 %v3401, %v3490
        %s3494 = sadd.s32 %s3403, 1
        %s3495 = scalar_lea.vmem [#allocation5], %s3494
        %v3496 = vld [vmem:[%s3495] sm:$0xf]
        %s3497 = scalar_lea.vmem %s5, 896
        %v3498 = vld [vmem:[%s3497] sm:$0xff]
        %v3499 = vld [vmem:[%s3497 + $0x8] sm:$0xff]
        %v3500 = vld [vmem:[%s3497 + $0x10] sm:$0xff]
        %v3501 = vld [vmem:[%s3497 + $0x18] sm:$0xff]
        %v3502 = vld [vmem:[%s3497 + $0x20] sm:$0xff]
        %v3503 = vld [vmem:[%s3497 + $0x28] sm:$0xff]
        %v3504 = vld [vmem:[%s3497 + $0x30] sm:$0xff]
        %v3505 = vld [vmem:[%s3497 + $0x38] sm:$0xff]
        %v3506 = vld [vmem:[%s3497 + $0x40] sm:$0xff]
        %v3507 = vld [vmem:[%s3497 + $0x48] sm:$0xff]
        %v3508 = vld [vmem:[%s3497 + $0x50] sm:$0xff]
        %v3509 = vld [vmem:[%s3497 + $0x58] sm:$0xff]
        %v3510 = vld [vmem:[%s3497 + $0x60] sm:$0xff]
        %v3511 = vld [vmem:[%s3497 + $0x68] sm:$0xff]
        %v3512 = vld [vmem:[%s3497 + $0x70] sm:$0xff]
        %v3513 = vld [vmem:[%s3497 + $0x78] sm:$0xff]
        %3514 = vmatprep.subr.mxu0 0.0
        %3515 = vmatpush1.msra.mxu0 %v3513
        %3516 = vmatprep.subr.mxu0 0.0
        %3517 = vmatpush1.msra.mxu0 %v3512
        %3518 = vmatprep.subr.mxu0 0.0
        %3519 = vmatpush1.msra.mxu0 %v3511
        %3520 = vmatprep.subr.mxu0 0.0
        %3521 = vmatpush1.msra.mxu0 %v3510
        %3522 = vmatprep.subr.mxu0 0.0
        %3523 = vmatpush1.msra.mxu0 %v3509
        %3524 = vmatprep.subr.mxu0 0.0
        %3525 = vmatpush1.msra.mxu0 %v3508
        %3526 = vmatprep.subr.mxu0 0.0
        %3527 = vmatpush1.msra.mxu0 %v3507
        %3528 = vmatprep.subr.mxu0 0.0
        %3529 = vmatpush1.msra.mxu0 %v3506
        %3530 = vmatprep.subr.mxu0 0.0
        %3531 = vmatpush1.msra.mxu0 %v3505
        %3532 = vmatprep.subr.mxu0 0.0
        %3533 = vmatpush1.msra.mxu0 %v3504
        %3534 = vmatprep.subr.mxu0 0.0
        %3535 = vmatpush1.msra.mxu0 %v3503
        %3536 = vmatprep.subr.mxu0 0.0
        %3537 = vmatpush1.msra.mxu0 %v3502
        %3538 = vmatprep.subr.mxu0 0.0
        %3539 = vmatpush1.msra.mxu0 %v3501
        %3540 = vmatprep.subr.mxu0 0.0
        %3541 = vmatpush1.msra.mxu0 %v3500
        %3542 = vmatprep.subr.mxu0 0.0
        %3543 = vmatpush1.msra.mxu0 %v3499
        %3544 = vmatprep.subr.mxu0 0.0
        %3545 = vmatpush1.msra.mxu0 %v3498
        %3546 = vmatprep.subr.mxu0 0.0
        %3547 = vmatpush2.msra.mxu0 0.0
        %3548 = vmatprep.subr.mxu0 0.0
        %3549 = vmatpush2.msra.mxu0 0.0
        %3550 = vmatprep.subr.mxu0 0.0
        %3551 = vmatpush2.msra.mxu0 0.0
        %3552 = vmatprep.subr.mxu0 0.0
        %3553 = vmatpush2.msra.mxu0 0.0
        %3554 = vmatprep.subr.mxu0 0.0
        %3555 = vmatpush2.msra.mxu0 0.0
        %3556 = vmatprep.subr.mxu0 0.0
        %3557 = vmatpush2.msra.mxu0 0.0
        %3558 = vmatprep.subr.mxu0 0.0
        %3559 = vmatpush2.msra.mxu0 0.0
        %3560 = vmatprep.subr.mxu0 0.0
        %3561 = vmatpush2.msra.mxu0 0.0
        %3562 = vmatprep.subr.mxu0 0.0
        %3563 = vmatpush2.msra.mxu0 0.0
        %3564 = vmatprep.subr.mxu0 0.0
        %3565 = vmatpush2.msra.mxu0 0.0
        %3566 = vmatprep.subr.mxu0 0.0
        %3567 = vmatpush2.msra.mxu0 0.0
        %3568 = vmatprep.subr.mxu0 0.0
        %3569 = vmatpush2.msra.mxu0 0.0
        %3570 = vmatprep.subr.mxu0 0.0
        %3571 = vmatpush2.msra.mxu0 0.0
        %3572 = vmatprep.subr.mxu0 0.0
        %3573 = vmatpush2.msra.mxu0 0.0
        %3574 = vmatprep.subr.mxu0 0.0
        %3575 = vmatpush2.msra.mxu0 0.0
        %3576 = vmatprep.subr.mxu0 0.0
        %3577 = vmatpush2.msra.mxu0 0.0
        %3578 = vmatprep.mubr.f32.mxu0 0.0
        %3579 = vmatmul.mubr.f32.gmra.mxu0 %v3496
        %v3580 = vpop.f32.mrf.mxu0
        %v3581 = vadd.f32 0.0, %v3580
        %v3582 = vpop.f32.mrf.mxu0
        %3583 = vdwg.mxu0
        %v3584 = vadd.f32 %v3493, %v3581
        %s3585 = sadd.s32 %s3403, 2
        %s3586 = scalar_lea.vmem [#allocation5], %s3585
        %v3587 = vld [vmem:[%s3586] sm:$0xf]
        %s3588 = scalar_lea.vmem %s5, 1024
        %v3589 = vld [vmem:[%s3588] sm:$0xff]
        %v3590 = vld [vmem:[%s3588 + $0x8] sm:$0xff]
        %v3591 = vld [vmem:[%s3588 + $0x10] sm:$0xff]
        %v3592 = vld [vmem:[%s3588 + $0x18] sm:$0xff]
        %v3593 = vld [vmem:[%s3588 + $0x20] sm:$0xff]
        %v3594 = vld [vmem:[%s3588 + $0x28] sm:$0xff]
        %v3595 = vld [vmem:[%s3588 + $0x30] sm:$0xff]
        %v3596 = vld [vmem:[%s3588 + $0x38] sm:$0xff]
        %v3597 = vld [vmem:[%s3588 + $0x40] sm:$0xff]
        %v3598 = vld [vmem:[%s3588 + $0x48] sm:$0xff]
        %v3599 = vld [vmem:[%s3588 + $0x50] sm:$0xff]
        %v3600 = vld [vmem:[%s3588 + $0x58] sm:$0xff]
        %v3601 = vld [vmem:[%s3588 + $0x60] sm:$0xff]
        %v3602 = vld [vmem:[%s3588 + $0x68] sm:$0xff]
        %v3603 = vld [vmem:[%s3588 + $0x70] sm:$0xff]
        %v3604 = vld [vmem:[%s3588 + $0x78] sm:$0xff]
        %3605 = vmatprep.subr.mxu0 0.0
        %3606 = vmatpush1.msra.mxu0 %v3604
        %3607 = vmatprep.subr.mxu0 0.0
        %3608 = vmatpush1.msra.mxu0 %v3603
        %3609 = vmatprep.subr.mxu0 0.0
        %3610 = vmatpush1.msra.mxu0 %v3602
        %3611 = vmatprep.subr.mxu0 0.0
        %3612 = vmatpush1.msra.mxu0 %v3601
        %3613 = vmatprep.subr.mxu0 0.0
        %3614 = vmatpush1.msra.mxu0 %v3600
        %3615 = vmatprep.subr.mxu0 0.0
        %3616 = vmatpush1.msra.mxu0 %v3599
        %3617 = vmatprep.subr.mxu0 0.0
        %3618 = vmatpush1.msra.mxu0 %v3598
        %3619 = vmatprep.subr.mxu0 0.0
        %3620 = vmatpush1.msra.mxu0 %v3597
        %3621 = vmatprep.subr.mxu0 0.0
        %3622 = vmatpush1.msra.mxu0 %v3596
        %3623 = vmatprep.subr.mxu0 0.0
        %3624 = vmatpush1.msra.mxu0 %v3595
        %3625 = vmatprep.subr.mxu0 0.0
        %3626 = vmatpush1.msra.mxu0 %v3594
        %3627 = vmatprep.subr.mxu0 0.0
        %3628 = vmatpush1.msra.mxu0 %v3593
        %3629 = vmatprep.subr.mxu0 0.0
        %3630 = vmatpush1.msra.mxu0 %v3592
        %3631 = vmatprep.subr.mxu0 0.0
        %3632 = vmatpush1.msra.mxu0 %v3591
        %3633 = vmatprep.subr.mxu0 0.0
        %3634 = vmatpush1.msra.mxu0 %v3590
        %3635 = vmatprep.subr.mxu0 0.0
        %3636 = vmatpush1.msra.mxu0 %v3589
        %3637 = vmatprep.subr.mxu0 0.0
        %3638 = vmatpush2.msra.mxu0 0.0
        %3639 = vmatprep.subr.mxu0 0.0
        %3640 = vmatpush2.msra.mxu0 0.0
        %3641 = vmatprep.subr.mxu0 0.0
        %3642 = vmatpush2.msra.mxu0 0.0
        %3643 = vmatprep.subr.mxu0 0.0
        %3644 = vmatpush2.msra.mxu0 0.0
        %3645 = vmatprep.subr.mxu0 0.0
        %3646 = vmatpush2.msra.mxu0 0.0
        %3647 = vmatprep.subr.mxu0 0.0
        %3648 = vmatpush2.msra.mxu0 0.0
        %3649 = vmatprep.subr.mxu0 0.0
        %3650 = vmatpush2.msra.mxu0 0.0
        %3651 = vmatprep.subr.mxu0 0.0
        %3652 = vmatpush2.msra.mxu0 0.0
        %3653 = vmatprep.subr.mxu0 0.0
        %3654 = vmatpush2.msra.mxu0 0.0
        %3655 = vmatprep.subr.mxu0 0.0
        %3656 = vmatpush2.msra.mxu0 0.0
        %3657 = vmatprep.subr.mxu0 0.0
        %3658 = vmatpush2.msra.mxu0 0.0
        %3659 = vmatprep.subr.mxu0 0.0
        %3660 = vmatpush2.msra.mxu0 0.0
        %3661 = vmatprep.subr.mxu0 0.0
        %3662 = vmatpush2.msra.mxu0 0.0
        %3663 = vmatprep.subr.mxu0 0.0
        %3664 = vmatpush2.msra.mxu0 0.0
        %3665 = vmatprep.subr.mxu0 0.0
        %3666 = vmatpush2.msra.mxu0 0.0
        %3667 = vmatprep.subr.mxu0 0.0
        %3668 = vmatpush2.msra.mxu0 0.0
        %3669 = vmatprep.mubr.f32.mxu0 0.0
        %3670 = vmatmul.mubr.f32.gmra.mxu0 %v3587
        %v3671 = vpop.f32.mrf.mxu0
        %v3672 = vadd.f32 0.0, %v3671
        %v3673 = vpop.f32.mrf.mxu0
        %3674 = vdwg.mxu0
        %v3675 = vadd.f32 %v3584, %v3672
        %v3677 = vlaneseq
        %v3678 = vshrl.u32 %v3677, 7
        %v3679 = vsub.s32 0, %v3678
        %v3680 = vrot.slane %v2851, %v3679
        %v3682 = vadd.f32 %v3675, %v3680
        %v3683 = vmax.f32 %v3682, 0.0
        %s3684 = smul.u32 %s2853, 4
        %s3685 = scalar_lea.vmem [#allocation6], %s3684
        %3686 = vst [vmem:[%s3685] sm:$0xf] %v3683
      $region99: #{lenet5_forward.1} parent=79 // loop_footer
        %s2857 = sadd.s32 1, %s2853
      $region100: #{lenet5_forward.1} parent=79 // loop_footer_branch
        %2852 = sbr.rel target = $region96
      $region101: #{lenet5_forward.1} parent=79 // loop_exit
        _
      %v3687 = vld [vmem:[#allocation6] ss:$2 sm:$0x3]
      %s3688 = scalar_lea.vmem [#allocation6], 1
      %v3689 = vld [vmem:[%s3688] ss:$2 sm:$0x3]
      %s3690 = scalar_lea.vmem [#allocation6], 4
      %v3691 = vld [vmem:[%s3690] ss:$2 sm:$0x3]
      %s3692 = scalar_lea.vmem [#allocation6], 5
      %v3693 = vld [vmem:[%s3692] ss:$2 sm:$0x3]
      %v3694 = vmax.f32 %v3687, %v3689
      %v3695 = vmax.f32 %v3691, %v3693
      %v3696 = vmax.f32 %v3694, %v3695
      %3697 = vst [vmem:[#allocation7] sm:$0x3] %v3696
      %s3698 = scalar_lea.vmem [#allocation6], 8
      %v3699 = vld [vmem:[%s3698] ss:$2 sm:$0x3]
      %s3700 = scalar_lea.vmem [#allocation6], 9
      %v3701 = vld [vmem:[%s3700] ss:$2 sm:$0x3]
      %s3702 = scalar_lea.vmem [#allocation6], 12
      %v3703 = vld [vmem:[%s3702] ss:$2 sm:$0x3]
      %s3704 = scalar_lea.vmem [#allocation6], 13
      %v3705 = vld [vmem:[%s3704] ss:$2 sm:$0x3]
      %v3706 = vmax.f32 %v3699, %v3701
      %v3707 = vmax.f32 %v3703, %v3705
      %v3708 = vmax.f32 %v3706, %v3707
      %3709 = vst [vmem:[#allocation7 + $0x2] sm:$0x3] %v3708
      %v3710 = vld [vmem:[#allocation7] sm:$0xf]
      %v3711 = vld [vmem:[%s8] sm:$0x1]
      %v3712 = vld [vmem:[%s7] sm:$0xff]
      %v3713 = vld [vmem:[%s7 + $0x8] sm:$0xff]
      %v3714 = vld [vmem:[%s7 + $0x10] sm:$0xff]
      %v3715 = vld [vmem:[%s7 + $0x18] sm:$0xff]
      %v3716 = vld [vmem:[%s7 + $0x20] sm:$0xff]
      %v3717 = vld [vmem:[%s7 + $0x28] sm:$0xff]
      %v3718 = vld [vmem:[%s7 + $0x30] sm:$0xff]
      %v3719 = vld [vmem:[%s7 + $0x38] sm:$0xff]
      %v3720 = vld [vmem:[%s7 + $0x40] sm:$0xff]
      %v3721 = vld [vmem:[%s7 + $0x48] sm:$0xff]
      %v3722 = vld [vmem:[%s7 + $0x50] sm:$0xff]
      %v3723 = vld [vmem:[%s7 + $0x58] sm:$0xff]
      %v3724 = vld [vmem:[%s7 + $0x60] sm:$0xff]
      %v3725 = vld [vmem:[%s7 + $0x68] sm:$0xff]
      %v3726 = vld [vmem:[%s7 + $0x70] sm:$0xff]
      %v3727 = vld [vmem:[%s7 + $0x78] sm:$0xff]
      %3728 = vmatprep.subr.mxu0 0.0
      %3729 = vmatpush1.msra.mxu0 %v3727
      %3730 = vmatprep.subr.mxu0 0.0
      %3731 = vmatpush1.msra.mxu0 %v3726
      %3732 = vmatprep.subr.mxu0 0.0
      %3733 = vmatpush1.msra.mxu0 %v3725
      %3734 = vmatprep.subr.mxu0 0.0
      %3735 = vmatpush1.msra.mxu0 %v3724
      %3736 = vmatprep.subr.mxu0 0.0
      %3737 = vmatpush1.msra.mxu0 %v3723
      %3738 = vmatprep.subr.mxu0 0.0
      %3739 = vmatpush1.msra.mxu0 %v3722
      %3740 = vmatprep.subr.mxu0 0.0
      %3741 = vmatpush1.msra.mxu0 %v3721
      %3742 = vmatprep.subr.mxu0 0.0
      %3743 = vmatpush1.msra.mxu0 %v3720
      %3744 = vmatprep.subr.mxu0 0.0
      %3745 = vmatpush1.msra.mxu0 %v3719
      %3746 = vmatprep.subr.mxu0 0.0
      %3747 = vmatpush1.msra.mxu0 %v3718
      %3748 = vmatprep.subr.mxu0 0.0
      %3749 = vmatpush1.msra.mxu0 %v3717
      %3750 = vmatprep.subr.mxu0 0.0
      %3751 = vmatpush1.msra.mxu0 %v3716
      %3752 = vmatprep.subr.mxu0 0.0
      %3753 = vmatpush1.msra.mxu0 %v3715
      %3754 = vmatprep.subr.mxu0 0.0
      %3755 = vmatpush1.msra.mxu0 %v3714
      %3756 = vmatprep.subr.mxu0 0.0
      %3757 = vmatpush1.msra.mxu0 %v3713
      %3758 = vmatprep.subr.mxu0 0.0
      %3759 = vmatpush1.msra.mxu0 %v3712
      %3760 = vmatprep.subr.mxu0 0.0
      %3761 = vmatpush2.msra.mxu0 0.0
      %3762 = vmatprep.subr.mxu0 0.0
      %3763 = vmatpush2.msra.mxu0 0.0
      %3764 = vmatprep.subr.mxu0 0.0
      %3765 = vmatpush2.msra.mxu0 0.0
      %3766 = vmatprep.subr.mxu0 0.0
      %3767 = vmatpush2.msra.mxu0 0.0
      %3768 = vmatprep.subr.mxu0 0.0
      %3769 = vmatpush2.msra.mxu0 0.0
      %3770 = vmatprep.subr.mxu0 0.0
      %3771 = vmatpush2.msra.mxu0 0.0
      %3772 = vmatprep.subr.mxu0 0.0
      %3773 = vmatpush2.msra.mxu0 0.0
      %3774 = vmatprep.subr.mxu0 0.0
      %3775 = vmatpush2.msra.mxu0 0.0
      %3776 = vmatprep.subr.mxu0 0.0
      %3777 = vmatpush2.msra.mxu0 0.0
      %3778 = vmatprep.subr.mxu0 0.0
      %3779 = vmatpush2.msra.mxu0 0.0
      %3780 = vmatprep.subr.mxu0 0.0
      %3781 = vmatpush2.msra.mxu0 0.0
      %3782 = vmatprep.subr.mxu0 0.0
      %3783 = vmatpush2.msra.mxu0 0.0
      %3784 = vmatprep.subr.mxu0 0.0
      %3785 = vmatpush2.msra.mxu0 0.0
      %3786 = vmatprep.subr.mxu0 0.0
      %3787 = vmatpush2.msra.mxu0 0.0
      %3788 = vmatprep.subr.mxu0 0.0
      %3789 = vmatpush2.msra.mxu0 0.0
      %3790 = vmatprep.subr.mxu0 0.0
      %3791 = vmatpush2.msra.mxu0 0.0
      %3792 = vmatprep.mubr.f32.mxu0 0.0
      %3793 = vmatmul.mubr.f32.gmra.mxu0 %v3710
      %v3794 = vpop.f32.mrf.mxu0
      %v3795 = vadd.f32 0.0, %v3794
      %v3796 = vpop.f32.mrf.mxu0
      %3797 = vdwg.mxu0
      %v3798 = vadd.f32 %v3711, %v3795
      %s3799 = scalar_lea.vmem %s7, 128
      %v3800 = vld [vmem:[%s3799] sm:$0xff]
      %v3801 = vld [vmem:[%s3799 + $0x8] sm:$0xff]
      %v3802 = vld [vmem:[%s3799 + $0x10] sm:$0xff]
      %v3803 = vld [vmem:[%s3799 + $0x18] sm:$0xff]
      %v3804 = vld [vmem:[%s3799 + $0x20] sm:$0xff]
      %v3805 = vld [vmem:[%s3799 + $0x28] sm:$0xff]
      %v3806 = vld [vmem:[%s3799 + $0x30] sm:$0xff]
      %v3807 = vld [vmem:[%s3799 + $0x38] sm:$0xff]
      %v3808 = vld [vmem:[%s3799 + $0x40] sm:$0xff]
      %v3809 = vld [vmem:[%s3799 + $0x48] sm:$0xff]
      %v3810 = vld [vmem:[%s3799 + $0x50] sm:$0xff]
      %v3811 = vld [vmem:[%s3799 + $0x58] sm:$0xff]
      %v3812 = vld [vmem:[%s3799 + $0x60] sm:$0xff]
      %v3813 = vld [vmem:[%s3799 + $0x68] sm:$0xff]
      %v3814 = vld [vmem:[%s3799 + $0x70] sm:$0xff]
      %v3815 = vld [vmem:[%s3799 + $0x78] sm:$0xff]
      %v3817 = vrot.slane %v3710, 1
      %3819 = vmatprep.subr.mxu0 0.0
      %3820 = vmatpush1.msra.mxu0 %v3815
      %3821 = vmatprep.subr.mxu0 0.0
      %3822 = vmatpush1.msra.mxu0 %v3814
      %3823 = vmatprep.subr.mxu0 0.0
      %3824 = vmatpush1.msra.mxu0 %v3813
      %3825 = vmatprep.subr.mxu0 0.0
      %3826 = vmatpush1.msra.mxu0 %v3812
      %3827 = vmatprep.subr.mxu0 0.0
      %3828 = vmatpush1.msra.mxu0 %v3811
      %3829 = vmatprep.subr.mxu0 0.0
      %3830 = vmatpush1.msra.mxu0 %v3810
      %3831 = vmatprep.subr.mxu0 0.0
      %3832 = vmatpush1.msra.mxu0 %v3809
      %3833 = vmatprep.subr.mxu0 0.0
      %3834 = vmatpush1.msra.mxu0 %v3808
      %3835 = vmatprep.subr.mxu0 0.0
      %3836 = vmatpush1.msra.mxu0 %v3807
      %3837 = vmatprep.subr.mxu0 0.0
      %3838 = vmatpush1.msra.mxu0 %v3806
      %3839 = vmatprep.subr.mxu0 0.0
      %3840 = vmatpush1.msra.mxu0 %v3805
      %3841 = vmatprep.subr.mxu0 0.0
      %3842 = vmatpush1.msra.mxu0 %v3804
      %3843 = vmatprep.subr.mxu0 0.0
      %3844 = vmatpush1.msra.mxu0 %v3803
      %3845 = vmatprep.subr.mxu0 0.0
      %3846 = vmatpush1.msra.mxu0 %v3802
      %3847 = vmatprep.subr.mxu0 0.0
      %3848 = vmatpush1.msra.mxu0 %v3801
      %3849 = vmatprep.subr.mxu0 0.0
      %3850 = vmatpush1.msra.mxu0 %v3800
      %3851 = vmatprep.subr.mxu0 0.0
      %3852 = vmatpush2.msra.mxu0 0.0
      %3853 = vmatprep.subr.mxu0 0.0
      %3854 = vmatpush2.msra.mxu0 0.0
      %3855 = vmatprep.subr.mxu0 0.0
      %3856 = vmatpush2.msra.mxu0 0.0
      %3857 = vmatprep.subr.mxu0 0.0
      %3858 = vmatpush2.msra.mxu0 0.0
      %3859 = vmatprep.subr.mxu0 0.0
      %3860 = vmatpush2.msra.mxu0 0.0
      %3861 = vmatprep.subr.mxu0 0.0
      %3862 = vmatpush2.msra.mxu0 0.0
      %3863 = vmatprep.subr.mxu0 0.0
      %3864 = vmatpush2.msra.mxu0 0.0
      %3865 = vmatprep.subr.mxu0 0.0
      %3866 = vmatpush2.msra.mxu0 0.0
      %3867 = vmatprep.subr.mxu0 0.0
      %3868 = vmatpush2.msra.mxu0 0.0
      %3869 = vmatprep.subr.mxu0 0.0
      %3870 = vmatpush2.msra.mxu0 0.0
      %3871 = vmatprep.subr.mxu0 0.0
      %3872 = vmatpush2.msra.mxu0 0.0
      %3873 = vmatprep.subr.mxu0 0.0
      %3874 = vmatpush2.msra.mxu0 0.0
      %3875 = vmatprep.subr.mxu0 0.0
      %3876 = vmatpush2.msra.mxu0 0.0
      %3877 = vmatprep.subr.mxu0 0.0
      %3878 = vmatpush2.msra.mxu0 0.0
      %3879 = vmatprep.subr.mxu0 0.0
      %3880 = vmatpush2.msra.mxu0 0.0
      %3881 = vmatprep.subr.mxu0 0.0
      %3882 = vmatpush2.msra.mxu0 0.0
      %3883 = vmatprep.mubr.f32.mxu0 0.0
      %3884 = vmatmul.mubr.f32.gmra.mxu0 %v3817
      %v3885 = vpop.f32.mrf.mxu0
      %v3886 = vadd.f32 0.0, %v3885
      %v3887 = vpop.f32.mrf.mxu0
      %3888 = vdwg.mxu0
      %v3889 = vadd.f32 %v3798, %v3886
      %s3890 = scalar_lea.vmem %s7, 256
      %v3891 = vld [vmem:[%s3890] sm:$0xff]
      %v3892 = vld [vmem:[%s3890 + $0x8] sm:$0xff]
      %v3893 = vld [vmem:[%s3890 + $0x10] sm:$0xff]
      %v3894 = vld [vmem:[%s3890 + $0x18] sm:$0xff]
      %v3895 = vld [vmem:[%s3890 + $0x20] sm:$0xff]
      %v3896 = vld [vmem:[%s3890 + $0x28] sm:$0xff]
      %v3897 = vld [vmem:[%s3890 + $0x30] sm:$0xff]
      %v3898 = vld [vmem:[%s3890 + $0x38] sm:$0xff]
      %v3899 = vld [vmem:[%s3890 + $0x40] sm:$0xff]
      %v3900 = vld [vmem:[%s3890 + $0x48] sm:$0xff]
      %v3901 = vld [vmem:[%s3890 + $0x50] sm:$0xff]
      %v3902 = vld [vmem:[%s3890 + $0x58] sm:$0xff]
      %v3903 = vld [vmem:[%s3890 + $0x60] sm:$0xff]
      %v3904 = vld [vmem:[%s3890 + $0x68] sm:$0xff]
      %v3905 = vld [vmem:[%s3890 + $0x70] sm:$0xff]
      %v3906 = vld [vmem:[%s3890 + $0x78] sm:$0xff]
      %v3907 = vrot.slane %v3710, 2
      %3909 = vmatprep.subr.mxu0 0.0
      %3910 = vmatpush1.msra.mxu0 %v3906
      %3911 = vmatprep.subr.mxu0 0.0
      %3912 = vmatpush1.msra.mxu0 %v3905
      %3913 = vmatprep.subr.mxu0 0.0
      %3914 = vmatpush1.msra.mxu0 %v3904
      %3915 = vmatprep.subr.mxu0 0.0
      %3916 = vmatpush1.msra.mxu0 %v3903
      %3917 = vmatprep.subr.mxu0 0.0
      %3918 = vmatpush1.msra.mxu0 %v3902
      %3919 = vmatprep.subr.mxu0 0.0
      %3920 = vmatpush1.msra.mxu0 %v3901
      %3921 = vmatprep.subr.mxu0 0.0
      %3922 = vmatpush1.msra.mxu0 %v3900
      %3923 = vmatprep.subr.mxu0 0.0
      %3924 = vmatpush1.msra.mxu0 %v3899
      %3925 = vmatprep.subr.mxu0 0.0
      %3926 = vmatpush1.msra.mxu0 %v3898
      %3927 = vmatprep.subr.mxu0 0.0
      %3928 = vmatpush1.msra.mxu0 %v3897
      %3929 = vmatprep.subr.mxu0 0.0
      %3930 = vmatpush1.msra.mxu0 %v3896
      %3931 = vmatprep.subr.mxu0 0.0
      %3932 = vmatpush1.msra.mxu0 %v3895
      %3933 = vmatprep.subr.mxu0 0.0
      %3934 = vmatpush1.msra.mxu0 %v3894
      %3935 = vmatprep.subr.mxu0 0.0
      %3936 = vmatpush1.msra.mxu0 %v3893
      %3937 = vmatprep.subr.mxu0 0.0
      %3938 = vmatpush1.msra.mxu0 %v3892
      %3939 = vmatprep.subr.mxu0 0.0
      %3940 = vmatpush1.msra.mxu0 %v3891
      %3941 = vmatprep.subr.mxu0 0.0
      %3942 = vmatpush2.msra.mxu0 0.0
      %3943 = vmatprep.subr.mxu0 0.0
      %3944 = vmatpush2.msra.mxu0 0.0
      %3945 = vmatprep.subr.mxu0 0.0
      %3946 = vmatpush2.msra.mxu0 0.0
      %3947 = vmatprep.subr.mxu0 0.0
      %3948 = vmatpush2.msra.mxu0 0.0
      %3949 = vmatprep.subr.mxu0 0.0
      %3950 = vmatpush2.msra.mxu0 0.0
      %3951 = vmatprep.subr.mxu0 0.0
      %3952 = vmatpush2.msra.mxu0 0.0
      %3953 = vmatprep.subr.mxu0 0.0
      %3954 = vmatpush2.msra.mxu0 0.0
      %3955 = vmatprep.subr.mxu0 0.0
      %3956 = vmatpush2.msra.mxu0 0.0
      %3957 = vmatprep.subr.mxu0 0.0
      %3958 = vmatpush2.msra.mxu0 0.0
      %3959 = vmatprep.subr.mxu0 0.0
      %3960 = vmatpush2.msra.mxu0 0.0
      %3961 = vmatprep.subr.mxu0 0.0
      %3962 = vmatpush2.msra.mxu0 0.0
      %3963 = vmatprep.subr.mxu0 0.0
      %3964 = vmatpush2.msra.mxu0 0.0
      %3965 = vmatprep.subr.mxu0 0.0
      %3966 = vmatpush2.msra.mxu0 0.0
      %3967 = vmatprep.subr.mxu0 0.0
      %3968 = vmatpush2.msra.mxu0 0.0
      %3969 = vmatprep.subr.mxu0 0.0
      %3970 = vmatpush2.msra.mxu0 0.0
      %3971 = vmatprep.subr.mxu0 0.0
      %3972 = vmatpush2.msra.mxu0 0.0
      %3973 = vmatprep.mubr.f32.mxu0 0.0
      %3974 = vmatmul.mubr.f32.gmra.mxu0 %v3907
      %v3975 = vpop.f32.mrf.mxu0
      %v3976 = vadd.f32 0.0, %v3975
      %v3977 = vpop.f32.mrf.mxu0
      %3978 = vdwg.mxu0
      %v3979 = vadd.f32 %v3889, %v3976
      %s3980 = scalar_lea.vmem %s7, 384
      %v3981 = vld [vmem:[%s3980] sm:$0xff]
      %v3982 = vld [vmem:[%s3980 + $0x8] sm:$0xff]
      %v3983 = vld [vmem:[%s3980 + $0x10] sm:$0xff]
      %v3984 = vld [vmem:[%s3980 + $0x18] sm:$0xff]
      %v3985 = vld [vmem:[%s3980 + $0x20] sm:$0xff]
      %v3986 = vld [vmem:[%s3980 + $0x28] sm:$0xff]
      %v3987 = vld [vmem:[%s3980 + $0x30] sm:$0xff]
      %v3988 = vld [vmem:[%s3980 + $0x38] sm:$0xff]
      %v3989 = vld [vmem:[%s3980 + $0x40] sm:$0xff]
      %v3990 = vld [vmem:[%s3980 + $0x48] sm:$0xff]
      %v3991 = vld [vmem:[%s3980 + $0x50] sm:$0xff]
      %v3992 = vld [vmem:[%s3980 + $0x58] sm:$0xff]
      %v3993 = vld [vmem:[%s3980 + $0x60] sm:$0xff]
      %v3994 = vld [vmem:[%s3980 + $0x68] sm:$0xff]
      %v3995 = vld [vmem:[%s3980 + $0x70] sm:$0xff]
      %v3996 = vld [vmem:[%s3980 + $0x78] sm:$0xff]
      %v3997 = vrot.slane %v3710, 3
      %3999 = vmatprep.subr.mxu0 0.0
      %4000 = vmatpush1.msra.mxu0 %v3996
      %4001 = vmatprep.subr.mxu0 0.0
      %4002 = vmatpush1.msra.mxu0 %v3995
      %4003 = vmatprep.subr.mxu0 0.0
      %4004 = vmatpush1.msra.mxu0 %v3994
      %4005 = vmatprep.subr.mxu0 0.0
      %4006 = vmatpush1.msra.mxu0 %v3993
      %4007 = vmatprep.subr.mxu0 0.0
      %4008 = vmatpush1.msra.mxu0 %v3992
      %4009 = vmatprep.subr.mxu0 0.0
      %4010 = vmatpush1.msra.mxu0 %v3991
      %4011 = vmatprep.subr.mxu0 0.0
      %4012 = vmatpush1.msra.mxu0 %v3990
      %4013 = vmatprep.subr.mxu0 0.0
      %4014 = vmatpush1.msra.mxu0 %v3989
      %4015 = vmatprep.subr.mxu0 0.0
      %4016 = vmatpush1.msra.mxu0 %v3988
      %4017 = vmatprep.subr.mxu0 0.0
      %4018 = vmatpush1.msra.mxu0 %v3987
      %4019 = vmatprep.subr.mxu0 0.0
      %4020 = vmatpush1.msra.mxu0 %v3986
      %4021 = vmatprep.subr.mxu0 0.0
      %4022 = vmatpush1.msra.mxu0 %v3985
      %4023 = vmatprep.subr.mxu0 0.0
      %4024 = vmatpush1.msra.mxu0 %v3984
      %4025 = vmatprep.subr.mxu0 0.0
      %4026 = vmatpush1.msra.mxu0 %v3983
      %4027 = vmatprep.subr.mxu0 0.0
      %4028 = vmatpush1.msra.mxu0 %v3982
      %4029 = vmatprep.subr.mxu0 0.0
      %4030 = vmatpush1.msra.mxu0 %v3981
      %4031 = vmatprep.subr.mxu0 0.0
      %4032 = vmatpush2.msra.mxu0 0.0
      %4033 = vmatprep.subr.mxu0 0.0
      %4034 = vmatpush2.msra.mxu0 0.0
      %4035 = vmatprep.subr.mxu0 0.0
      %4036 = vmatpush2.msra.mxu0 0.0
      %4037 = vmatprep.subr.mxu0 0.0
      %4038 = vmatpush2.msra.mxu0 0.0
      %4039 = vmatprep.subr.mxu0 0.0
      %4040 = vmatpush2.msra.mxu0 0.0
      %4041 = vmatprep.subr.mxu0 0.0
      %4042 = vmatpush2.msra.mxu0 0.0
      %4043 = vmatprep.subr.mxu0 0.0
      %4044 = vmatpush2.msra.mxu0 0.0
      %4045 = vmatprep.subr.mxu0 0.0
      %4046 = vmatpush2.msra.mxu0 0.0
      %4047 = vmatprep.subr.mxu0 0.0
      %4048 = vmatpush2.msra.mxu0 0.0
      %4049 = vmatprep.subr.mxu0 0.0
      %4050 = vmatpush2.msra.mxu0 0.0
      %4051 = vmatprep.subr.mxu0 0.0
      %4052 = vmatpush2.msra.mxu0 0.0
      %4053 = vmatprep.subr.mxu0 0.0
      %4054 = vmatpush2.msra.mxu0 0.0
      %4055 = vmatprep.subr.mxu0 0.0
      %4056 = vmatpush2.msra.mxu0 0.0
      %4057 = vmatprep.subr.mxu0 0.0
      %4058 = vmatpush2.msra.mxu0 0.0
      %4059 = vmatprep.subr.mxu0 0.0
      %4060 = vmatpush2.msra.mxu0 0.0
      %4061 = vmatprep.subr.mxu0 0.0
      %4062 = vmatpush2.msra.mxu0 0.0
      %4063 = vmatprep.mubr.f32.mxu0 0.0
      %4064 = vmatmul.mubr.f32.gmra.mxu0 %v3997
      %v4065 = vpop.f32.mrf.mxu0
      %v4066 = vadd.f32 0.0, %v4065
      %v4067 = vpop.f32.mrf.mxu0
      %4068 = vdwg.mxu0
      %v4069 = vadd.f32 %v3979, %v4066
      %v4070 = vmax.f32 %v4069, 0.0
      %v4071 = vld [vmem:[%s9] sm:$0xff]
      %v4072 = vld [vmem:[%s9 + $0x8] sm:$0xff]
      %v4073 = vld [vmem:[%s9 + $0x10] sm:$0xff]
      %v4074 = vld [vmem:[%s9 + $0x18] sm:$0xff]
      %v4075 = vld [vmem:[%s9 + $0x20] sm:$0xff]
      %v4076 = vld [vmem:[%s9 + $0x28] sm:$0xff]
      %v4077 = vld [vmem:[%s9 + $0x30] sm:$0xff]
      %v4078 = vld [vmem:[%s9 + $0x38] sm:$0xff]
      %v4079 = vld [vmem:[%s9 + $0x40] sm:$0xff]
      %v4080 = vld [vmem:[%s9 + $0x48] sm:$0xff]
      %v4081 = vld [vmem:[%s9 + $0x50] sm:$0xff]
      %v4082 = vld [vmem:[%s9 + $0x58] sm:$0xff]
      %v4083 = vld [vmem:[%s9 + $0x60] sm:$0xff]
      %v4084 = vld [vmem:[%s9 + $0x68] sm:$0xff]
      %v4085 = vld [vmem:[%s9 + $0x70] sm:$0xff]
      %v4086 = vld [vmem:[%s9 + $0x78] sm:$0xff]
      %v4087 = vld [vmem:[%s10] sm:$0x1]
      %4088 = vmatprep.subr.mxu0 0.0
      %4089 = vmatpush1.msra.mxu0 %v4086
      %4090 = vmatprep.subr.mxu0 0.0
      %4091 = vmatpush1.msra.mxu0 %v4085
      %4092 = vmatprep.subr.mxu0 0.0
      %4093 = vmatpush1.msra.mxu0 %v4084
      %4094 = vmatprep.subr.mxu0 0.0
      %4095 = vmatpush1.msra.mxu0 %v4083
      %4096 = vmatprep.subr.mxu0 0.0
      %4097 = vmatpush1.msra.mxu0 %v4082
      %4098 = vmatprep.subr.mxu0 0.0
      %4099 = vmatpush1.msra.mxu0 %v4081
      %4100 = vmatprep.subr.mxu0 0.0
      %4101 = vmatpush1.msra.mxu0 %v4080
      %4102 = vmatprep.subr.mxu0 0.0
      %4103 = vmatpush1.msra.mxu0 %v4079
      %4104 = vmatprep.subr.mxu0 0.0
      %4105 = vmatpush1.msra.mxu0 %v4078
      %4106 = vmatprep.subr.mxu0 0.0
      %4107 = vmatpush1.msra.mxu0 %v4077
      %4108 = vmatprep.subr.mxu0 0.0
      %4109 = vmatpush1.msra.mxu0 %v4076
      %4110 = vmatprep.subr.mxu0 0.0
      %4111 = vmatpush1.msra.mxu0 %v4075
      %4112 = vmatprep.subr.mxu0 0.0
      %4113 = vmatpush1.msra.mxu0 %v4074
      %4114 = vmatprep.subr.mxu0 0.0
      %4115 = vmatpush1.msra.mxu0 %v4073
      %4116 = vmatprep.subr.mxu0 0.0
      %4117 = vmatpush1.msra.mxu0 %v4072
      %4118 = vmatprep.subr.mxu0 0.0
      %4119 = vmatpush1.msra.mxu0 %v4071
      %4120 = vmatprep.subr.mxu0 0.0
      %4121 = vmatpush2.msra.mxu0 0.0
      %4122 = vmatprep.subr.mxu0 0.0
      %4123 = vmatpush2.msra.mxu0 0.0
      %4124 = vmatprep.subr.mxu0 0.0
      %4125 = vmatpush2.msra.mxu0 0.0
      %4126 = vmatprep.subr.mxu0 0.0
      %4127 = vmatpush2.msra.mxu0 0.0
      %4128 = vmatprep.subr.mxu0 0.0
      %4129 = vmatpush2.msra.mxu0 0.0
      %4130 = vmatprep.subr.mxu0 0.0
      %4131 = vmatpush2.msra.mxu0 0.0
      %4132 = vmatprep.subr.mxu0 0.0
      %4133 = vmatpush2.msra.mxu0 0.0
      %4134 = vmatprep.subr.mxu0 0.0
      %4135 = vmatpush2.msra.mxu0 0.0
      %4136 = vmatprep.subr.mxu0 0.0
      %4137 = vmatpush2.msra.mxu0 0.0
      %4138 = vmatprep.subr.mxu0 0.0
      %4139 = vmatpush2.msra.mxu0 0.0
      %4140 = vmatprep.subr.mxu0 0.0
      %4141 = vmatpush2.msra.mxu0 0.0
      %4142 = vmatprep.subr.mxu0 0.0
      %4143 = vmatpush2.msra.mxu0 0.0
      %4144 = vmatprep.subr.mxu0 0.0
      %4145 = vmatpush2.msra.mxu0 0.0
      %4146 = vmatprep.subr.mxu0 0.0
      %4147 = vmatpush2.msra.mxu0 0.0
      %4148 = vmatprep.subr.mxu0 0.0
      %4149 = vmatpush2.msra.mxu0 0.0
      %4150 = vmatprep.subr.mxu0 0.0
      %4151 = vmatpush2.msra.mxu0 0.0
      %4152 = vmatprep.mubr.f32.mxu0 0.0
      %4153 = vmatmul.mubr.f32.gmra.mxu0 %v4070
      %v4154 = vpop.f32.mrf.mxu0
      %v4155 = vadd.f32 %v4087, %v4154
      %v4156 = vpop.f32.mrf.mxu0
      %4157 = vdwg.mxu0
      %v4158 = vmax.f32 %v4155, 0.0
      %v4159 = vld [vmem:[%s11] sm:$0xff]
      %v4160 = vld [vmem:[%s11 + $0x8] sm:$0xff]
      %v4161 = vld [vmem:[%s11 + $0x10] sm:$0xff]
      %v4162 = vld [vmem:[%s11 + $0x18] sm:$0xff]
      %v4163 = vld [vmem:[%s11 + $0x20] sm:$0xff]
      %v4164 = vld [vmem:[%s11 + $0x28] sm:$0xff]
      %v4165 = vld [vmem:[%s11 + $0x30] sm:$0xff]
      %v4166 = vld [vmem:[%s11 + $0x38] sm:$0xff]
      %v4167 = vld [vmem:[%s11 + $0x40] sm:$0xff]
      %v4168 = vld [vmem:[%s11 + $0x48] sm:$0xff]
      %v4169 = vld [vmem:[%s11 + $0x50] sm:$0xff]
      %v4170 = vld [vmem:[%s11 + $0x58] sm:$0xff]
      %v4171 = vld [vmem:[%s11 + $0x60] sm:$0xff]
      %v4172 = vld [vmem:[%s11 + $0x68] sm:$0xff]
      %v4173 = vld [vmem:[%s11 + $0x70] sm:$0xff]
      %v4174 = vld [vmem:[%s11 + $0x78] sm:$0xff]
      %v4175 = vld [vmem:[%s12] sm:$0x1]
      %4176 = vmatprep.subr.mxu0 0.0
      %4177 = vmatpush1.msra.mxu0 %v4174
      %4178 = vmatprep.subr.mxu0 0.0
      %4179 = vmatpush1.msra.mxu0 %v4173
      %4180 = vmatprep.subr.mxu0 0.0
      %4181 = vmatpush1.msra.mxu0 %v4172
      %4182 = vmatprep.subr.mxu0 0.0
      %4183 = vmatpush1.msra.mxu0 %v4171
      %4184 = vmatprep.subr.mxu0 0.0
      %4185 = vmatpush1.msra.mxu0 %v4170
      %4186 = vmatprep.subr.mxu0 0.0
      %4187 = vmatpush1.msra.mxu0 %v4169
      %4188 = vmatprep.subr.mxu0 0.0
      %4189 = vmatpush1.msra.mxu0 %v4168
      %4190 = vmatprep.subr.mxu0 0.0
      %4191 = vmatpush1.msra.mxu0 %v4167
      %4192 = vmatprep.subr.mxu0 0.0
      %4193 = vmatpush1.msra.mxu0 %v4166
      %4194 = vmatprep.subr.mxu0 0.0
      %4195 = vmatpush1.msra.mxu0 %v4165
      %4196 = vmatprep.subr.mxu0 0.0
      %4197 = vmatpush1.msra.mxu0 %v4164
      %4198 = vmatprep.subr.mxu0 0.0
      %4199 = vmatpush1.msra.mxu0 %v4163
      %4200 = vmatprep.subr.mxu0 0.0
      %4201 = vmatpush1.msra.mxu0 %v4162
      %4202 = vmatprep.subr.mxu0 0.0
      %4203 = vmatpush1.msra.mxu0 %v4161
      %4204 = vmatprep.subr.mxu0 0.0
      %4205 = vmatpush1.msra.mxu0 %v4160
      %4206 = vmatprep.subr.mxu0 0.0
      %4207 = vmatpush1.msra.mxu0 %v4159
      %4208 = vmatprep.subr.mxu0 0.0
      %4209 = vmatpush2.msra.mxu0 0.0
      %4210 = vmatprep.subr.mxu0 0.0
      %4211 = vmatpush2.msra.mxu0 0.0
      %4212 = vmatprep.subr.mxu0 0.0
      %4213 = vmatpush2.msra.mxu0 0.0
      %4214 = vmatprep.subr.mxu0 0.0
      %4215 = vmatpush2.msra.mxu0 0.0
      %4216 = vmatprep.subr.mxu0 0.0
      %4217 = vmatpush2.msra.mxu0 0.0
      %4218 = vmatprep.subr.mxu0 0.0
      %4219 = vmatpush2.msra.mxu0 0.0
      %4220 = vmatprep.subr.mxu0 0.0
      %4221 = vmatpush2.msra.mxu0 0.0
      %4222 = vmatprep.subr.mxu0 0.0
      %4223 = vmatpush2.msra.mxu0 0.0
      %4224 = vmatprep.subr.mxu0 0.0
      %4225 = vmatpush2.msra.mxu0 0.0
      %4226 = vmatprep.subr.mxu0 0.0
      %4227 = vmatpush2.msra.mxu0 0.0
      %4228 = vmatprep.subr.mxu0 0.0
      %4229 = vmatpush2.msra.mxu0 0.0
      %4230 = vmatprep.subr.mxu0 0.0
      %4231 = vmatpush2.msra.mxu0 0.0
      %4232 = vmatprep.subr.mxu0 0.0
      %4233 = vmatpush2.msra.mxu0 0.0
      %4234 = vmatprep.subr.mxu0 0.0
      %4235 = vmatpush2.msra.mxu0 0.0
      %4236 = vmatprep.subr.mxu0 0.0
      %4237 = vmatpush2.msra.mxu0 0.0
      %4238 = vmatprep.subr.mxu0 0.0
      %4239 = vmatpush2.msra.mxu0 0.0
      %4240 = vmatprep.mubr.f32.mxu0 0.0
      %4241 = vmatmul.mubr.f32.gmra.mxu0 %v4158
      %v4242 = vpop.f32.mrf.mxu0
      %v4243 = vadd.f32 %v4175, %v4242
      %v4244 = vpop.f32.mrf.mxu0
      %4245 = vdwg.mxu0
      %v4246 = vmax.f32 %v4243, 0.0
      %v4247 = vld [vmem:[%s13] sm:$0xff]
      %v4248 = vld [vmem:[%s13 + $0x8] sm:$0xff]
      %v4249 = vld [vmem:[%s13 + $0x10] sm:$0xff]
      %v4250 = vld [vmem:[%s13 + $0x18] sm:$0xff]
      %v4251 = vld [vmem:[%s13 + $0x20] sm:$0xff]
      %v4252 = vld [vmem:[%s13 + $0x28] sm:$0xff]
      %v4253 = vld [vmem:[%s13 + $0x30] sm:$0xff]
      %v4254 = vld [vmem:[%s13 + $0x38] sm:$0xff]
      %v4255 = vld [vmem:[%s13 + $0x40] sm:$0xff]
      %v4256 = vld [vmem:[%s13 + $0x48] sm:$0xff]
      %v4257 = vld [vmem:[%s13 + $0x50] sm:$0xff]
      %v4258 = vld [vmem:[%s13 + $0x58] sm:$0xff]
      %v4259 = vld [vmem:[%s13 + $0x60] sm:$0xff]
      %v4260 = vld [vmem:[%s13 + $0x68] sm:$0xff]
      %v4261 = vld [vmem:[%s13 + $0x70] sm:$0xff]
      %v4262 = vld [vmem:[%s13 + $0x78] sm:$0xff]
      %v4263 = vld [vmem:[%s14] sm:$0x1]
      %4264 = vmatprep.subr.mxu0 0.0
      %4265 = vmatpush1.msra.mxu0 %v4262
      %4266 = vmatprep.subr.mxu0 0.0
      %4267 = vmatpush1.msra.mxu0 %v4261
      %4268 = vmatprep.subr.mxu0 0.0
      %4269 = vmatpush1.msra.mxu0 %v4260
      %4270 = vmatprep.subr.mxu0 0.0
      %4271 = vmatpush1.msra.mxu0 %v4259
      %4272 = vmatprep.subr.mxu0 0.0
      %4273 = vmatpush1.msra.mxu0 %v4258
      %4274 = vmatprep.subr.mxu0 0.0
      %4275 = vmatpush1.msra.mxu0 %v4257
      %4276 = vmatprep.subr.mxu0 0.0
      %4277 = vmatpush1.msra.mxu0 %v4256
      %4278 = vmatprep.subr.mxu0 0.0
      %4279 = vmatpush1.msra.mxu0 %v4255
      %4280 = vmatprep.subr.mxu0 0.0
      %4281 = vmatpush1.msra.mxu0 %v4254
      %4282 = vmatprep.subr.mxu0 0.0
      %4283 = vmatpush1.msra.mxu0 %v4253
      %4284 = vmatprep.subr.mxu0 0.0
      %4285 = vmatpush1.msra.mxu0 %v4252
      %4286 = vmatprep.subr.mxu0 0.0
      %4287 = vmatpush1.msra.mxu0 %v4251
      %4288 = vmatprep.subr.mxu0 0.0
      %4289 = vmatpush1.msra.mxu0 %v4250
      %4290 = vmatprep.subr.mxu0 0.0
      %4291 = vmatpush1.msra.mxu0 %v4249
      %4292 = vmatprep.subr.mxu0 0.0
      %4293 = vmatpush1.msra.mxu0 %v4248
      %4294 = vmatprep.subr.mxu0 0.0
      %4295 = vmatpush1.msra.mxu0 %v4247
      %4296 = vmatprep.subr.mxu0 0.0
      %4297 = vmatpush2.msra.mxu0 0.0
      %4298 = vmatprep.subr.mxu0 0.0
      %4299 = vmatpush2.msra.mxu0 0.0
      %4300 = vmatprep.subr.mxu0 0.0
      %4301 = vmatpush2.msra.mxu0 0.0
      %4302 = vmatprep.subr.mxu0 0.0
      %4303 = vmatpush2.msra.mxu0 0.0
      %4304 = vmatprep.subr.mxu0 0.0
      %4305 = vmatpush2.msra.mxu0 0.0
      %4306 = vmatprep.subr.mxu0 0.0
      %4307 = vmatpush2.msra.mxu0 0.0
      %4308 = vmatprep.subr.mxu0 0.0
      %4309 = vmatpush2.msra.mxu0 0.0
      %4310 = vmatprep.subr.mxu0 0.0
      %4311 = vmatpush2.msra.mxu0 0.0
      %4312 = vmatprep.subr.mxu0 0.0
      %4313 = vmatpush2.msra.mxu0 0.0
      %4314 = vmatprep.subr.mxu0 0.0
      %4315 = vmatpush2.msra.mxu0 0.0
      %4316 = vmatprep.subr.mxu0 0.0
      %4317 = vmatpush2.msra.mxu0 0.0
      %4318 = vmatprep.subr.mxu0 0.0
      %4319 = vmatpush2.msra.mxu0 0.0
      %4320 = vmatprep.subr.mxu0 0.0
      %4321 = vmatpush2.msra.mxu0 0.0
      %4322 = vmatprep.subr.mxu0 0.0
      %4323 = vmatpush2.msra.mxu0 0.0
      %4324 = vmatprep.subr.mxu0 0.0
      %4325 = vmatpush2.msra.mxu0 0.0
      %4326 = vmatprep.subr.mxu0 0.0
      %4327 = vmatpush2.msra.mxu0 0.0
      %4328 = vmatprep.mubr.f32.mxu0 0.0
      %4329 = vmatmul.mubr.f32.gmra.mxu0 %v4246
      %v4330 = vpop.f32.mrf.mxu0
      %v4331 = vadd.f32 %v4263, %v4330
      %v4332 = vpop.f32.mrf.mxu0
      %4333 = vdwg.mxu0
      %v4334 = vlaneseq
      %v4335 = vshrl.u32 %v4334, 7
      %v4336 = vsub.s32 0, %v4335
      %v4337 = vrot.slane %v4331, %v4336
      %4338 = vst [vmem:[%s492] sm:$0xff] %v4337
      %p4339 = scmp.lt.s32.totalorder %s26, 1
      %s4340 = scalar_select %p4339, %s26, 1
      %s4341 = smul.addr %s4340, 8
      %s4342 = scalar_lea.vmem %s15, %s4341
      // Predicated region
      $region102: #{lenet5_forward.1} parent=79 // pred_check
        %p4343 = pneg %p364
      $region103: #{lenet5_forward.1} parent=79 // pred_check_branch
        %4345 = sbr.rel (%p4343) target = $region105
      $region104: #{lenet5_forward.1} parent=79 // pred_region
        _
      $region105: #{lenet5_forward.1} parent=79 // pred_fallthru
        _
    $region80: #{lenet5_forward.1} parent=5 // pred_fallthru
      _
    %p4346 = scmp.le.s32.totalorder 2, %s21
    // Predicated region
    $region106: #{lenet5_forward.1} parent=5 // pred_check
      %p4347 = pneg %p4346
    $region107: #{lenet5_forward.1} parent=5 // pred_check_branch
      %4349 = sbr.rel (%p4347) target = $region109
    $region108: #{lenet5_forward.1} parent=5 // pred_region
      %s4350 = ssub.s32 %s21, 2
      // Predicated region
      $region110: #{lenet5_forward.1} parent=108 // pred_check
        %p4351 = pneg %p370
      $region111: #{lenet5_forward.1} parent=108 // pred_check_branch
        %4353 = sbr.rel (%p4351) target = $region113
      $region112: #{lenet5_forward.1} parent=108 // pred_region
        %p4354 = scmp.lt.s32.totalorder %s27, 1
        %s4355 = scalar_select %p4354, %s27, 1
        %s4356 = smul.addr %s4355, 8
        %s4357 = scalar_lea.vmem %s15, %s4356
      $region113: #{lenet5_forward.1} parent=108 // pred_fallthru
        _
    $region109: #{lenet5_forward.1} parent=5 // pred_fallthru
      _
  $region6: #{lenet5_forward.1} parent=0 // loop_footer
    %s25 = sadd.s32 1, %s21
  $region7: #{lenet5_forward.1} parent=0 // loop_footer_branch
    %20 = sbr.rel target = $region3
  $region8: #{lenet5_forward.1} parent=0 // loop_exit
    _

</llo_original>
